<compile_context>
chip_gen: v5e
topology: v5e:2x2
jax: 0.10.0
libtpu: 0.0.40
codegen_flags: <defaults>
</compile_context>

<pallas_src>
import jax
import jax.numpy as jnp
import numpy as np
from jax import lax
from jax.experimental import pallas as pl
from jax.experimental.pallas import tpu as pltpu

NEG_SLOPE = 0.2  # LeakyReLU(0.2), as in BasicBlock


# ------------------------------ Pallas kernels ------------------------------

def _make_scale_kernel(num_convs, has_fusion, C, Mp, Wp, PAD):
    """Fused per-scale chain.

    Layout: every feature is (C, Mp) with Mp = (Hs+2)*(Ws+2) flattened padded
    spatial positions on the lane axis (zero border ring).  A 3x3 conv is a sum
    of 9 matmuls on flat-shifted views of the padded feature; the shifts are
    realized by writing the feature into a VMEM scratch with PAD-lane halo
    margins and reading static offset slices.  Border-ring lanes compute
    garbage and are multiplied back to zero by the interior mask (they are
    exactly the conv's zero padding for the next layer); interior lanes never
    read the halo margins, so margin contents cannot affect kept outputs.
    """
    deltas = [(kh - 1) * Wp + (kw - 1) for kh in range(3) for kw in range(3)]

    def kernel(*refs):
        if has_fusion:
            prev_ref, cur_ref, wf_ref, bf_ref = refs[0], refs[1], refs[2], refs[3]
            idx = 4
        else:
            cur_ref = refs[0]
            idx = 1
        wc_ref, bc_ref, mask_ref = refs[idx], refs[idx + 1], refs[idx + 2]
        o_ref, scr_ref = refs[idx + 3], refs[idx + 4]

        # Zero only the halo margins (tiny: 2 x (C, PAD) lanes).  The interior
        # region [PAD, PAD+Mp) is fully overwritten before every read.
        scr_ref[:, :PAD] = jnp.zeros((C, PAD), jnp.float32)
        scr_ref[:, PAD + Mp:] = jnp.zeros((C, PAD), jnp.float32)

        mask = mask_ref[...]                       # (1, Mp) float {0,1}

        if has_fusion:
            # Cross-scale fusion: 1x1 conv on concat([prev_up, pooled]) == sum
            # of two matmuls; + bias, LeakyReLU, re-zero the border ring.
            acc = jnp.dot(wf_ref[0], prev_ref[0],
                          preferred_element_type=jnp.float32)
            acc = acc + jnp.dot(wf_ref[1], cur_ref[0],
                                preferred_element_type=jnp.float32)
            acc = acc + bf_ref[...]
            acc = jnp.maximum(acc, NEG_SLOPE * acc)
            feat = acc * mask
        else:
            feat = cur_ref[0].astype(jnp.float32)  # already zero-padded

        for j in range(num_convs):
            scr_ref[:, PAD:PAD + Mp] = feat
            acc = None
            for t, d in enumerate(deltas):
                tap = scr_ref[:, PAD + d:PAD + d + Mp]      # (C, Mp), static slice
                contrib = jnp.dot(wc_ref[j * 9 + t], tap,
                                  preferred_element_type=jnp.float32)
                acc = contrib if acc is None else acc + contrib
            acc = acc + bc_ref[j]
            acc = jnp.maximum(acc, NEG_SLOPE * acc)         # LeakyReLU(0.2)
            if j < num_convs - 1:
                feat = acc * mask                 # restore zero ring for next conv
            else:
                feat = acc                        # ring is discarded by the caller

        o_ref[0] = feat.astype(o_ref.dtype)

    return kernel


def _make_all_fusion_kernel(n_feats):
    """All-scale fusion: 1x1 conv over n_feats concatenated inputs + bias +
    LeakyReLU + residual, as a sum of (C, C) @ (C, TM) matmuls (lane-dense)."""

    def kernel(*refs):
        f_refs = refs[:n_feats]
        x_ref = refs[n_feats]
        w_ref = refs[n_feats + 1]
        b_ref = refs[n_feats + 2]
        o_ref = refs[n_feats + 3]

        acc = jnp.dot(w_ref[0], f_refs[0][0],
                      preferred_element_type=jnp.float32) + b_ref[...]
        for k in range(1, n_feats):
            acc = acc + jnp.dot(w_ref[k], f_refs[k][0],
                                preferred_element_type=jnp.float32)
        acc = jnp.maximum(acc, NEG_SLOPE * acc)             # LeakyReLU(0.2)
        o_ref[0] = (acc + x_ref[0]).astype(o_ref.dtype)     # residual add

    return kernel


# ----------------------------- pallas_call wrappers -----------------------------

def _full_spec(shape):
    # untiled (resident) block: whole array, constant block index
    return pl.BlockSpec(shape, lambda *_: (0,) * len(shape))


def run_scale_chain(pooled_pad, prev_pad, wf, bf, wc, bc, mask, Ws):
    """One fused pallas_call per scale: [cross-scale 1x1 fusion] + num_convs x
    (3x3 conv + bias + LeakyReLU).  Grid over batch ("parallel")."""
    N, C, Mp = pooled_pad.shape
    Wp = Ws + 2
    PAD = Wp + 1                        # max |flat shift| for a 3x3 tap
    num_convs = bc.shape[0]
    has_fusion = prev_pad is not None

    kernel = _make_scale_kernel(num_convs, has_fusion, C, Mp, Wp, PAD)

    blk_feat = pl.BlockSpec((1, C, Mp), lambda n: (n, 0, 0))

    in_arrays, in_specs = [], []
    if has_fusion:
        in_arrays += [prev_pad, pooled_pad, wf, bf]
        in_specs += [blk_feat, blk_feat, _full_spec(wf.shape), _full_spec(bf.shape)]
    else:
        in_arrays += [pooled_pad]
        in_specs += [blk_feat]
    in_arrays += [wc, bc, mask]
    in_specs += [_full_spec(wc.shape), _full_spec(bc.shape), _full_spec(mask.shape)]

    flops = 2 * C * C * Mp * N * (9 * num_convs + (2 if has_fusion else 0))
    bytes_accessed = 4 * (sum(int(np.prod(a.shape)) for a in in_arrays) + N * C * Mp)

    return pl.pallas_call(
        kernel,
        out_shape=jax.ShapeDtypeStruct((N, C, Mp), jnp.float32),
        grid=(N,),
        in_specs=in_specs,
        out_specs=blk_feat,
        scratch_shapes=[pltpu.VMEM((C, Mp + 2 * PAD), jnp.float32)],
        compiler_params=pltpu.CompilerParams(dimension_semantics=("parallel",)),
        cost_estimate=pl.CostEstimate(flops=int(flops), transcendentals=0,
                                      bytes_accessed=int(bytes_accessed)),
    )(*in_arrays)


def _pick_tile(hw):
    if hw % 128 != 0:
        return hw                      # whole-extent block (always legal)
    for t in (2048, 1024, 512, 256, 128):
        if hw % t == 0:
            return t
    return hw


def run_all_fusion(feats_up, x_flat, wall, ball):
    """All-scale fusion + residual.  Grid over (batch, M-tiles), both parallel."""
    N, C, HW = x_flat.shape
    TM = _pick_tile(HW)
    n_feats = len(feats_up)
    kernel = _make_all_fusion_kernel(n_feats)

    blk = pl.BlockSpec((1, C, TM), lambda n, j: (n, 0, j))
    in_specs = [blk] * (n_feats + 1) + [_full_spec(wall.shape), _full_spec(ball.shape)]

    flops = 2 * C * C * HW * N * n_feats
    bytes_accessed = 4 * ((n_feats + 2) * N * C * HW
                          + int(np.prod(wall.shape)) + int(np.prod(ball.shape)))

    return pl.pallas_call(
        kernel,
        out_shape=jax.ShapeDtypeStruct((N, C, HW), jnp.float32),
        grid=(N, HW // TM),
        in_specs=in_specs,
        out_specs=blk,
        compiler_params=pltpu.CompilerParams(
            dimension_semantics=("parallel", "parallel")),
        cost_estimate=pl.CostEstimate(flops=int(flops), transcendentals=0,
                                      bytes_accessed=int(bytes_accessed)),
    )(*feats_up, x_flat, wall, ball)


# ------------------------------ JAX index glue ------------------------------

def _maxpool_nchw(x, s):
    if s == 1:
        return x
    N, C, H, W = x.shape
    return x.reshape(N, C, H // s, s, W // s, s).max(axis=(3, 5))


def _upsample_nearest(x, f):
    if f == 1:
        return x
    return jnp.repeat(jnp.repeat(x, f, axis=2), f, axis=3)


def _pad_flat(x):
    # (N, C, Hs, Ws) -> zero-pad spatial by 1 -> flatten to (N, C, (Hs+2)*(Ws+2))
    N, C, Hs, Ws = x.shape
    xp = jnp.pad(x, ((0, 0), (0, 0), (1, 1), (1, 1)))
    return xp.reshape(N, C, (Hs + 2) * (Ws + 2))


def _unpad(fp, Hs, Ws):
    N, C, _ = fp.shape
    return fp.reshape(N, C, Hs + 2, Ws + 2)[:, :, 1:-1, 1:-1]


def _interior_mask(Hs, Ws):
    m = jnp.pad(jnp.ones((Hs, Ws), jnp.float32), ((1, 1), (1, 1)))
    return m.reshape(1, (Hs + 2) * (Ws + 2))


# ---------------------- parameters & module forward ----------------------

def init_params(key, planes, num_scales, num_convs):
    scales = [2 ** i for i in range(num_scales)][::-1]
    params = {"convs": [], "fusions": [], "all_fusion": None}

    def nxt():
        nonlocal key
        key, sub = jax.random.split(key)
        return sub

    for _ in scales:
        # 3x3 conv weights as 9 per-tap (Cout, Cin) matrices per layer, stacked:
        # index j*9 + (kh*3 + kw)
        wc = jax.random.normal(nxt(), (num_convs * 9, planes, planes), jnp.float32) * 0.1
        bc = jax.random.normal(nxt(), (num_convs, planes, 1), jnp.float32) * 0.1
        params["convs"].append((wc, bc))
    for _ in range(num_scales - 1):
        # cross-scale fusion 1x1 conv split over the channel-concat: [prev, cur]
        wf = jax.random.normal(nxt(), (2, planes, planes), jnp.float32) * 0.1
        bf = jax.random.normal(nxt(), (planes, 1), jnp.float32) * 0.1
        params["fusions"].append((wf, bf))
    wall = jax.random.normal(nxt(), (num_scales, planes, planes), jnp.float32) * 0.1
    ball = jax.random.normal(nxt(), (planes, 1), jnp.float32) * 0.1
    params["all_fusion"] = (wall, ball)
    return params, scales


def inner_scale_fusion_block(x, params, scales):
    N, C, H, W = x.shape
    feats = []
    for i, s in enumerate(scales):
        Hs, Ws = H // s, W // s
        pooled = _maxpool_nchw(x, s)                  # (N, C, Hs, Ws) — XLA
        pooled_pad = _pad_flat(pooled)                # (N, C, Mp)
        if i == 0:
            prev_pad, wf, bf = None, None, None
        else:
            factor = scales[i - 1] // s
            prev_up = _upsample_nearest(feats[-1], factor)
            prev_pad = _pad_flat(prev_up)
            wf, bf = params["fusions"][i - 1]
        wc, bc = params["convs"][i]
        mask = _interior_mask(Hs, Ws)
        feat_pad = run_scale_chain(pooled_pad, prev_pad, wf, bf, wc, bc, mask, Ws)
        feats.append(_unpad(feat_pad, Hs, Ws))        # (N, C, Hs, Ws)

    ups = [_upsample_nearest(f, scales[k]).reshape(N, C, H * W)
           for k, f in enumerate(feats)]
    wall, ball = params["all_fusion"]
    out = run_all_fusion(ups, x.reshape(N, C, H * W), wall, ball)
    return out.reshape(N, C, H, W)


# ------------------------- pure-JAX reference -------------------------

def _leaky(v):
    return jnp.where(v >= 0, v, NEG_SLOPE * v)


def _ref_conv3x3(x, w9, b):
    cout, cin = w9.shape[1], w9.shape[2]
    w_conv = w9.reshape(3, 3, cout, cin).transpose(2, 3, 0, 1)  # OIHW
    y = lax.conv_general_dilated(x, w_conv, (1, 1), "SAME",
                                 dimension_numbers=("NCHW", "OIHW", "NCHW"))
    return _leaky(y + b.reshape(1, cout, 1, 1))


def _ref_conv1x1(x, w_cat, b):
    cout = w_cat.shape[0]
    w_conv = w_cat[:, :, None, None]
    y = lax.conv_general_dilated(x, w_conv, (1, 1), "VALID",
                                 dimension_numbers=("NCHW", "OIHW", "NCHW"))
    return _leaky(y + b.reshape(1, cout, 1, 1))


def reference_forward(x, params, scales):
    feats = []
    for i, s in enumerate(scales):
        f = _maxpool_nchw(x, s)
        if i > 0:
            prev_up = _upsample_nearest(feats[-1], scales[i - 1] // s)
            wf, bf = params["fusions"][i - 1]
            cat = jnp.concatenate([prev_up, f], axis=1)
            f = _ref_conv1x1(cat, jnp.concatenate([wf[0], wf[1]], axis=1), bf)
        wc, bc = params["convs"][i]
        for j in range(bc.shape[0]):
            f = _ref_conv3x3(f, wc[j * 9:(j + 1) * 9], bc[j])
        feats.append(f)
    ups = [_upsample_nearest(f, scales[k]) for k, f in enumerate(feats)]
    wall, ball = params["all_fusion"]
    cat = jnp.concatenate(ups, axis=1)
    w_cat = jnp.concatenate([wall[k] for k in range(wall.shape[0])], axis=1)
    out = _ref_conv1x1(cat, w_cat, ball)
    return out + x


if __name__ == "__main__":
    planes, num_scales, num_convs = 4, 3, 2
    key = jax.random.PRNGKey(0)
    pkey, xkey = jax.random.split(key)
    params, scales = init_params(pkey, planes, num_scales, num_convs)
    x = jax.random.normal(xkey, (2, planes, 16, 16), jnp.float32)

    fwd = jax.jit(lambda inp: inner_scale_fusion_block(inp, params, scales))
    out = jax.block_until_ready(fwd(x))

    ref = reference_forward(x, params, scales)
    assert out.shape == x.shape
    np.testing.assert_allclose(np.asarray(out), np.asarray(ref),
                               rtol=1e-4, atol=1e-4)
    print("KERNEL_OK")
</pallas_src>

<mosaic_0001>
module attributes {stable_mosaic.version = 11 : i64} {
  func.func @kernel(%arg0: i32, %arg1: memref<1x4x36xf32, #tpu.memory_space<vmem>>, %arg2: memref<18x4x4xf32, #tpu.memory_space<vmem>>, %arg3: memref<2x4x1xf32, #tpu.memory_space<vmem>>, %arg4: memref<1x36xf32, #tpu.memory_space<vmem>>, %arg5: memref<1x4x36xf32, #tpu.memory_space<vmem>>, %arg6: memref<4x50xf32, #tpu.memory_space<vmem>>) attributes {dimension_semantics = [#tpu.dimension_semantics<parallel>], iteration_bounds = array<i64: 2>, scalar_prefetch = 0 : i64, scratch_operands = 1 : i64, tpu.core_type = #tpu.core_type<tc>, window_params = [{transform_indices = @transform_0, window_bounds = array<i64: 1, 4, 36>}, {pipeline_mode = #tpu.pipeline_mode<synchronous>, transform_indices = @transform_1, window_bounds = array<i64: 18, 4, 4>}, {pipeline_mode = #tpu.pipeline_mode<synchronous>, transform_indices = @transform_2, window_bounds = array<i64: 2, 4, 1>}, {pipeline_mode = #tpu.pipeline_mode<synchronous>, transform_indices = @transform_3, window_bounds = array<i64: 1, 36>}, {transform_indices = @transform_4, window_bounds = array<i64: 1, 4, 36>}]} {
    %cst = arith.constant 0.000000e+00 : f32
    %0 = vector.broadcast %cst : f32 to vector<4x7xf32>
    %c0 = arith.constant 0 : index
    %c0_0 = arith.constant 0 : index
    %1 = vector.load %arg6[%c0, %c0_0] : memref<4x50xf32, #tpu.memory_space<vmem>>, vector<4x7xf32>
    tpu.vector_store %arg6[%c0, %c0_0], %0 {strides = array<i32>} : memref<4x50xf32, #tpu.memory_space<vmem>>, vector<4x7xf32>,
    %cst_1 = arith.constant 0.000000e+00 : f32
    %2 = vector.broadcast %cst_1 : f32 to vector<4x7xf32>
    %c0_2 = arith.constant 0 : index
    %c43 = arith.constant 43 : index
    %3 = vector.load %arg6[%c0_2, %c43] : memref<4x50xf32, #tpu.memory_space<vmem>>, vector<4x7xf32>
    tpu.vector_store %arg6[%c0_2, %c43], %2 {strides = array<i32>} : memref<4x50xf32, #tpu.memory_space<vmem>>, vector<4x7xf32>,
    %c0_3 = arith.constant 0 : index
    %c0_4 = arith.constant 0 : index
    %4 = vector.load %arg4[%c0_3, %c0_4] : memref<1x36xf32, #tpu.memory_space<vmem>>, vector<1x36xf32>
    %c0_5 = arith.constant 0 : index
    %c0_6 = arith.constant 0 : index
    %c0_7 = arith.constant 0 : index
    %5 = vector.load %arg1[%c0_5, %c0_6, %c0_7] : memref<1x4x36xf32, #tpu.memory_space<vmem>>, vector<1x4x36xf32>
    %6 = vector.shape_cast %5 : vector<1x4x36xf32> to vector<4x36xf32>
    %c0_8 = arith.constant 0 : index
    %c7 = arith.constant 7 : index
    %7 = vector.load %arg6[%c0_8, %c7] : memref<4x50xf32, #tpu.memory_space<vmem>>, vector<4x36xf32>
    tpu.vector_store %arg6[%c0_8, %c7], %6 {strides = array<i32>} : memref<4x50xf32, #tpu.memory_space<vmem>>, vector<4x36xf32>,
    %c0_9 = arith.constant 0 : index
    %c0_10 = arith.constant 0 : index
    %8 = vector.load %arg6[%c0_9, %c0_10] : memref<4x50xf32, #tpu.memory_space<vmem>>, vector<4x36xf32>
    %c0_11 = arith.constant 0 : index
    %c0_12 = arith.constant 0 : index
    %c0_13 = arith.constant 0 : index
    %9 = vector.load %arg2[%c0_11, %c0_12, %c0_13] : memref<18x4x4xf32, #tpu.memory_space<vmem>>, vector<1x4x4xf32>
    %10 = vector.shape_cast %9 : vector<1x4x4xf32> to vector<4x4xf32>
    %cst_14 = arith.constant dense<0.000000e+00> : vector<4x36xf32>
    %11 = tpu.matmul %10, %8, %cst_14 {dimension_numbers = #tpu.dot_dimension_numbers<[1], [0], [0], [1], [0, 0, 1, 1], [], []>} : vector<4x4xf32>, vector<4x36xf32>, vector<4x36xf32> -> vector<4x36xf32>
    %c0_15 = arith.constant 0 : index
    %c1 = arith.constant 1 : index
    %12 = vector.load %arg6[%c0_15, %c1] : memref<4x50xf32, #tpu.memory_space<vmem>>, vector<4x36xf32>
    %c1_16 = arith.constant 1 : index
    %c0_17 = arith.constant 0 : index
    %c0_18 = arith.constant 0 : index
    %13 = vector.load %arg2[%c1_16, %c0_17, %c0_18] : memref<18x4x4xf32, #tpu.memory_space<vmem>>, vector<1x4x4xf32>
    %14 = vector.shape_cast %13 : vector<1x4x4xf32> to vector<4x4xf32>
    %cst_19 = arith.constant dense<0.000000e+00> : vector<4x36xf32>
    %15 = tpu.matmul %14, %12, %cst_19 {dimension_numbers = #tpu.dot_dimension_numbers<[1], [0], [0], [1], [0, 0, 1, 1], [], []>} : vector<4x4xf32>, vector<4x36xf32>, vector<4x36xf32> -> vector<4x36xf32>
    %16 = arith.addf %11, %15 : vector<4x36xf32>
    %c0_20 = arith.constant 0 : index
    %c2 = arith.constant 2 : index
    %17 = vector.load %arg6[%c0_20, %c2] : memref<4x50xf32, #tpu.memory_space<vmem>>, vector<4x36xf32>
    %c2_21 = arith.constant 2 : index
    %c0_22 = arith.constant 0 : index
    %c0_23 = arith.constant 0 : index
    %18 = vector.load %arg2[%c2_21, %c0_22, %c0_23] : memref<18x4x4xf32, #tpu.memory_space<vmem>>, vector<1x4x4xf32>
    %19 = vector.shape_cast %18 : vector<1x4x4xf32> to vector<4x4xf32>
    %cst_24 = arith.constant dense<0.000000e+00> : vector<4x36xf32>
    %20 = tpu.matmul %19, %17, %cst_24 {dimension_numbers = #tpu.dot_dimension_numbers<[1], [0], [0], [1], [0, 0, 1, 1], [], []>} : vector<4x4xf32>, vector<4x36xf32>, vector<4x36xf32> -> vector<4x36xf32>
    %21 = arith.addf %16, %20 : vector<4x36xf32>
    %c0_25 = arith.constant 0 : index
    %c6 = arith.constant 6 : index
    %22 = vector.load %arg6[%c0_25, %c6] : memref<4x50xf32, #tpu.memory_space<vmem>>, vector<4x36xf32>
    %c3 = arith.constant 3 : index
    %c0_26 = arith.constant 0 : index
    %c0_27 = arith.constant 0 : index
    %23 = vector.load %arg2[%c3, %c0_26, %c0_27] : memref<18x4x4xf32, #tpu.memory_space<vmem>>, vector<1x4x4xf32>
    %24 = vector.shape_cast %23 : vector<1x4x4xf32> to vector<4x4xf32>
    %cst_28 = arith.constant dense<0.000000e+00> : vector<4x36xf32>
    %25 = tpu.matmul %24, %22, %cst_28 {dimension_numbers = #tpu.dot_dimension_numbers<[1], [0], [0], [1], [0, 0, 1, 1], [], []>} : vector<4x4xf32>, vector<4x36xf32>, vector<4x36xf32> -> vector<4x36xf32>
    %26 = arith.addf %21, %25 : vector<4x36xf32>
    %c0_29 = arith.constant 0 : index
    %c7_30 = arith.constant 7 : index
    %27 = vector.load %arg6[%c0_29, %c7_30] : memref<4x50xf32, #tpu.memory_space<vmem>>, vector<4x36xf32>
    %c4 = arith.constant 4 : index
    %c0_31 = arith.constant 0 : index
    %c0_32 = arith.constant 0 : index
    %28 = vector.load %arg2[%c4, %c0_31, %c0_32] : memref<18x4x4xf32, #tpu.memory_space<vmem>>, vector<1x4x4xf32>
    %29 = vector.shape_cast %28 : vector<1x4x4xf32> to vector<4x4xf32>
    %cst_33 = arith.constant dense<0.000000e+00> : vector<4x36xf32>
    %30 = tpu.matmul %29, %27, %cst_33 {dimension_numbers = #tpu.dot_dimension_numbers<[1], [0], [0], [1], [0, 0, 1, 1], [], []>} : vector<4x4xf32>, vector<4x36xf32>, vector<4x36xf32> -> vector<4x36xf32>
    %31 = arith.addf %26, %30 : vector<4x36xf32>
    %c0_34 = arith.constant 0 : index
    %c8 = arith.constant 8 : index
    %32 = vector.load %arg6[%c0_34, %c8] : memref<4x50xf32, #tpu.memory_space<vmem>>, vector<4x36xf32>
    %c5 = arith.constant 5 : index
    %c0_35 = arith.constant 0 : index
    %c0_36 = arith.constant 0 : index
    %33 = vector.load %arg2[%c5, %c0_35, %c0_36] : memref<18x4x4xf32, #tpu.memory_space<vmem>>, vector<1x4x4xf32>
    %34 = vector.shape_cast %33 : vector<1x4x4xf32> to vector<4x4xf32>
    %cst_37 = arith.constant dense<0.000000e+00> : vector<4x36xf32>
    %35 = tpu.matmul %34, %32, %cst_37 {dimension_numbers = #tpu.dot_dimension_numbers<[1], [0], [0], [1], [0, 0, 1, 1], [], []>} : vector<4x4xf32>, vector<4x36xf32>, vector<4x36xf32> -> vector<4x36xf32>
    %36 = arith.addf %31, %35 : vector<4x36xf32>
    %c0_38 = arith.constant 0 : index
    %c12 = arith.constant 12 : index
    %37 = vector.load %arg6[%c0_38, %c12] : memref<4x50xf32, #tpu.memory_space<vmem>>, vector<4x36xf32>
    %c6_39 = arith.constant 6 : index
    %c0_40 = arith.constant 0 : index
    %c0_41 = arith.constant 0 : index
    %38 = vector.load %arg2[%c6_39, %c0_40, %c0_41] : memref<18x4x4xf32, #tpu.memory_space<vmem>>, vector<1x4x4xf32>
    %39 = vector.shape_cast %38 : vector<1x4x4xf32> to vector<4x4xf32>
    %cst_42 = arith.constant dense<0.000000e+00> : vector<4x36xf32>
    %40 = tpu.matmul %39, %37, %cst_42 {dimension_numbers = #tpu.dot_dimension_numbers<[1], [0], [0], [1], [0, 0, 1, 1], [], []>} : vector<4x4xf32>, vector<4x36xf32>, vector<4x36xf32> -> vector<4x36xf32>
    %41 = arith.addf %36, %40 : vector<4x36xf32>
    %c0_43 = arith.constant 0 : index
    %c13 = arith.constant 13 : index
    %42 = vector.load %arg6[%c0_43, %c13] : memref<4x50xf32, #tpu.memory_space<vmem>>, vector<4x36xf32>
    %c7_44 = arith.constant 7 : index
    %c0_45 = arith.constant 0 : index
    %c0_46 = arith.constant 0 : index
    %43 = vector.load %arg2[%c7_44, %c0_45, %c0_46] : memref<18x4x4xf32, #tpu.memory_space<vmem>>, vector<1x4x4xf32>
    %44 = vector.shape_cast %43 : vector<1x4x4xf32> to vector<4x4xf32>
    %cst_47 = arith.constant dense<0.000000e+00> : vector<4x36xf32>
    %45 = tpu.matmul %44, %42, %cst_47 {dimension_numbers = #tpu.dot_dimension_numbers<[1], [0], [0], [1], [0, 0, 1, 1], [], []>} : vector<4x4xf32>, vector<4x36xf32>, vector<4x36xf32> -> vector<4x36xf32>
    %46 = arith.addf %41, %45 : vector<4x36xf32>
    %c0_48 = arith.constant 0 : index
    %c14 = arith.constant 14 : index
    %47 = vector.load %arg6[%c0_48, %c14] : memref<4x50xf32, #tpu.memory_space<vmem>>, vector<4x36xf32>
    %c8_49 = arith.constant 8 : index
    %c0_50 = arith.constant 0 : index
    %c0_51 = arith.constant 0 : index
    %48 = vector.load %arg2[%c8_49, %c0_50, %c0_51] : memref<18x4x4xf32, #tpu.memory_space<vmem>>, vector<1x4x4xf32>
    %49 = vector.shape_cast %48 : vector<1x4x4xf32> to vector<4x4xf32>
    %cst_52 = arith.constant dense<0.000000e+00> : vector<4x36xf32>
    %50 = tpu.matmul %49, %47, %cst_52 {dimension_numbers = #tpu.dot_dimension_numbers<[1], [0], [0], [1], [0, 0, 1, 1], [], []>} : vector<4x4xf32>, vector<4x36xf32>, vector<4x36xf32> -> vector<4x36xf32>
    %51 = arith.addf %46, %50 : vector<4x36xf32>
    %c0_53 = arith.constant 0 : index
    %c0_54 = arith.constant 0 : index
    %c0_55 = arith.constant 0 : index
    %52 = vector.load %arg3[%c0_53, %c0_54, %c0_55] : memref<2x4x1xf32, #tpu.memory_space<vmem>>, vector<1x4x1xf32>
    %53 = vector.shape_cast %52 : vector<1x4x1xf32> to vector<4x1xf32>
    %54 = vector.broadcast %53 : vector<4x1xf32> to vector<4x36xf32>
    %55 = arith.addf %51, %54 : vector<4x36xf32>
    %cst_56 = arith.constant 2.000000e-01 : f32
    %56 = vector.broadcast %cst_56 : f32 to vector<4x36xf32>
    %57 = arith.mulf %56, %55 : vector<4x36xf32>
    %58 = arith.maximumf %55, %57 : vector<4x36xf32>
    %59 = vector.broadcast %4 : vector<1x36xf32> to vector<4x36xf32>
    %60 = arith.mulf %58, %59 : vector<4x36xf32>
    %c0_57 = arith.constant 0 : index
    %c7_58 = arith.constant 7 : index
    %61 = vector.load %arg6[%c0_57, %c7_58] : memref<4x50xf32, #tpu.memory_space<vmem>>, vector<4x36xf32>
    tpu.vector_store %arg6[%c0_57, %c7_58], %60 {strides = array<i32>} : memref<4x50xf32, #tpu.memory_space<vmem>>, vector<4x36xf32>,
    %c0_59 = arith.constant 0 : index
    %c0_60 = arith.constant 0 : index
    %62 = vector.load %arg6[%c0_59, %c0_60] : memref<4x50xf32, #tpu.memory_space<vmem>>, vector<4x36xf32>
    %c9 = arith.constant 9 : index
    %c0_61 = arith.constant 0 : index
    %c0_62 = arith.constant 0 : index
    %63 = vector.load %arg2[%c9, %c0_61, %c0_62] : memref<18x4x4xf32, #tpu.memory_space<vmem>>, vector<1x4x4xf32>
    %64 = vector.shape_cast %63 : vector<1x4x4xf32> to vector<4x4xf32>
    %cst_63 = arith.constant dense<0.000000e+00> : vector<4x36xf32>
    %65 = tpu.matmul %64, %62, %cst_63 {dimension_numbers = #tpu.dot_dimension_numbers<[1], [0], [0], [1], [0, 0, 1, 1], [], []>} : vector<4x4xf32>, vector<4x36xf32>, vector<4x36xf32> -> vector<4x36xf32>
    %c0_64 = arith.constant 0 : index
    %c1_65 = arith.constant 1 : index
    %66 = vector.load %arg6[%c0_64, %c1_65] : memref<4x50xf32, #tpu.memory_space<vmem>>, vector<4x36xf32>
    %c10 = arith.constant 10 : index
    %c0_66 = arith.constant 0 : index
    %c0_67 = arith.constant 0 : index
    %67 = vector.load %arg2[%c10, %c0_66, %c0_67] : memref<18x4x4xf32, #tpu.memory_space<vmem>>, vector<1x4x4xf32>
    %68 = vector.shape_cast %67 : vector<1x4x4xf32> to vector<4x4xf32>
    %cst_68 = arith.constant dense<0.000000e+00> : vector<4x36xf32>
    %69 = tpu.matmul %68, %66, %cst_68 {dimension_numbers = #tpu.dot_dimension_numbers<[1], [0], [0], [1], [0, 0, 1, 1], [], []>} : vector<4x4xf32>, vector<4x36xf32>, vector<4x36xf32> -> vector<4x36xf32>
    %70 = arith.addf %65, %69 : vector<4x36xf32>
    %c0_69 = arith.constant 0 : index
    %c2_70 = arith.constant 2 : index
    %71 = vector.load %arg6[%c0_69, %c2_70] : memref<4x50xf32, #tpu.memory_space<vmem>>, vector<4x36xf32>
    %c11 = arith.constant 11 : index
    %c0_71 = arith.constant 0 : index
    %c0_72 = arith.constant 0 : index
    %72 = vector.load %arg2[%c11, %c0_71, %c0_72] : memref<18x4x4xf32, #tpu.memory_space<vmem>>, vector<1x4x4xf32>
    %73 = vector.shape_cast %72 : vector<1x4x4xf32> to vector<4x4xf32>
    %cst_73 = arith.constant dense<0.000000e+00> : vector<4x36xf32>
    %74 = tpu.matmul %73, %71, %cst_73 {dimension_numbers = #tpu.dot_dimension_numbers<[1], [0], [0], [1], [0, 0, 1, 1], [], []>} : vector<4x4xf32>, vector<4x36xf32>, vector<4x36xf32> -> vector<4x36xf32>
    %75 = arith.addf %70, %74 : vector<4x36xf32>
    %c0_74 = arith.constant 0 : index
    %c6_75 = arith.constant 6 : index
    %76 = vector.load %arg6[%c0_74, %c6_75] : memref<4x50xf32, #tpu.memory_space<vmem>>, vector<4x36xf32>
    %c12_76 = arith.constant 12 : index
    %c0_77 = arith.constant 0 : index
    %c0_78 = arith.constant 0 : index
    %77 = vector.load %arg2[%c12_76, %c0_77, %c0_78] : memref<18x4x4xf32, #tpu.memory_space<vmem>>, vector<1x4x4xf32>
    %78 = vector.shape_cast %77 : vector<1x4x4xf32> to vector<4x4xf32>
    %cst_79 = arith.constant dense<0.000000e+00> : vector<4x36xf32>
    %79 = tpu.matmul %78, %76, %cst_79 {dimension_numbers = #tpu.dot_dimension_numbers<[1], [0], [0], [1], [0, 0, 1, 1], [], []>} : vector<4x4xf32>, vector<4x36xf32>, vector<4x36xf32> -> vector<4x36xf32>
    %80 = arith.addf %75, %79 : vector<4x36xf32>
    %c0_80 = arith.constant 0 : index
    %c7_81 = arith.constant 7 : index
    %81 = vector.load %arg6[%c0_80, %c7_81] : memref<4x50xf32, #tpu.memory_space<vmem>>, vector<4x36xf32>
    %c13_82 = arith.constant 13 : index
    %c0_83 = arith.constant 0 : index
    %c0_84 = arith.constant 0 : index
    %82 = vector.load %arg2[%c13_82, %c0_83, %c0_84] : memref<18x4x4xf32, #tpu.memory_space<vmem>>, vector<1x4x4xf32>
    %83 = vector.shape_cast %82 : vector<1x4x4xf32> to vector<4x4xf32>
    %cst_85 = arith.constant dense<0.000000e+00> : vector<4x36xf32>
    %84 = tpu.matmul %83, %81, %cst_85 {dimension_numbers = #tpu.dot_dimension_numbers<[1], [0], [0], [1], [0, 0, 1, 1], [], []>} : vector<4x4xf32>, vector<4x36xf32>, vector<4x36xf32> -> vector<4x36xf32>
    %85 = arith.addf %80, %84 : vector<4x36xf32>
    %c0_86 = arith.constant 0 : index
    %c8_87 = arith.constant 8 : index
    %86 = vector.load %arg6[%c0_86, %c8_87] : memref<4x50xf32, #tpu.memory_space<vmem>>, vector<4x36xf32>
    %c14_88 = arith.constant 14 : index
    %c0_89 = arith.constant 0 : index
    %c0_90 = arith.constant 0 : index
    %87 = vector.load %arg2[%c14_88, %c0_89, %c0_90] : memref<18x4x4xf32, #tpu.memory_space<vmem>>, vector<1x4x4xf32>
    %88 = vector.shape_cast %87 : vector<1x4x4xf32> to vector<4x4xf32>
    %cst_91 = arith.constant dense<0.000000e+00> : vector<4x36xf32>
    %89 = tpu.matmul %88, %86, %cst_91 {dimension_numbers = #tpu.dot_dimension_numbers<[1], [0], [0], [1], [0, 0, 1, 1], [], []>} : vector<4x4xf32>, vector<4x36xf32>, vector<4x36xf32> -> vector<4x36xf32>
    %90 = arith.addf %85, %89 : vector<4x36xf32>
    %c0_92 = arith.constant 0 : index
    %c12_93 = arith.constant 12 : index
    %91 = vector.load %arg6[%c0_92, %c12_93] : memref<4x50xf32, #tpu.memory_space<vmem>>, vector<4x36xf32>
    %c15 = arith.constant 15 : index
    %c0_94 = arith.constant 0 : index
    %c0_95 = arith.constant 0 : index
    %92 = vector.load %arg2[%c15, %c0_94, %c0_95] : memref<18x4x4xf32, #tpu.memory_space<vmem>>, vector<1x4x4xf32>
    %93 = vector.shape_cast %92 : vector<1x4x4xf32> to vector<4x4xf32>
    %cst_96 = arith.constant dense<0.000000e+00> : vector<4x36xf32>
    %94 = tpu.matmul %93, %91, %cst_96 {dimension_numbers = #tpu.dot_dimension_numbers<[1], [0], [0], [1], [0, 0, 1, 1], [], []>} : vector<4x4xf32>, vector<4x36xf32>, vector<4x36xf32> -> vector<4x36xf32>
    %95 = arith.addf %90, %94 : vector<4x36xf32>
    %c0_97 = arith.constant 0 : index
    %c13_98 = arith.constant 13 : index
    %96 = vector.load %arg6[%c0_97, %c13_98] : memref<4x50xf32, #tpu.memory_space<vmem>>, vector<4x36xf32>
    %c16 = arith.constant 16 : index
    %c0_99 = arith.constant 0 : index
    %c0_100 = arith.constant 0 : index
    %97 = vector.load %arg2[%c16, %c0_99, %c0_100] : memref<18x4x4xf32, #tpu.memory_space<vmem>>, vector<1x4x4xf32>
    %98 = vector.shape_cast %97 : vector<1x4x4xf32> to vector<4x4xf32>
    %cst_101 = arith.constant dense<0.000000e+00> : vector<4x36xf32>
    %99 = tpu.matmul %98, %96, %cst_101 {dimension_numbers = #tpu.dot_dimension_numbers<[1], [0], [0], [1], [0, 0, 1, 1], [], []>} : vector<4x4xf32>, vector<4x36xf32>, vector<4x36xf32> -> vector<4x36xf32>
    %100 = arith.addf %95, %99 : vector<4x36xf32>
    %c0_102 = arith.constant 0 : index
    %c14_103 = arith.constant 14 : index
    %101 = vector.load %arg6[%c0_102, %c14_103] : memref<4x50xf32, #tpu.memory_space<vmem>>, vector<4x36xf32>
    %c17 = arith.constant 17 : index
    %c0_104 = arith.constant 0 : index
    %c0_105 = arith.constant 0 : index
    %102 = vector.load %arg2[%c17, %c0_104, %c0_105] : memref<18x4x4xf32, #tpu.memory_space<vmem>>, vector<1x4x4xf32>
    %103 = vector.shape_cast %102 : vector<1x4x4xf32> to vector<4x4xf32>
    %cst_106 = arith.constant dense<0.000000e+00> : vector<4x36xf32>
    %104 = tpu.matmul %103, %101, %cst_106 {dimension_numbers = #tpu.dot_dimension_numbers<[1], [0], [0], [1], [0, 0, 1, 1], [], []>} : vector<4x4xf32>, vector<4x36xf32>, vector<4x36xf32> -> vector<4x36xf32>
    %105 = arith.addf %100, %104 : vector<4x36xf32>
    %c1_107 = arith.constant 1 : index
    %c0_108 = arith.constant 0 : index
    %c0_109 = arith.constant 0 : index
    %106 = vector.load %arg3[%c1_107, %c0_108, %c0_109] : memref<2x4x1xf32, #tpu.memory_space<vmem>>, vector<1x4x1xf32>
    %107 = vector.shape_cast %106 : vector<1x4x1xf32> to vector<4x1xf32>
    %108 = vector.broadcast %107 : vector<4x1xf32> to vector<4x36xf32>
    %109 = arith.addf %105, %108 : vector<4x36xf32>
    %cst_110 = arith.constant 2.000000e-01 : f32
    %110 = vector.broadcast %cst_110 : f32 to vector<4x36xf32>
    %111 = arith.mulf %110, %109 : vector<4x36xf32>
    %112 = arith.maximumf %109, %111 : vector<4x36xf32>
    %c0_111 = arith.constant 0 : index
    %c0_112 = arith.constant 0 : index
    %c0_113 = arith.constant 0 : index
    %113 = vector.load %arg5[%c0_111, %c0_112, %c0_113] : memref<1x4x36xf32, #tpu.memory_space<vmem>>, vector<1x4x36xf32>
    %114 = vector.shape_cast %113 : vector<1x4x36xf32> to vector<4x36xf32>
    %115 = vector.shape_cast %112 : vector<4x36xf32> to vector<1x4x36xf32>
    tpu.vector_store %arg5[%c0_111, %c0_112, %c0_113], %115 {strides = array<i32>} : memref<1x4x36xf32, #tpu.memory_space<vmem>>, vector<1x4x36xf32>,
    return
  }
  func.func @transform_0(%arg0: i32) -> (i32, i32, i32) {
    %c0_i32 = arith.constant 0 : i32
    %c0_i32_0 = arith.constant 0 : i32
    %c0_i32_1 = arith.constant 0 : i32
    return %arg0, %c0_i32, %c0_i32_0 : i32, i32, i32
  }
  func.func @transform_1(%arg0: i32) -> (i32, i32, i32) {
    %c0_i32 = arith.constant 0 : i32
    %c0_i32_0 = arith.constant 0 : i32
    %c0_i32_1 = arith.constant 0 : i32
    %c0_i32_2 = arith.constant 0 : i32
    return %c0_i32, %c0_i32_0, %c0_i32_1 : i32, i32, i32
  }
  func.func @transform_2(%arg0: i32) -> (i32, i32, i32) {
    %c0_i32 = arith.constant 0 : i32
    %c0_i32_0 = arith.constant 0 : i32
    %c0_i32_1 = arith.constant 0 : i32
    %c0_i32_2 = arith.constant 0 : i32
    return %c0_i32, %c0_i32_0, %c0_i32_1 : i32, i32, i32
  }
  func.func @transform_3(%arg0: i32) -> (i32, i32) {
    %c0_i32 = arith.constant 0 : i32
    %c0_i32_0 = arith.constant 0 : i32
    %c0_i32_1 = arith.constant 0 : i32
    return %c0_i32, %c0_i32_0 : i32, i32
  }
  func.func @transform_4(%arg0: i32) -> (i32, i32, i32) {
    %c0_i32 = arith.constant 0 : i32
    %c0_i32_0 = arith.constant 0 : i32
    %c0_i32_1 = arith.constant 0 : i32
    return %arg0, %c0_i32, %c0_i32_0 : i32, i32, i32
  }
}

module attributes {stable_mosaic.version = 11 : i64} {
  func.func @kernel(%arg0: i32, %arg1: memref<1x4x100xf32, #tpu.memory_space<vmem>>, %arg2: memref<1x4x100xf32, #tpu.memory_space<vmem>>, %arg3: memref<2x4x4xf32, #tpu.memory_space<vmem>>, %arg4: memref<4x1xf32, #tpu.memory_space<vmem>>, %arg5: memref<18x4x4xf32, #tpu.memory_space<vmem>>, %arg6: memref<2x4x1xf32, #tpu.memory_space<vmem>>, %arg7: memref<1x100xf32, #tpu.memory_space<vmem>>, %arg8: memref<1x4x100xf32, #tpu.memory_space<vmem>>, %arg9: memref<4x122xf32, #tpu.memory_space<vmem>>) attributes {dimension_semantics = [#tpu.dimension_semantics<parallel>], iteration_bounds = array<i64: 2>, scalar_prefetch = 0 : i64, scratch_operands = 1 : i64, tpu.core_type = #tpu.core_type<tc>, window_params = [{transform_indices = @transform_0, window_bounds = array<i64: 1, 4, 100>}, {transform_indices = @transform_1, window_bounds = array<i64: 1, 4, 100>}, {pipeline_mode = #tpu.pipeline_mode<synchronous>, transform_indices = @transform_2, window_bounds = array<i64: 2, 4, 4>}, {pipeline_mode = #tpu.pipeline_mode<synchronous>, transform_indices = @transform_3, window_bounds = array<i64: 4, 1>}, {pipeline_mode = #tpu.pipeline_mode<synchronous>, transform_indices = @transform_4, window_bounds = array<i64: 18, 4, 4>}, {pipeline_mode = #tpu.pipeline_mode<synchronous>, transform_indices = @transform_5, window_bounds = array<i64: 2, 4, 1>}, {pipeline_mode = #tpu.pipeline_mode<synchronous>, transform_indices = @transform_6, window_bounds = array<i64: 1, 100>}, {transform_indices = @transform_7, window_bounds = array<i64: 1, 4, 100>}]} {
    %cst = arith.constant 0.000000e+00 : f32
    %0 = vector.broadcast %cst : f32 to vector<4x11xf32>
    %c0 = arith.constant 0 : index
    %c0_0 = arith.constant 0 : index
    %1 = vector.load %arg9[%c0, %c0_0] : memref<4x122xf32, #tpu.memory_space<vmem>>, vector<4x11xf32>
    tpu.vector_store %arg9[%c0, %c0_0], %0 {strides = array<i32>} : memref<4x122xf32, #tpu.memory_space<vmem>>, vector<4x11xf32>,
    %cst_1 = arith.constant 0.000000e+00 : f32
    %2 = vector.broadcast %cst_1 : f32 to vector<4x11xf32>
    %c0_2 = arith.constant 0 : index
    %c111 = arith.constant 111 : index
    %3 = vector.load %arg9[%c0_2, %c111] : memref<4x122xf32, #tpu.memory_space<vmem>>, vector<4x11xf32>
    tpu.vector_store %arg9[%c0_2, %c111], %2 {strides = array<i32>} : memref<4x122xf32, #tpu.memory_space<vmem>>, vector<4x11xf32>,
    %c0_3 = arith.constant 0 : index
    %c0_4 = arith.constant 0 : index
    %4 = vector.load %arg7[%c0_3, %c0_4] : memref<1x100xf32, #tpu.memory_space<vmem>>, vector<1x100xf32>
    %c0_5 = arith.constant 0 : index
    %c0_6 = arith.constant 0 : index
    %c0_7 = arith.constant 0 : index
    %5 = vector.load %arg3[%c0_5, %c0_6, %c0_7] : memref<2x4x4xf32, #tpu.memory_space<vmem>>, vector<1x4x4xf32>
    %6 = vector.shape_cast %5 : vector<1x4x4xf32> to vector<4x4xf32>
    %c0_8 = arith.constant 0 : index
    %c0_9 = arith.constant 0 : index
    %c0_10 = arith.constant 0 : index
    %7 = vector.load %arg1[%c0_8, %c0_9, %c0_10] : memref<1x4x100xf32, #tpu.memory_space<vmem>>, vector<1x4x100xf32>
    %8 = vector.shape_cast %7 : vector<1x4x100xf32> to vector<4x100xf32>
    %cst_11 = arith.constant dense<0.000000e+00> : vector<4x100xf32>
    %9 = tpu.matmul %6, %8, %cst_11 {dimension_numbers = #tpu.dot_dimension_numbers<[1], [0], [0], [1], [0, 0, 1, 1], [], []>} : vector<4x4xf32>, vector<4x100xf32>, vector<4x100xf32> -> vector<4x100xf32>
    %c1 = arith.constant 1 : index
    %c0_12 = arith.constant 0 : index
    %c0_13 = arith.constant 0 : index
    %10 = vector.load %arg3[%c1, %c0_12, %c0_13] : memref<2x4x4xf32, #tpu.memory_space<vmem>>, vector<1x4x4xf32>
    %11 = vector.shape_cast %10 : vector<1x4x4xf32> to vector<4x4xf32>
    %c0_14 = arith.constant 0 : index
    %c0_15 = arith.constant 0 : index
    %c0_16 = arith.constant 0 : index
    %12 = vector.load %arg2[%c0_14, %c0_15, %c0_16] : memref<1x4x100xf32, #tpu.memory_space<vmem>>, vector<1x4x100xf32>
    %13 = vector.shape_cast %12 : vector<1x4x100xf32> to vector<4x100xf32>
    %cst_17 = arith.constant dense<0.000000e+00> : vector<4x100xf32>
    %14 = tpu.matmul %11, %13, %cst_17 {dimension_numbers = #tpu.dot_dimension_numbers<[1], [0], [0], [1], [0, 0, 1, 1], [], []>} : vector<4x4xf32>, vector<4x100xf32>, vector<4x100xf32> -> vector<4x100xf32>
    %15 = arith.addf %9, %14 : vector<4x100xf32>
    %c0_18 = arith.constant 0 : index
    %c0_19 = arith.constant 0 : index
    %16 = vector.load %arg4[%c0_18, %c0_19] : memref<4x1xf32, #tpu.memory_space<vmem>>, vector<4x1xf32>
    %17 = vector.broadcast %16 : vector<4x1xf32> to vector<4x100xf32>
    %18 = arith.addf %15, %17 : vector<4x100xf32>
    %cst_20 = arith.constant 2.000000e-01 : f32
    %19 = vector.broadcast %cst_20 : f32 to vector<4x100xf32>
    %20 = arith.mulf %19, %18 : vector<4x100xf32>
    %21 = arith.maximumf %18, %20 : vector<4x100xf32>
    %22 = vector.broadcast %4 : vector<1x100xf32> to vector<4x100xf32>
    %23 = arith.mulf %21, %22 : vector<4x100xf32>
    %c0_21 = arith.constant 0 : index
    %c11 = arith.constant 11 : index
    %24 = vector.load %arg9[%c0_21, %c11] : memref<4x122xf32, #tpu.memory_space<vmem>>, vector<4x100xf32>
    tpu.vector_store %arg9[%c0_21, %c11], %23 {strides = array<i32>} : memref<4x122xf32, #tpu.memory_space<vmem>>, vector<4x100xf32>,
    %c0_22 = arith.constant 0 : index
    %c0_23 = arith.constant 0 : index
    %25 = vector.load %arg9[%c0_22, %c0_23] : memref<4x122xf32, #tpu.memory_space<vmem>>, vector<4x100xf32>
    %c0_24 = arith.constant 0 : index
    %c0_25 = arith.constant 0 : index
    %c0_26 = arith.constant 0 : index
    %26 = vector.load %arg5[%c0_24, %c0_25, %c0_26] : memref<18x4x4xf32, #tpu.memory_space<vmem>>, vector<1x4x4xf32>
    %27 = vector.shape_cast %26 : vector<1x4x4xf32> to vector<4x4xf32>
    %cst_27 = arith.constant dense<0.000000e+00> : vector<4x100xf32>
    %28 = tpu.matmul %27, %25, %cst_27 {dimension_numbers = #tpu.dot_dimension_numbers<[1], [0], [0], [1], [0, 0, 1, 1], [], []>} : vector<4x4xf32>, vector<4x100xf32>, vector<4x100xf32> -> vector<4x100xf32>
    %c0_28 = arith.constant 0 : index
    %c1_29 = arith.constant 1 : index
    %29 = vector.load %arg9[%c0_28, %c1_29] : memref<4x122xf32, #tpu.memory_space<vmem>>, vector<4x100xf32>
    %c1_30 = arith.constant 1 : index
    %c0_31 = arith.constant 0 : index
    %c0_32 = arith.constant 0 : index
    %30 = vector.load %arg5[%c1_30, %c0_31, %c0_32] : memref<18x4x4xf32, #tpu.memory_space<vmem>>, vector<1x4x4xf32>
    %31 = vector.shape_cast %30 : vector<1x4x4xf32> to vector<4x4xf32>
    %cst_33 = arith.constant dense<0.000000e+00> : vector<4x100xf32>
    %32 = tpu.matmul %31, %29, %cst_33 {dimension_numbers = #tpu.dot_dimension_numbers<[1], [0], [0], [1], [0, 0, 1, 1], [], []>} : vector<4x4xf32>, vector<4x100xf32>, vector<4x100xf32> -> vector<4x100xf32>
    %33 = arith.addf %28, %32 : vector<4x100xf32>
    %c0_34 = arith.constant 0 : index
    %c2 = arith.constant 2 : index
    %34 = vector.load %arg9[%c0_34, %c2] : memref<4x122xf32, #tpu.memory_space<vmem>>, vector<4x100xf32>
    %c2_35 = arith.constant 2 : index
    %c0_36 = arith.constant 0 : index
    %c0_37 = arith.constant 0 : index
    %35 = vector.load %arg5[%c2_35, %c0_36, %c0_37] : memref<18x4x4xf32, #tpu.memory_space<vmem>>, vector<1x4x4xf32>
    %36 = vector.shape_cast %35 : vector<1x4x4xf32> to vector<4x4xf32>
    %cst_38 = arith.constant dense<0.000000e+00> : vector<4x100xf32>
    %37 = tpu.matmul %36, %34, %cst_38 {dimension_numbers = #tpu.dot_dimension_numbers<[1], [0], [0], [1], [0, 0, 1, 1], [], []>} : vector<4x4xf32>, vector<4x100xf32>, vector<4x100xf32> -> vector<4x100xf32>
    %38 = arith.addf %33, %37 : vector<4x100xf32>
    %c0_39 = arith.constant 0 : index
    %c10 = arith.constant 10 : index
    %39 = vector.load %arg9[%c0_39, %c10] : memref<4x122xf32, #tpu.memory_space<vmem>>, vector<4x100xf32>
    %c3 = arith.constant 3 : index
    %c0_40 = arith.constant 0 : index
    %c0_41 = arith.constant 0 : index
    %40 = vector.load %arg5[%c3, %c0_40, %c0_41] : memref<18x4x4xf32, #tpu.memory_space<vmem>>, vector<1x4x4xf32>
    %41 = vector.shape_cast %40 : vector<1x4x4xf32> to vector<4x4xf32>
    %cst_42 = arith.constant dense<0.000000e+00> : vector<4x100xf32>
    %42 = tpu.matmul %41, %39, %cst_42 {dimension_numbers = #tpu.dot_dimension_numbers<[1], [0], [0], [1], [0, 0, 1, 1], [], []>} : vector<4x4xf32>, vector<4x100xf32>, vector<4x100xf32> -> vector<4x100xf32>
    %43 = arith.addf %38, %42 : vector<4x100xf32>
    %c0_43 = arith.constant 0 : index
    %c11_44 = arith.constant 11 : index
    %44 = vector.load %arg9[%c0_43, %c11_44] : memref<4x122xf32, #tpu.memory_space<vmem>>, vector<4x100xf32>
    %c4 = arith.constant 4 : index
    %c0_45 = arith.constant 0 : index
    %c0_46 = arith.constant 0 : index
    %45 = vector.load %arg5[%c4, %c0_45, %c0_46] : memref<18x4x4xf32, #tpu.memory_space<vmem>>, vector<1x4x4xf32>
    %46 = vector.shape_cast %45 : vector<1x4x4xf32> to vector<4x4xf32>
    %cst_47 = arith.constant dense<0.000000e+00> : vector<4x100xf32>
    %47 = tpu.matmul %46, %44, %cst_47 {dimension_numbers = #tpu.dot_dimension_numbers<[1], [0], [0], [1], [0, 0, 1, 1], [], []>} : vector<4x4xf32>, vector<4x100xf32>, vector<4x100xf32> -> vector<4x100xf32>
    %48 = arith.addf %43, %47 : vector<4x100xf32>
    %c0_48 = arith.constant 0 : index
    %c12 = arith.constant 12 : index
    %49 = vector.load %arg9[%c0_48, %c12] : memref<4x122xf32, #tpu.memory_space<vmem>>, vector<4x100xf32>
    %c5 = arith.constant 5 : index
    %c0_49 = arith.constant 0 : index
    %c0_50 = arith.constant 0 : index
    %50 = vector.load %arg5[%c5, %c0_49, %c0_50] : memref<18x4x4xf32, #tpu.memory_space<vmem>>, vector<1x4x4xf32>
    %51 = vector.shape_cast %50 : vector<1x4x4xf32> to vector<4x4xf32>
    %cst_51 = arith.constant dense<0.000000e+00> : vector<4x100xf32>
    %52 = tpu.matmul %51, %49, %cst_51 {dimension_numbers = #tpu.dot_dimension_numbers<[1], [0], [0], [1], [0, 0, 1, 1], [], []>} : vector<4x4xf32>, vector<4x100xf32>, vector<4x100xf32> -> vector<4x100xf32>
    %53 = arith.addf %48, %52 : vector<4x100xf32>
    %c0_52 = arith.constant 0 : index
    %c20 = arith.constant 20 : index
    %54 = vector.load %arg9[%c0_52, %c20] : memref<4x122xf32, #tpu.memory_space<vmem>>, vector<4x100xf32>
    %c6 = arith.constant 6 : index
    %c0_53 = arith.constant 0 : index
    %c0_54 = arith.constant 0 : index
    %55 = vector.load %arg5[%c6, %c0_53, %c0_54] : memref<18x4x4xf32, #tpu.memory_space<vmem>>, vector<1x4x4xf32>
    %56 = vector.shape_cast %55 : vector<1x4x4xf32> to vector<4x4xf32>
    %cst_55 = arith.constant dense<0.000000e+00> : vector<4x100xf32>
    %57 = tpu.matmul %56, %54, %cst_55 {dimension_numbers = #tpu.dot_dimension_numbers<[1], [0], [0], [1], [0, 0, 1, 1], [], []>} : vector<4x4xf32>, vector<4x100xf32>, vector<4x100xf32> -> vector<4x100xf32>
    %58 = arith.addf %53, %57 : vector<4x100xf32>
    %c0_56 = arith.constant 0 : index
    %c21 = arith.constant 21 : index
    %59 = vector.load %arg9[%c0_56, %c21] : memref<4x122xf32, #tpu.memory_space<vmem>>, vector<4x100xf32>
    %c7 = arith.constant 7 : index
    %c0_57 = arith.constant 0 : index
    %c0_58 = arith.constant 0 : index
    %60 = vector.load %arg5[%c7, %c0_57, %c0_58] : memref<18x4x4xf32, #tpu.memory_space<vmem>>, vector<1x4x4xf32>
    %61 = vector.shape_cast %60 : vector<1x4x4xf32> to vector<4x4xf32>
    %cst_59 = arith.constant dense<0.000000e+00> : vector<4x100xf32>
    %62 = tpu.matmul %61, %59, %cst_59 {dimension_numbers = #tpu.dot_dimension_numbers<[1], [0], [0], [1], [0, 0, 1, 1], [], []>} : vector<4x4xf32>, vector<4x100xf32>, vector<4x100xf32> -> vector<4x100xf32>
    %63 = arith.addf %58, %62 : vector<4x100xf32>
    %c0_60 = arith.constant 0 : index
    %c22 = arith.constant 22 : index
    %64 = vector.load %arg9[%c0_60, %c22] : memref<4x122xf32, #tpu.memory_space<vmem>>, vector<4x100xf32>
    %c8 = arith.constant 8 : index
    %c0_61 = arith.constant 0 : index
    %c0_62 = arith.constant 0 : index
    %65 = vector.load %arg5[%c8, %c0_61, %c0_62] : memref<18x4x4xf32, #tpu.memory_space<vmem>>, vector<1x4x4xf32>
    %66 = vector.shape_cast %65 : vector<1x4x4xf32> to vector<4x4xf32>
    %cst_63 = arith.constant dense<0.000000e+00> : vector<4x100xf32>
    %67 = tpu.matmul %66, %64, %cst_63 {dimension_numbers = #tpu.dot_dimension_numbers<[1], [0], [0], [1], [0, 0, 1, 1], [], []>} : vector<4x4xf32>, vector<4x100xf32>, vector<4x100xf32> -> vector<4x100xf32>
    %68 = arith.addf %63, %67 : vector<4x100xf32>
    %c0_64 = arith.constant 0 : index
    %c0_65 = arith.constant 0 : index
    %c0_66 = arith.constant 0 : index
    %69 = vector.load %arg6[%c0_64, %c0_65, %c0_66] : memref<2x4x1xf32, #tpu.memory_space<vmem>>, vector<1x4x1xf32>
    %70 = vector.shape_cast %69 : vector<1x4x1xf32> to vector<4x1xf32>
    %71 = vector.broadcast %70 : vector<4x1xf32> to vector<4x100xf32>
    %72 = arith.addf %68, %71 : vector<4x100xf32>
    %cst_67 = arith.constant 2.000000e-01 : f32
    %73 = vector.broadcast %cst_67 : f32 to vector<4x100xf32>
    %74 = arith.mulf %73, %72 : vector<4x100xf32>
    %75 = arith.maximumf %72, %74 : vector<4x100xf32>
    %76 = vector.broadcast %4 : vector<1x100xf32> to vector<4x100xf32>
    %77 = arith.mulf %75, %76 : vector<4x100xf32>
    %c0_68 = arith.constant 0 : index
    %c11_69 = arith.constant 11 : index
    %78 = vector.load %arg9[%c0_68, %c11_69] : memref<4x122xf32, #tpu.memory_space<vmem>>, vector<4x100xf32>
    tpu.vector_store %arg9[%c0_68, %c11_69], %77 {strides = array<i32>} : memref<4x122xf32, #tpu.memory_space<vmem>>, vector<4x100xf32>,
    %c0_70 = arith.constant 0 : index
    %c0_71 = arith.constant 0 : index
    %79 = vector.load %arg9[%c0_70, %c0_71] : memref<4x122xf32, #tpu.memory_space<vmem>>, vector<4x100xf32>
    %c9 = arith.constant 9 : index
    %c0_72 = arith.constant 0 : index
    %c0_73 = arith.constant 0 : index
    %80 = vector.load %arg5[%c9, %c0_72, %c0_73] : memref<18x4x4xf32, #tpu.memory_space<vmem>>, vector<1x4x4xf32>
    %81 = vector.shape_cast %80 : vector<1x4x4xf32> to vector<4x4xf32>
    %cst_74 = arith.constant dense<0.000000e+00> : vector<4x100xf32>
    %82 = tpu.matmul %81, %79, %cst_74 {dimension_numbers = #tpu.dot_dimension_numbers<[1], [0], [0], [1], [0, 0, 1, 1], [], []>} : vector<4x4xf32>, vector<4x100xf32>, vector<4x100xf32> -> vector<4x100xf32>
    %c0_75 = arith.constant 0 : index
    %c1_76 = arith.constant 1 : index
    %83 = vector.load %arg9[%c0_75, %c1_76] : memref<4x122xf32, #tpu.memory_space<vmem>>, vector<4x100xf32>
    %c10_77 = arith.constant 10 : index
    %c0_78 = arith.constant 0 : index
    %c0_79 = arith.constant 0 : index
    %84 = vector.load %arg5[%c10_77, %c0_78, %c0_79] : memref<18x4x4xf32, #tpu.memory_space<vmem>>, vector<1x4x4xf32>
    %85 = vector.shape_cast %84 : vector<1x4x4xf32> to vector<4x4xf32>
    %cst_80 = arith.constant dense<0.000000e+00> : vector<4x100xf32>
    %86 = tpu.matmul %85, %83, %cst_80 {dimension_numbers = #tpu.dot_dimension_numbers<[1], [0], [0], [1], [0, 0, 1, 1], [], []>} : vector<4x4xf32>, vector<4x100xf32>, vector<4x100xf32> -> vector<4x100xf32>
    %87 = arith.addf %82, %86 : vector<4x100xf32>
    %c0_81 = arith.constant 0 : index
    %c2_82 = arith.constant 2 : index
    %88 = vector.load %arg9[%c0_81, %c2_82] : memref<4x122xf32, #tpu.memory_space<vmem>>, vector<4x100xf32>
    %c11_83 = arith.constant 11 : index
    %c0_84 = arith.constant 0 : index
    %c0_85 = arith.constant 0 : index
    %89 = vector.load %arg5[%c11_83, %c0_84, %c0_85] : memref<18x4x4xf32, #tpu.memory_space<vmem>>, vector<1x4x4xf32>
    %90 = vector.shape_cast %89 : vector<1x4x4xf32> to vector<4x4xf32>
    %cst_86 = arith.constant dense<0.000000e+00> : vector<4x100xf32>
    %91 = tpu.matmul %90, %88, %cst_86 {dimension_numbers = #tpu.dot_dimension_numbers<[1], [0], [0], [1], [0, 0, 1, 1], [], []>} : vector<4x4xf32>, vector<4x100xf32>, vector<4x100xf32> -> vector<4x100xf32>
    %92 = arith.addf %87, %91 : vector<4x100xf32>
    %c0_87 = arith.constant 0 : index
    %c10_88 = arith.constant 10 : index
    %93 = vector.load %arg9[%c0_87, %c10_88] : memref<4x122xf32, #tpu.memory_space<vmem>>, vector<4x100xf32>
    %c12_89 = arith.constant 12 : index
    %c0_90 = arith.constant 0 : index
    %c0_91 = arith.constant 0 : index
    %94 = vector.load %arg5[%c12_89, %c0_90, %c0_91] : memref<18x4x4xf32, #tpu.memory_space<vmem>>, vector<1x4x4xf32>
    %95 = vector.shape_cast %94 : vector<1x4x4xf32> to vector<4x4xf32>
    %cst_92 = arith.constant dense<0.000000e+00> : vector<4x100xf32>
    %96 = tpu.matmul %95, %93, %cst_92 {dimension_numbers = #tpu.dot_dimension_numbers<[1], [0], [0], [1], [0, 0, 1, 1], [], []>} : vector<4x4xf32>, vector<4x100xf32>, vector<4x100xf32> -> vector<4x100xf32>
    %97 = arith.addf %92, %96 : vector<4x100xf32>
    %c0_93 = arith.constant 0 : index
    %c11_94 = arith.constant 11 : index
    %98 = vector.load %arg9[%c0_93, %c11_94] : memref<4x122xf32, #tpu.memory_space<vmem>>, vector<4x100xf32>
    %c13 = arith.constant 13 : index
    %c0_95 = arith.constant 0 : index
    %c0_96 = arith.constant 0 : index
    %99 = vector.load %arg5[%c13, %c0_95, %c0_96] : memref<18x4x4xf32, #tpu.memory_space<vmem>>, vector<1x4x4xf32>
    %100 = vector.shape_cast %99 : vector<1x4x4xf32> to vector<4x4xf32>
    %cst_97 = arith.constant dense<0.000000e+00> : vector<4x100xf32>
    %101 = tpu.matmul %100, %98, %cst_97 {dimension_numbers = #tpu.dot_dimension_numbers<[1], [0], [0], [1], [0, 0, 1, 1], [], []>} : vector<4x4xf32>, vector<4x100xf32>, vector<4x100xf32> -> vector<4x100xf32>
    %102 = arith.addf %97, %101 : vector<4x100xf32>
    %c0_98 = arith.constant 0 : index
    %c12_99 = arith.constant 12 : index
    %103 = vector.load %arg9[%c0_98, %c12_99] : memref<4x122xf32, #tpu.memory_space<vmem>>, vector<4x100xf32>
    %c14 = arith.constant 14 : index
    %c0_100 = arith.constant 0 : index
    %c0_101 = arith.constant 0 : index
    %104 = vector.load %arg5[%c14, %c0_100, %c0_101] : memref<18x4x4xf32, #tpu.memory_space<vmem>>, vector<1x4x4xf32>
    %105 = vector.shape_cast %104 : vector<1x4x4xf32> to vector<4x4xf32>
    %cst_102 = arith.constant dense<0.000000e+00> : vector<4x100xf32>
    %106 = tpu.matmul %105, %103, %cst_102 {dimension_numbers = #tpu.dot_dimension_numbers<[1], [0], [0], [1], [0, 0, 1, 1], [], []>} : vector<4x4xf32>, vector<4x100xf32>, vector<4x100xf32> -> vector<4x100xf32>
    %107 = arith.addf %102, %106 : vector<4x100xf32>
    %c0_103 = arith.constant 0 : index
    %c20_104 = arith.constant 20 : index
    %108 = vector.load %arg9[%c0_103, %c20_104] : memref<4x122xf32, #tpu.memory_space<vmem>>, vector<4x100xf32>
    %c15 = arith.constant 15 : index
    %c0_105 = arith.constant 0 : index
    %c0_106 = arith.constant 0 : index
    %109 = vector.load %arg5[%c15, %c0_105, %c0_106] : memref<18x4x4xf32, #tpu.memory_space<vmem>>, vector<1x4x4xf32>
    %110 = vector.shape_cast %109 : vector<1x4x4xf32> to vector<4x4xf32>
    %cst_107 = arith.constant dense<0.000000e+00> : vector<4x100xf32>
    %111 = tpu.matmul %110, %108, %cst_107 {dimension_numbers = #tpu.dot_dimension_numbers<[1], [0], [0], [1], [0, 0, 1, 1], [], []>} : vector<4x4xf32>, vector<4x100xf32>, vector<4x100xf32> -> vector<4x100xf32>
    %112 = arith.addf %107, %111 : vector<4x100xf32>
    %c0_108 = arith.constant 0 : index
    %c21_109 = arith.constant 21 : index
    %113 = vector.load %arg9[%c0_108, %c21_109] : memref<4x122xf32, #tpu.memory_space<vmem>>, vector<4x100xf32>
    %c16 = arith.constant 16 : index
    %c0_110 = arith.constant 0 : index
    %c0_111 = arith.constant 0 : index
    %114 = vector.load %arg5[%c16, %c0_110, %c0_111] : memref<18x4x4xf32, #tpu.memory_space<vmem>>, vector<1x4x4xf32>
    %115 = vector.shape_cast %114 : vector<1x4x4xf32> to vector<4x4xf32>
    %cst_112 = arith.constant dense<0.000000e+00> : vector<4x100xf32>
    %116 = tpu.matmul %115, %113, %cst_112 {dimension_numbers = #tpu.dot_dimension_numbers<[1], [0], [0], [1], [0, 0, 1, 1], [], []>} : vector<4x4xf32>, vector<4x100xf32>, vector<4x100xf32> -> vector<4x100xf32>
    %117 = arith.addf %112, %116 : vector<4x100xf32>
    %c0_113 = arith.constant 0 : index
    %c22_114 = arith.constant 22 : index
    %118 = vector.load %arg9[%c0_113, %c22_114] : memref<4x122xf32, #tpu.memory_space<vmem>>, vector<4x100xf32>
    %c17 = arith.constant 17 : index
    %c0_115 = arith.constant 0 : index
    %c0_116 = arith.constant 0 : index
    %119 = vector.load %arg5[%c17, %c0_115, %c0_116] : memref<18x4x4xf32, #tpu.memory_space<vmem>>, vector<1x4x4xf32>
    %120 = vector.shape_cast %119 : vector<1x4x4xf32> to vector<4x4xf32>
    %cst_117 = arith.constant dense<0.000000e+00> : vector<4x100xf32>
    %121 = tpu.matmul %120, %118, %cst_117 {dimension_numbers = #tpu.dot_dimension_numbers<[1], [0], [0], [1], [0, 0, 1, 1], [], []>} : vector<4x4xf32>, vector<4x100xf32>, vector<4x100xf32> -> vector<4x100xf32>
    %122 = arith.addf %117, %121 : vector<4x100xf32>
    %c1_118 = arith.constant 1 : index
    %c0_119 = arith.constant 0 : index
    %c0_120 = arith.constant 0 : index
    %123 = vector.load %arg6[%c1_118, %c0_119, %c0_120] : memref<2x4x1xf32, #tpu.memory_space<vmem>>, vector<1x4x1xf32>
    %124 = vector.shape_cast %123 : vector<1x4x1xf32> to vector<4x1xf32>
    %125 = vector.broadcast %124 : vector<4x1xf32> to vector<4x100xf32>
    %126 = arith.addf %122, %125 : vector<4x100xf32>
    %cst_121 = arith.constant 2.000000e-01 : f32
    %127 = vector.broadcast %cst_121 : f32 to vector<4x100xf32>
    %128 = arith.mulf %127, %126 : vector<4x100xf32>
    %129 = arith.maximumf %126, %128 : vector<4x100xf32>
    %c0_122 = arith.constant 0 : index
    %c0_123 = arith.constant 0 : index
    %c0_124 = arith.constant 0 : index
    %130 = vector.load %arg8[%c0_122, %c0_123, %c0_124] : memref<1x4x100xf32, #tpu.memory_space<vmem>>, vector<1x4x100xf32>
    %131 = vector.shape_cast %130 : vector<1x4x100xf32> to vector<4x100xf32>
    %132 = vector.shape_cast %129 : vector<4x100xf32> to vector<1x4x100xf32>
    tpu.vector_store %arg8[%c0_122, %c0_123, %c0_124], %132 {strides = array<i32>} : memref<1x4x100xf32, #tpu.memory_space<vmem>>, vector<1x4x100xf32>,
    return
  }
  func.func @transform_0(%arg0: i32) -> (i32, i32, i32) {
    %c0_i32 = arith.constant 0 : i32
    %c0_i32_0 = arith.constant 0 : i32
    %c0_i32_1 = arith.constant 0 : i32
    return %arg0, %c0_i32, %c0_i32_0 : i32, i32, i32
  }
  func.func @transform_1(%arg0: i32) -> (i32, i32, i32) {
    %c0_i32 = arith.constant 0 : i32
    %c0_i32_0 = arith.constant 0 : i32
    %c0_i32_1 = arith.constant 0 : i32
    return %arg0, %c0_i32, %c0_i32_0 : i32, i32, i32
  }
  func.func @transform_2(%arg0: i32) -> (i32, i32, i32) {
    %c0_i32 = arith.constant 0 : i32
    %c0_i32_0 = arith.constant 0 : i32
    %c0_i32_1 = arith.constant 0 : i32
    %c0_i32_2 = arith.constant 0 : i32
    return %c0_i32, %c0_i32_0, %c0_i32_1 : i32, i32, i32
  }
  func.func @transform_3(%arg0: i32) -> (i32, i32) {
    %c0_i32 = arith.constant 0 : i32
    %c0_i32_0 = arith.constant 0 : i32
    %c0_i32_1 = arith.constant 0 : i32
    return %c0_i32, %c0_i32_0 : i32, i32
  }
  func.func @transform_4(%arg0: i32) -> (i32, i32, i32) {
    %c0_i32 = arith.constant 0 : i32
    %c0_i32_0 = arith.constant 0 : i32
    %c0_i32_1 = arith.constant 0 : i32
    %c0_i32_2 = arith.constant 0 : i32
    return %c0_i32, %c0_i32_0, %c0_i32_1 : i32, i32, i32
  }
  func.func @transform_5(%arg0: i32) -> (i32, i32, i32) {
    %c0_i32 = arith.constant 0 : i32
    %c0_i32_0 = arith.constant 0 : i32
    %c0_i32_1 = arith.constant 0 : i32
    %c0_i32_2 = arith.constant 0 : i32
    return %c0_i32, %c0_i32_0, %c0_i32_1 : i32, i32, i32
  }
  func.func @transform_6(%arg0: i32) -> (i32, i32) {
    %c0_i32 = arith.constant 0 : i32
    %c0_i32_0 = arith.constant 0 : i32
    %c0_i32_1 = arith.constant 0 : i32
    return %c0_i32, %c0_i32_0 : i32, i32
  }
  func.func @transform_7(%arg0: i32) -> (i32, i32, i32) {
    %c0_i32 = arith.constant 0 : i32
    %c0_i32_0 = arith.constant 0 : i32
    %c0_i32_1 = arith.constant 0 : i32
    return %arg0, %c0_i32, %c0_i32_0 : i32, i32, i32
  }
}

module attributes {stable_mosaic.version = 11 : i64} {
  func.func @kernel(%arg0: i32, %arg1: memref<1x4x324xf32, #tpu.memory_space<vmem>>, %arg2: memref<1x4x324xf32, #tpu.memory_space<vmem>>, %arg3: memref<2x4x4xf32, #tpu.memory_space<vmem>>, %arg4: memref<4x1xf32, #tpu.memory_space<vmem>>, %arg5: memref<18x4x4xf32, #tpu.memory_space<vmem>>, %arg6: memref<2x4x1xf32, #tpu.memory_space<vmem>>, %arg7: memref<1x324xf32, #tpu.memory_space<vmem>>, %arg8: memref<1x4x324xf32, #tpu.memory_space<vmem>>, %arg9: memref<4x362xf32, #tpu.memory_space<vmem>>) attributes {dimension_semantics = [#tpu.dimension_semantics<parallel>], iteration_bounds = array<i64: 2>, scalar_prefetch = 0 : i64, scratch_operands = 1 : i64, tpu.core_type = #tpu.core_type<tc>, window_params = [{transform_indices = @transform_0, window_bounds = array<i64: 1, 4, 324>}, {transform_indices = @transform_1, window_bounds = array<i64: 1, 4, 324>}, {pipeline_mode = #tpu.pipeline_mode<synchronous>, transform_indices = @transform_2, window_bounds = array<i64: 2, 4, 4>}, {pipeline_mode = #tpu.pipeline_mode<synchronous>, transform_indices = @transform_3, window_bounds = array<i64: 4, 1>}, {pipeline_mode = #tpu.pipeline_mode<synchronous>, transform_indices = @transform_4, window_bounds = array<i64: 18, 4, 4>}, {pipeline_mode = #tpu.pipeline_mode<synchronous>, transform_indices = @transform_5, window_bounds = array<i64: 2, 4, 1>}, {pipeline_mode = #tpu.pipeline_mode<synchronous>, transform_indices = @transform_6, window_bounds = array<i64: 1, 324>}, {transform_indices = @transform_7, window_bounds = array<i64: 1, 4, 324>}]} {
    %cst = arith.constant 0.000000e+00 : f32
    %0 = vector.broadcast %cst : f32 to vector<4x19xf32>
    %c0 = arith.constant 0 : index
    %c0_0 = arith.constant 0 : index
    %1 = vector.load %arg9[%c0, %c0_0] : memref<4x362xf32, #tpu.memory_space<vmem>>, vector<4x19xf32>
    tpu.vector_store %arg9[%c0, %c0_0], %0 {strides = array<i32>} : memref<4x362xf32, #tpu.memory_space<vmem>>, vector<4x19xf32>,
    %cst_1 = arith.constant 0.000000e+00 : f32
    %2 = vector.broadcast %cst_1 : f32 to vector<4x19xf32>
    %c0_2 = arith.constant 0 : index
    %c343 = arith.constant 343 : index
    %3 = vector.load %arg9[%c0_2, %c343] : memref<4x362xf32, #tpu.memory_space<vmem>>, vector<4x19xf32>
    tpu.vector_store %arg9[%c0_2, %c343], %2 {strides = array<i32>} : memref<4x362xf32, #tpu.memory_space<vmem>>, vector<4x19xf32>,
    %c0_3 = arith.constant 0 : index
    %c0_4 = arith.constant 0 : index
    %4 = vector.load %arg7[%c0_3, %c0_4] : memref<1x324xf32, #tpu.memory_space<vmem>>, vector<1x324xf32>
    %c0_5 = arith.constant 0 : index
    %c0_6 = arith.constant 0 : index
    %c0_7 = arith.constant 0 : index
    %5 = vector.load %arg3[%c0_5, %c0_6, %c0_7] : memref<2x4x4xf32, #tpu.memory_space<vmem>>, vector<1x4x4xf32>
    %6 = vector.shape_cast %5 : vector<1x4x4xf32> to vector<4x4xf32>
    %c0_8 = arith.constant 0 : index
    %c0_9 = arith.constant 0 : index
    %c0_10 = arith.constant 0 : index
    %7 = vector.load %arg1[%c0_8, %c0_9, %c0_10] : memref<1x4x324xf32, #tpu.memory_space<vmem>>, vector<1x4x324xf32>
    %8 = vector.shape_cast %7 : vector<1x4x324xf32> to vector<4x324xf32>
    %cst_11 = arith.constant dense<0.000000e+00> : vector<4x324xf32>
    %9 = tpu.matmul %6, %8, %cst_11 {dimension_numbers = #tpu.dot_dimension_numbers<[1], [0], [0], [1], [0, 0, 1, 1], [], []>} : vector<4x4xf32>, vector<4x324xf32>, vector<4x324xf32> -> vector<4x324xf32>
    %c1 = arith.constant 1 : index
    %c0_12 = arith.constant 0 : index
    %c0_13 = arith.constant 0 : index
    %10 = vector.load %arg3[%c1, %c0_12, %c0_13] : memref<2x4x4xf32, #tpu.memory_space<vmem>>, vector<1x4x4xf32>
    %11 = vector.shape_cast %10 : vector<1x4x4xf32> to vector<4x4xf32>
    %c0_14 = arith.constant 0 : index
    %c0_15 = arith.constant 0 : index
    %c0_16 = arith.constant 0 : index
    %12 = vector.load %arg2[%c0_14, %c0_15, %c0_16] : memref<1x4x324xf32, #tpu.memory_space<vmem>>, vector<1x4x324xf32>
    %13 = vector.shape_cast %12 : vector<1x4x324xf32> to vector<4x324xf32>
    %cst_17 = arith.constant dense<0.000000e+00> : vector<4x324xf32>
    %14 = tpu.matmul %11, %13, %cst_17 {dimension_numbers = #tpu.dot_dimension_numbers<[1], [0], [0], [1], [0, 0, 1, 1], [], []>} : vector<4x4xf32>, vector<4x324xf32>, vector<4x324xf32> -> vector<4x324xf32>
    %15 = arith.addf %9, %14 : vector<4x324xf32>
    %c0_18 = arith.constant 0 : index
    %c0_19 = arith.constant 0 : index
    %16 = vector.load %arg4[%c0_18, %c0_19] : memref<4x1xf32, #tpu.memory_space<vmem>>, vector<4x1xf32>
    %17 = vector.broadcast %16 : vector<4x1xf32> to vector<4x324xf32>
    %18 = arith.addf %15, %17 : vector<4x324xf32>
    %cst_20 = arith.constant 2.000000e-01 : f32
    %19 = vector.broadcast %cst_20 : f32 to vector<4x324xf32>
    %20 = arith.mulf %19, %18 : vector<4x324xf32>
    %21 = arith.maximumf %18, %20 : vector<4x324xf32>
    %22 = vector.broadcast %4 : vector<1x324xf32> to vector<4x324xf32>
    %23 = arith.mulf %21, %22 : vector<4x324xf32>
    %c0_21 = arith.constant 0 : index
    %c19 = arith.constant 19 : index
    %24 = vector.load %arg9[%c0_21, %c19] : memref<4x362xf32, #tpu.memory_space<vmem>>, vector<4x324xf32>
    tpu.vector_store %arg9[%c0_21, %c19], %23 {strides = array<i32>} : memref<4x362xf32, #tpu.memory_space<vmem>>, vector<4x324xf32>,
    %c0_22 = arith.constant 0 : index
    %c0_23 = arith.constant 0 : index
    %25 = vector.load %arg9[%c0_22, %c0_23] : memref<4x362xf32, #tpu.memory_space<vmem>>, vector<4x324xf32>
    %c0_24 = arith.constant 0 : index
    %c0_25 = arith.constant 0 : index
    %c0_26 = arith.constant 0 : index
    %26 = vector.load %arg5[%c0_24, %c0_25, %c0_26] : memref<18x4x4xf32, #tpu.memory_space<vmem>>, vector<1x4x4xf32>
    %27 = vector.shape_cast %26 : vector<1x4x4xf32> to vector<4x4xf32>
    %cst_27 = arith.constant dense<0.000000e+00> : vector<4x324xf32>
    %28 = tpu.matmul %27, %25, %cst_27 {dimension_numbers = #tpu.dot_dimension_numbers<[1], [0], [0], [1], [0, 0, 1, 1], [], []>} : vector<4x4xf32>, vector<4x324xf32>, vector<4x324xf32> -> vector<4x324xf32>
    %c0_28 = arith.constant 0 : index
    %c1_29 = arith.constant 1 : index
    %29 = vector.load %arg9[%c0_28, %c1_29] : memref<4x362xf32, #tpu.memory_space<vmem>>, vector<4x324xf32>
    %c1_30 = arith.constant 1 : index
    %c0_31 = arith.constant 0 : index
    %c0_32 = arith.constant 0 : index
    %30 = vector.load %arg5[%c1_30, %c0_31, %c0_32] : memref<18x4x4xf32, #tpu.memory_space<vmem>>, vector<1x4x4xf32>
    %31 = vector.shape_cast %30 : vector<1x4x4xf32> to vector<4x4xf32>
    %cst_33 = arith.constant dense<0.000000e+00> : vector<4x324xf32>
    %32 = tpu.matmul %31, %29, %cst_33 {dimension_numbers = #tpu.dot_dimension_numbers<[1], [0], [0], [1], [0, 0, 1, 1], [], []>} : vector<4x4xf32>, vector<4x324xf32>, vector<4x324xf32> -> vector<4x324xf32>
    %33 = arith.addf %28, %32 : vector<4x324xf32>
    %c0_34 = arith.constant 0 : index
    %c2 = arith.constant 2 : index
    %34 = vector.load %arg9[%c0_34, %c2] : memref<4x362xf32, #tpu.memory_space<vmem>>, vector<4x324xf32>
    %c2_35 = arith.constant 2 : index
    %c0_36 = arith.constant 0 : index
    %c0_37 = arith.constant 0 : index
    %35 = vector.load %arg5[%c2_35, %c0_36, %c0_37] : memref<18x4x4xf32, #tpu.memory_space<vmem>>, vector<1x4x4xf32>
    %36 = vector.shape_cast %35 : vector<1x4x4xf32> to vector<4x4xf32>
    %cst_38 = arith.constant dense<0.000000e+00> : vector<4x324xf32>
    %37 = tpu.matmul %36, %34, %cst_38 {dimension_numbers = #tpu.dot_dimension_numbers<[1], [0], [0], [1], [0, 0, 1, 1], [], []>} : vector<4x4xf32>, vector<4x324xf32>, vector<4x324xf32> -> vector<4x324xf32>
    %38 = arith.addf %33, %37 : vector<4x324xf32>
    %c0_39 = arith.constant 0 : index
    %c18 = arith.constant 18 : index
    %39 = vector.load %arg9[%c0_39, %c18] : memref<4x362xf32, #tpu.memory_space<vmem>>, vector<4x324xf32>
    %c3 = arith.constant 3 : index
    %c0_40 = arith.constant 0 : index
    %c0_41 = arith.constant 0 : index
    %40 = vector.load %arg5[%c3, %c0_40, %c0_41] : memref<18x4x4xf32, #tpu.memory_space<vmem>>, vector<1x4x4xf32>
    %41 = vector.shape_cast %40 : vector<1x4x4xf32> to vector<4x4xf32>
    %cst_42 = arith.constant dense<0.000000e+00> : vector<4x324xf32>
    %42 = tpu.matmul %41, %39, %cst_42 {dimension_numbers = #tpu.dot_dimension_numbers<[1], [0], [0], [1], [0, 0, 1, 1], [], []>} : vector<4x4xf32>, vector<4x324xf32>, vector<4x324xf32> -> vector<4x324xf32>
    %43 = arith.addf %38, %42 : vector<4x324xf32>
    %c0_43 = arith.constant 0 : index
    %c19_44 = arith.constant 19 : index
    %44 = vector.load %arg9[%c0_43, %c19_44] : memref<4x362xf32, #tpu.memory_space<vmem>>, vector<4x324xf32>
    %c4 = arith.constant 4 : index
    %c0_45 = arith.constant 0 : index
    %c0_46 = arith.constant 0 : index
    %45 = vector.load %arg5[%c4, %c0_45, %c0_46] : memref<18x4x4xf32, #tpu.memory_space<vmem>>, vector<1x4x4xf32>
    %46 = vector.shape_cast %45 : vector<1x4x4xf32> to vector<4x4xf32>
    %cst_47 = arith.constant dense<0.000000e+00> : vector<4x324xf32>
    %47 = tpu.matmul %46, %44, %cst_47 {dimension_numbers = #tpu.dot_dimension_numbers<[1], [0], [0], [1], [0, 0, 1, 1], [], []>} : vector<4x4xf32>, vector<4x324xf32>, vector<4x324xf32> -> vector<4x324xf32>
    %48 = arith.addf %43, %47 : vector<4x324xf32>
    %c0_48 = arith.constant 0 : index
    %c20 = arith.constant 20 : index
    %49 = vector.load %arg9[%c0_48, %c20] : memref<4x362xf32, #tpu.memory_space<vmem>>, vector<4x324xf32>
    %c5 = arith.constant 5 : index
    %c0_49 = arith.constant 0 : index
    %c0_50 = arith.constant 0 : index
    %50 = vector.load %arg5[%c5, %c0_49, %c0_50] : memref<18x4x4xf32, #tpu.memory_space<vmem>>, vector<1x4x4xf32>
    %51 = vector.shape_cast %50 : vector<1x4x4xf32> to vector<4x4xf32>
    %cst_51 = arith.constant dense<0.000000e+00> : vector<4x324xf32>
    %52 = tpu.matmul %51, %49, %cst_51 {dimension_numbers = #tpu.dot_dimension_numbers<[1], [0], [0], [1], [0, 0, 1, 1], [], []>} : vector<4x4xf32>, vector<4x324xf32>, vector<4x324xf32> -> vector<4x324xf32>
    %53 = arith.addf %48, %52 : vector<4x324xf32>
    %c0_52 = arith.constant 0 : index
    %c36 = arith.constant 36 : index
    %54 = vector.load %arg9[%c0_52, %c36] : memref<4x362xf32, #tpu.memory_space<vmem>>, vector<4x324xf32>
    %c6 = arith.constant 6 : index
    %c0_53 = arith.constant 0 : index
    %c0_54 = arith.constant 0 : index
    %55 = vector.load %arg5[%c6, %c0_53, %c0_54] : memref<18x4x4xf32, #tpu.memory_space<vmem>>, vector<1x4x4xf32>
    %56 = vector.shape_cast %55 : vector<1x4x4xf32> to vector<4x4xf32>
    %cst_55 = arith.constant dense<0.000000e+00> : vector<4x324xf32>
    %57 = tpu.matmul %56, %54, %cst_55 {dimension_numbers = #tpu.dot_dimension_numbers<[1], [0], [0], [1], [0, 0, 1, 1], [], []>} : vector<4x4xf32>, vector<4x324xf32>, vector<4x324xf32> -> vector<4x324xf32>
    %58 = arith.addf %53, %57 : vector<4x324xf32>
    %c0_56 = arith.constant 0 : index
    %c37 = arith.constant 37 : index
    %59 = vector.load %arg9[%c0_56, %c37] : memref<4x362xf32, #tpu.memory_space<vmem>>, vector<4x324xf32>
    %c7 = arith.constant 7 : index
    %c0_57 = arith.constant 0 : index
    %c0_58 = arith.constant 0 : index
    %60 = vector.load %arg5[%c7, %c0_57, %c0_58] : memref<18x4x4xf32, #tpu.memory_space<vmem>>, vector<1x4x4xf32>
    %61 = vector.shape_cast %60 : vector<1x4x4xf32> to vector<4x4xf32>
    %cst_59 = arith.constant dense<0.000000e+00> : vector<4x324xf32>
    %62 = tpu.matmul %61, %59, %cst_59 {dimension_numbers = #tpu.dot_dimension_numbers<[1], [0], [0], [1], [0, 0, 1, 1], [], []>} : vector<4x4xf32>, vector<4x324xf32>, vector<4x324xf32> -> vector<4x324xf32>
    %63 = arith.addf %58, %62 : vector<4x324xf32>
    %c0_60 = arith.constant 0 : index
    %c38 = arith.constant 38 : index
    %64 = vector.load %arg9[%c0_60, %c38] : memref<4x362xf32, #tpu.memory_space<vmem>>, vector<4x324xf32>
    %c8 = arith.constant 8 : index
    %c0_61 = arith.constant 0 : index
    %c0_62 = arith.constant 0 : index
    %65 = vector.load %arg5[%c8, %c0_61, %c0_62] : memref<18x4x4xf32, #tpu.memory_space<vmem>>, vector<1x4x4xf32>
    %66 = vector.shape_cast %65 : vector<1x4x4xf32> to vector<4x4xf32>
    %cst_63 = arith.constant dense<0.000000e+00> : vector<4x324xf32>
    %67 = tpu.matmul %66, %64, %cst_63 {dimension_numbers = #tpu.dot_dimension_numbers<[1], [0], [0], [1], [0, 0, 1, 1], [], []>} : vector<4x4xf32>, vector<4x324xf32>, vector<4x324xf32> -> vector<4x324xf32>
    %68 = arith.addf %63, %67 : vector<4x324xf32>
    %c0_64 = arith.constant 0 : index
    %c0_65 = arith.constant 0 : index
    %c0_66 = arith.constant 0 : index
    %69 = vector.load %arg6[%c0_64, %c0_65, %c0_66] : memref<2x4x1xf32, #tpu.memory_space<vmem>>, vector<1x4x1xf32>
    %70 = vector.shape_cast %69 : vector<1x4x1xf32> to vector<4x1xf32>
    %71 = vector.broadcast %70 : vector<4x1xf32> to vector<4x324xf32>
    %72 = arith.addf %68, %71 : vector<4x324xf32>
    %cst_67 = arith.constant 2.000000e-01 : f32
    %73 = vector.broadcast %cst_67 : f32 to vector<4x324xf32>
    %74 = arith.mulf %73, %72 : vector<4x324xf32>
    %75 = arith.maximumf %72, %74 : vector<4x324xf32>
    %76 = vector.broadcast %4 : vector<1x324xf32> to vector<4x324xf32>
    %77 = arith.mulf %75, %76 : vector<4x324xf32>
    %c0_68 = arith.constant 0 : index
    %c19_69 = arith.constant 19 : index
    %78 = vector.load %arg9[%c0_68, %c19_69] : memref<4x362xf32, #tpu.memory_space<vmem>>, vector<4x324xf32>
    tpu.vector_store %arg9[%c0_68, %c19_69], %77 {strides = array<i32>} : memref<4x362xf32, #tpu.memory_space<vmem>>, vector<4x324xf32>,
    %c0_70 = arith.constant 0 : index
    %c0_71 = arith.constant 0 : index
    %79 = vector.load %arg9[%c0_70, %c0_71] : memref<4x362xf32, #tpu.memory_space<vmem>>, vector<4x324xf32>
    %c9 = arith.constant 9 : index
    %c0_72 = arith.constant 0 : index
    %c0_73 = arith.constant 0 : index
    %80 = vector.load %arg5[%c9, %c0_72, %c0_73] : memref<18x4x4xf32, #tpu.memory_space<vmem>>, vector<1x4x4xf32>
    %81 = vector.shape_cast %80 : vector<1x4x4xf32> to vector<4x4xf32>
    %cst_74 = arith.constant dense<0.000000e+00> : vector<4x324xf32>
    %82 = tpu.matmul %81, %79, %cst_74 {dimension_numbers = #tpu.dot_dimension_numbers<[1], [0], [0], [1], [0, 0, 1, 1], [], []>} : vector<4x4xf32>, vector<4x324xf32>, vector<4x324xf32> -> vector<4x324xf32>
    %c0_75 = arith.constant 0 : index
    %c1_76 = arith.constant 1 : index
    %83 = vector.load %arg9[%c0_75, %c1_76] : memref<4x362xf32, #tpu.memory_space<vmem>>, vector<4x324xf32>
    %c10 = arith.constant 10 : index
    %c0_77 = arith.constant 0 : index
    %c0_78 = arith.constant 0 : index
    %84 = vector.load %arg5[%c10, %c0_77, %c0_78] : memref<18x4x4xf32, #tpu.memory_space<vmem>>, vector<1x4x4xf32>
    %85 = vector.shape_cast %84 : vector<1x4x4xf32> to vector<4x4xf32>
    %cst_79 = arith.constant dense<0.000000e+00> : vector<4x324xf32>
    %86 = tpu.matmul %85, %83, %cst_79 {dimension_numbers = #tpu.dot_dimension_numbers<[1], [0], [0], [1], [0, 0, 1, 1], [], []>} : vector<4x4xf32>, vector<4x324xf32>, vector<4x324xf32> -> vector<4x324xf32>
    %87 = arith.addf %82, %86 : vector<4x324xf32>
    %c0_80 = arith.constant 0 : index
    %c2_81 = arith.constant 2 : index
    %88 = vector.load %arg9[%c0_80, %c2_81] : memref<4x362xf32, #tpu.memory_space<vmem>>, vector<4x324xf32>
    %c11 = arith.constant 11 : index
    %c0_82 = arith.constant 0 : index
    %c0_83 = arith.constant 0 : index
    %89 = vector.load %arg5[%c11, %c0_82, %c0_83] : memref<18x4x4xf32, #tpu.memory_space<vmem>>, vector<1x4x4xf32>
    %90 = vector.shape_cast %89 : vector<1x4x4xf32> to vector<4x4xf32>
    %cst_84 = arith.constant dense<0.000000e+00> : vector<4x324xf32>
    %91 = tpu.matmul %90, %88, %cst_84 {dimension_numbers = #tpu.dot_dimension_numbers<[1], [0], [0], [1], [0, 0, 1, 1], [], []>} : vector<4x4xf32>, vector<4x324xf32>, vector<4x324xf32> -> vector<4x324xf32>
    %92 = arith.addf %87, %91 : vector<4x324xf32>
    %c0_85 = arith.constant 0 : index
    %c18_86 = arith.constant 18 : index
    %93 = vector.load %arg9[%c0_85, %c18_86] : memref<4x362xf32, #tpu.memory_space<vmem>>, vector<4x324xf32>
    %c12 = arith.constant 12 : index
    %c0_87 = arith.constant 0 : index
    %c0_88 = arith.constant 0 : index
    %94 = vector.load %arg5[%c12, %c0_87, %c0_88] : memref<18x4x4xf32, #tpu.memory_space<vmem>>, vector<1x4x4xf32>
    %95 = vector.shape_cast %94 : vector<1x4x4xf32> to vector<4x4xf32>
    %cst_89 = arith.constant dense<0.000000e+00> : vector<4x324xf32>
    %96 = tpu.matmul %95, %93, %cst_89 {dimension_numbers = #tpu.dot_dimension_numbers<[1], [0], [0], [1], [0, 0, 1, 1], [], []>} : vector<4x4xf32>, vector<4x324xf32>, vector<4x324xf32> -> vector<4x324xf32>
    %97 = arith.addf %92, %96 : vector<4x324xf32>
    %c0_90 = arith.constant 0 : index
    %c19_91 = arith.constant 19 : index
    %98 = vector.load %arg9[%c0_90, %c19_91] : memref<4x362xf32, #tpu.memory_space<vmem>>, vector<4x324xf32>
    %c13 = arith.constant 13 : index
    %c0_92 = arith.constant 0 : index
    %c0_93 = arith.constant 0 : index
    %99 = vector.load %arg5[%c13, %c0_92, %c0_93] : memref<18x4x4xf32, #tpu.memory_space<vmem>>, vector<1x4x4xf32>
    %100 = vector.shape_cast %99 : vector<1x4x4xf32> to vector<4x4xf32>
    %cst_94 = arith.constant dense<0.000000e+00> : vector<4x324xf32>
    %101 = tpu.matmul %100, %98, %cst_94 {dimension_numbers = #tpu.dot_dimension_numbers<[1], [0], [0], [1], [0, 0, 1, 1], [], []>} : vector<4x4xf32>, vector<4x324xf32>, vector<4x324xf32> -> vector<4x324xf32>
    %102 = arith.addf %97, %101 : vector<4x324xf32>
    %c0_95 = arith.constant 0 : index
    %c20_96 = arith.constant 20 : index
    %103 = vector.load %arg9[%c0_95, %c20_96] : memref<4x362xf32, #tpu.memory_space<vmem>>, vector<4x324xf32>
    %c14 = arith.constant 14 : index
    %c0_97 = arith.constant 0 : index
    %c0_98 = arith.constant 0 : index
    %104 = vector.load %arg5[%c14, %c0_97, %c0_98] : memref<18x4x4xf32, #tpu.memory_space<vmem>>, vector<1x4x4xf32>
    %105 = vector.shape_cast %104 : vector<1x4x4xf32> to vector<4x4xf32>
    %cst_99 = arith.constant dense<0.000000e+00> : vector<4x324xf32>
    %106 = tpu.matmul %105, %103, %cst_99 {dimension_numbers = #tpu.dot_dimension_numbers<[1], [0], [0], [1], [0, 0, 1, 1], [], []>} : vector<4x4xf32>, vector<4x324xf32>, vector<4x324xf32> -> vector<4x324xf32>
    %107 = arith.addf %102, %106 : vector<4x324xf32>
    %c0_100 = arith.constant 0 : index
    %c36_101 = arith.constant 36 : index
    %108 = vector.load %arg9[%c0_100, %c36_101] : memref<4x362xf32, #tpu.memory_space<vmem>>, vector<4x324xf32>
    %c15 = arith.constant 15 : index
    %c0_102 = arith.constant 0 : index
    %c0_103 = arith.constant 0 : index
    %109 = vector.load %arg5[%c15, %c0_102, %c0_103] : memref<18x4x4xf32, #tpu.memory_space<vmem>>, vector<1x4x4xf32>
    %110 = vector.shape_cast %109 : vector<1x4x4xf32> to vector<4x4xf32>
    %cst_104 = arith.constant dense<0.000000e+00> : vector<4x324xf32>
    %111 = tpu.matmul %110, %108, %cst_104 {dimension_numbers = #tpu.dot_dimension_numbers<[1], [0], [0], [1], [0, 0, 1, 1], [], []>} : vector<4x4xf32>, vector<4x324xf32>, vector<4x324xf32> -> vector<4x324xf32>
    %112 = arith.addf %107, %111 : vector<4x324xf32>
    %c0_105 = arith.constant 0 : index
    %c37_106 = arith.constant 37 : index
    %113 = vector.load %arg9[%c0_105, %c37_106] : memref<4x362xf32, #tpu.memory_space<vmem>>, vector<4x324xf32>
    %c16 = arith.constant 16 : index
    %c0_107 = arith.constant 0 : index
    %c0_108 = arith.constant 0 : index
    %114 = vector.load %arg5[%c16, %c0_107, %c0_108] : memref<18x4x4xf32, #tpu.memory_space<vmem>>, vector<1x4x4xf32>
    %115 = vector.shape_cast %114 : vector<1x4x4xf32> to vector<4x4xf32>
    %cst_109 = arith.constant dense<0.000000e+00> : vector<4x324xf32>
    %116 = tpu.matmul %115, %113, %cst_109 {dimension_numbers = #tpu.dot_dimension_numbers<[1], [0], [0], [1], [0, 0, 1, 1], [], []>} : vector<4x4xf32>, vector<4x324xf32>, vector<4x324xf32> -> vector<4x324xf32>
    %117 = arith.addf %112, %116 : vector<4x324xf32>
    %c0_110 = arith.constant 0 : index
    %c38_111 = arith.constant 38 : index
    %118 = vector.load %arg9[%c0_110, %c38_111] : memref<4x362xf32, #tpu.memory_space<vmem>>, vector<4x324xf32>
    %c17 = arith.constant 17 : index
    %c0_112 = arith.constant 0 : index
    %c0_113 = arith.constant 0 : index
    %119 = vector.load %arg5[%c17, %c0_112, %c0_113] : memref<18x4x4xf32, #tpu.memory_space<vmem>>, vector<1x4x4xf32>
    %120 = vector.shape_cast %119 : vector<1x4x4xf32> to vector<4x4xf32>
    %cst_114 = arith.constant dense<0.000000e+00> : vector<4x324xf32>
    %121 = tpu.matmul %120, %118, %cst_114 {dimension_numbers = #tpu.dot_dimension_numbers<[1], [0], [0], [1], [0, 0, 1, 1], [], []>} : vector<4x4xf32>, vector<4x324xf32>, vector<4x324xf32> -> vector<4x324xf32>
    %122 = arith.addf %117, %121 : vector<4x324xf32>
    %c1_115 = arith.constant 1 : index
    %c0_116 = arith.constant 0 : index
    %c0_117 = arith.constant 0 : index
    %123 = vector.load %arg6[%c1_115, %c0_116, %c0_117] : memref<2x4x1xf32, #tpu.memory_space<vmem>>, vector<1x4x1xf32>
    %124 = vector.shape_cast %123 : vector<1x4x1xf32> to vector<4x1xf32>
    %125 = vector.broadcast %124 : vector<4x1xf32> to vector<4x324xf32>
    %126 = arith.addf %122, %125 : vector<4x324xf32>
    %cst_118 = arith.constant 2.000000e-01 : f32
    %127 = vector.broadcast %cst_118 : f32 to vector<4x324xf32>
    %128 = arith.mulf %127, %126 : vector<4x324xf32>
    %129 = arith.maximumf %126, %128 : vector<4x324xf32>
    %c0_119 = arith.constant 0 : index
    %c0_120 = arith.constant 0 : index
    %c0_121 = arith.constant 0 : index
    %130 = vector.load %arg8[%c0_119, %c0_120, %c0_121] : memref<1x4x324xf32, #tpu.memory_space<vmem>>, vector<1x4x324xf32>
    %131 = vector.shape_cast %130 : vector<1x4x324xf32> to vector<4x324xf32>
    %132 = vector.shape_cast %129 : vector<4x324xf32> to vector<1x4x324xf32>
    tpu.vector_store %arg8[%c0_119, %c0_120, %c0_121], %132 {strides = array<i32>} : memref<1x4x324xf32, #tpu.memory_space<vmem>>, vector<1x4x324xf32>,
    return
  }
  func.func @transform_0(%arg0: i32) -> (i32, i32, i32) {
    %c0_i32 = arith.constant 0 : i32
    %c0_i32_0 = arith.constant 0 : i32
    %c0_i32_1 = arith.constant 0 : i32
    return %arg0, %c0_i32, %c0_i32_0 : i32, i32, i32
  }
  func.func @transform_1(%arg0: i32) -> (i32, i32, i32) {
    %c0_i32 = arith.constant 0 : i32
    %c0_i32_0 = arith.constant 0 : i32
    %c0_i32_1 = arith.constant 0 : i32
    return %arg0, %c0_i32, %c0_i32_0 : i32, i32, i32
  }
  func.func @transform_2(%arg0: i32) -> (i32, i32, i32) {
    %c0_i32 = arith.constant 0 : i32
    %c0_i32_0 = arith.constant 0 : i32
    %c0_i32_1 = arith.constant 0 : i32
    %c0_i32_2 = arith.constant 0 : i32
    return %c0_i32, %c0_i32_0, %c0_i32_1 : i32, i32, i32
  }
  func.func @transform_3(%arg0: i32) -> (i32, i32) {
    %c0_i32 = arith.constant 0 : i32
    %c0_i32_0 = arith.constant 0 : i32
    %c0_i32_1 = arith.constant 0 : i32
    return %c0_i32, %c0_i32_0 : i32, i32
  }
  func.func @transform_4(%arg0: i32) -> (i32, i32, i32) {
    %c0_i32 = arith.constant 0 : i32
    %c0_i32_0 = arith.constant 0 : i32
    %c0_i32_1 = arith.constant 0 : i32
    %c0_i32_2 = arith.constant 0 : i32
    return %c0_i32, %c0_i32_0, %c0_i32_1 : i32, i32, i32
  }
  func.func @transform_5(%arg0: i32) -> (i32, i32, i32) {
    %c0_i32 = arith.constant 0 : i32
    %c0_i32_0 = arith.constant 0 : i32
    %c0_i32_1 = arith.constant 0 : i32
    %c0_i32_2 = arith.constant 0 : i32
    return %c0_i32, %c0_i32_0, %c0_i32_1 : i32, i32, i32
  }
  func.func @transform_6(%arg0: i32) -> (i32, i32) {
    %c0_i32 = arith.constant 0 : i32
    %c0_i32_0 = arith.constant 0 : i32
    %c0_i32_1 = arith.constant 0 : i32
    return %c0_i32, %c0_i32_0 : i32, i32
  }
  func.func @transform_7(%arg0: i32) -> (i32, i32, i32) {
    %c0_i32 = arith.constant 0 : i32
    %c0_i32_0 = arith.constant 0 : i32
    %c0_i32_1 = arith.constant 0 : i32
    return %arg0, %c0_i32, %c0_i32_0 : i32, i32, i32
  }
}

module attributes {stable_mosaic.version = 11 : i64} {
  func.func @kernel(%arg0: i32, %arg1: i32, %arg2: memref<1x4x256xf32, #tpu.memory_space<vmem>>, %arg3: memref<1x4x256xf32, #tpu.memory_space<vmem>>, %arg4: memref<1x4x256xf32, #tpu.memory_space<vmem>>, %arg5: memref<1x4x256xf32, #tpu.memory_space<vmem>>, %arg6: memref<3x4x4xf32, #tpu.memory_space<vmem>>, %arg7: memref<4x1xf32, #tpu.memory_space<vmem>>, %arg8: memref<1x4x256xf32, #tpu.memory_space<vmem>>) attributes {dimension_semantics = [#tpu.dimension_semantics<parallel>, #tpu.dimension_semantics<parallel>], iteration_bounds = array<i64: 2, 1>, scalar_prefetch = 0 : i64, scratch_operands = 0 : i64, tpu.core_type = #tpu.core_type<tc>, window_params = [{transform_indices = @transform_0, window_bounds = array<i64: 1, 4, 256>}, {transform_indices = @transform_1, window_bounds = array<i64: 1, 4, 256>}, {transform_indices = @transform_2, window_bounds = array<i64: 1, 4, 256>}, {transform_indices = @transform_3, window_bounds = array<i64: 1, 4, 256>}, {pipeline_mode = #tpu.pipeline_mode<synchronous>, transform_indices = @transform_4, window_bounds = array<i64: 3, 4, 4>}, {pipeline_mode = #tpu.pipeline_mode<synchronous>, transform_indices = @transform_5, window_bounds = array<i64: 4, 1>}, {transform_indices = @transform_6, window_bounds = array<i64: 1, 4, 256>}]} {
    %c0 = arith.constant 0 : index
    %c0_0 = arith.constant 0 : index
    %c0_1 = arith.constant 0 : index
    %0 = vector.load %arg6[%c0, %c0_0, %c0_1] : memref<3x4x4xf32, #tpu.memory_space<vmem>>, vector<1x4x4xf32>
    %1 = vector.shape_cast %0 : vector<1x4x4xf32> to vector<4x4xf32>
    %c0_2 = arith.constant 0 : index
    %c0_3 = arith.constant 0 : index
    %c0_4 = arith.constant 0 : index
    %2 = vector.load %arg2[%c0_2, %c0_3, %c0_4] : memref<1x4x256xf32, #tpu.memory_space<vmem>>, vector<1x4x256xf32>
    %3 = vector.shape_cast %2 : vector<1x4x256xf32> to vector<4x256xf32>
    %cst = arith.constant dense<0.000000e+00> : vector<4x256xf32>
    %4 = tpu.matmul %1, %3, %cst {dimension_numbers = #tpu.dot_dimension_numbers<[1], [0], [0], [1], [0, 0, 1, 1], [], []>} : vector<4x4xf32>, vector<4x256xf32>, vector<4x256xf32> -> vector<4x256xf32>
    %c0_5 = arith.constant 0 : index
    %c0_6 = arith.constant 0 : index
    %5 = vector.load %arg7[%c0_5, %c0_6] : memref<4x1xf32, #tpu.memory_space<vmem>>, vector<4x1xf32>
    %6 = vector.broadcast %5 : vector<4x1xf32> to vector<4x256xf32>
    %7 = arith.addf %4, %6 : vector<4x256xf32>
    %c1 = arith.constant 1 : index
    %c0_7 = arith.constant 0 : index
    %c0_8 = arith.constant 0 : index
    %8 = vector.load %arg6[%c1, %c0_7, %c0_8] : memref<3x4x4xf32, #tpu.memory_space<vmem>>, vector<1x4x4xf32>
    %9 = vector.shape_cast %8 : vector<1x4x4xf32> to vector<4x4xf32>
    %c0_9 = arith.constant 0 : index
    %c0_10 = arith.constant 0 : index
    %c0_11 = arith.constant 0 : index
    %10 = vector.load %arg3[%c0_9, %c0_10, %c0_11] : memref<1x4x256xf32, #tpu.memory_space<vmem>>, vector<1x4x256xf32>
    %11 = vector.shape_cast %10 : vector<1x4x256xf32> to vector<4x256xf32>
    %cst_12 = arith.constant dense<0.000000e+00> : vector<4x256xf32>
    %12 = tpu.matmul %9, %11, %cst_12 {dimension_numbers = #tpu.dot_dimension_numbers<[1], [0], [0], [1], [0, 0, 1, 1], [], []>} : vector<4x4xf32>, vector<4x256xf32>, vector<4x256xf32> -> vector<4x256xf32>
    %13 = arith.addf %7, %12 : vector<4x256xf32>
    %c2 = arith.constant 2 : index
    %c0_13 = arith.constant 0 : index
    %c0_14 = arith.constant 0 : index
    %14 = vector.load %arg6[%c2, %c0_13, %c0_14] : memref<3x4x4xf32, #tpu.memory_space<vmem>>, vector<1x4x4xf32>
    %15 = vector.shape_cast %14 : vector<1x4x4xf32> to vector<4x4xf32>
    %c0_15 = arith.constant 0 : index
    %c0_16 = arith.constant 0 : index
    %c0_17 = arith.constant 0 : index
    %16 = vector.load %arg4[%c0_15, %c0_16, %c0_17] : memref<1x4x256xf32, #tpu.memory_space<vmem>>, vector<1x4x256xf32>
    %17 = vector.shape_cast %16 : vector<1x4x256xf32> to vector<4x256xf32>
    %cst_18 = arith.constant dense<0.000000e+00> : vector<4x256xf32>
    %18 = tpu.matmul %15, %17, %cst_18 {dimension_numbers = #tpu.dot_dimension_numbers<[1], [0], [0], [1], [0, 0, 1, 1], [], []>} : vector<4x4xf32>, vector<4x256xf32>, vector<4x256xf32> -> vector<4x256xf32>
    %19 = arith.addf %13, %18 : vector<4x256xf32>
    %cst_19 = arith.constant 2.000000e-01 : f32
    %20 = vector.broadcast %cst_19 : f32 to vector<4x256xf32>
    %21 = arith.mulf %20, %19 : vector<4x256xf32>
    %22 = arith.maximumf %19, %21 : vector<4x256xf32>
    %c0_20 = arith.constant 0 : index
    %c0_21 = arith.constant 0 : index
    %c0_22 = arith.constant 0 : index
    %23 = vector.load %arg5[%c0_20, %c0_21, %c0_22] : memref<1x4x256xf32, #tpu.memory_space<vmem>>, vector<1x4x256xf32>
    %24 = vector.shape_cast %23 : vector<1x4x256xf32> to vector<4x256xf32>
    %25 = arith.addf %22, %24 : vector<4x256xf32>
    %c0_23 = arith.constant 0 : index
    %c0_24 = arith.constant 0 : index
    %c0_25 = arith.constant 0 : index
    %26 = vector.load %arg8[%c0_23, %c0_24, %c0_25] : memref<1x4x256xf32, #tpu.memory_space<vmem>>, vector<1x4x256xf32>
    %27 = vector.shape_cast %26 : vector<1x4x256xf32> to vector<4x256xf32>
    %28 = vector.shape_cast %25 : vector<4x256xf32> to vector<1x4x256xf32>
    tpu.vector_store %arg8[%c0_23, %c0_24, %c0_25], %28 {strides = array<i32>} : memref<1x4x256xf32, #tpu.memory_space<vmem>>, vector<1x4x256xf32>,
    return
  }
  func.func @transform_0(%arg0: i32, %arg1: i32) -> (i32, i32, i32) {
    %c0_i32 = arith.constant 0 : i32
    %c0_i32_0 = arith.constant 0 : i32
    return %arg0, %c0_i32, %arg1 : i32, i32, i32
  }
  func.func @transform_1(%arg0: i32, %arg1: i32) -> (i32, i32, i32) {
    %c0_i32 = arith.constant 0 : i32
    %c0_i32_0 = arith.constant 0 : i32
    return %arg0, %c0_i32, %arg1 : i32, i32, i32
  }
  func.func @transform_2(%arg0: i32, %arg1: i32) -> (i32, i32, i32) {
    %c0_i32 = arith.constant 0 : i32
    %c0_i32_0 = arith.constant 0 : i32
    return %arg0, %c0_i32, %arg1 : i32, i32, i32
  }
  func.func @transform_3(%arg0: i32, %arg1: i32) -> (i32, i32, i32) {
    %c0_i32 = arith.constant 0 : i32
    %c0_i32_0 = arith.constant 0 : i32
    return %arg0, %c0_i32, %arg1 : i32, i32, i32
  }
  func.func @transform_4(%arg0: i32, %arg1: i32) -> (i32, i32, i32) {
    %c0_i32 = arith.constant 0 : i32
    %c0_i32_0 = arith.constant 0 : i32
    %c0_i32_1 = arith.constant 0 : i32
    %c0_i32_2 = arith.constant 0 : i32
    return %c0_i32, %c0_i32_0, %c0_i32_1 : i32, i32, i32
  }
  func.func @transform_5(%arg0: i32, %arg1: i32) -> (i32, i32) {
    %c0_i32 = arith.constant 0 : i32
    %c0_i32_0 = arith.constant 0 : i32
    %c0_i32_1 = arith.constant 0 : i32
    return %c0_i32, %c0_i32_0 : i32, i32
  }
  func.func @transform_6(%arg0: i32, %arg1: i32) -> (i32, i32, i32) {
    %c0_i32 = arith.constant 0 : i32
    %c0_i32_0 = arith.constant 0 : i32
    return %arg0, %c0_i32, %arg1 : i32, i32, i32
  }
}

</mosaic_0001>

<llo_original>
// kernel: _lambda_.4
$region0: #{_lambda_.4}
  #allocation0 [shape = 'u32[]', space=smem, size = 0x4, offset = 0x4, fixed_abs, tag = 'smem constant byte address 0x4 - core index']
  #allocation1 [shape = 'u32[72,128]{1,0:T(1,128)}', space=vmem, size = 0x9000, scoped, tag = 'internal scratch']
  #allocation2 [shape = 'f32[4,50]{1,0:T(4,128)}', space=vmem, size = 0x800, scoped, tag = 'scratch operand']
  %s0 = inlined_call_operand.vmem [shape: f32[2,4,36], index: 0, kind: input, shape index: {}]
  %s1 = inlined_call_operand.vmem [shape: f32[18,4,4], index: 1, kind: input, shape index: {}]
  %s2 = inlined_call_operand.vmem [shape: f32[2,4,1], index: 2, kind: input, shape index: {}]
  %s3 = inlined_call_operand.vmem [shape: f32[1,36], index: 3, kind: input, shape index: {}]
  %s4 = inlined_call_operand.vmem [shape: f32[2,4,36], index: 4, kind: output, shape index: {}]
  %s5 = sld [smem:[#allocation0]]
  $region49: #{_lambda_.4} parent=0
    _
  %s7 = ssub.s32 1, %s5
  %s8 = scalar_select 0, %s7, %s5
  loop: start=0, step=1, limit=4
  $region2: #{_lambda_.4} parent=0 // loop_pre_header
    _
  $region3: #{_lambda_.4} parent=0 // loop_header
    %s10 = sphi 0, %s14
    %p11 = scmp.ge.s32.totalorder %s10, 4
    %s20 = sphi 0, %s22
    %s23 = sphi 0, %s20
    %s24 = sphi 0, %s23
    %s40 = sphi 0, %s24
    %s44 = sphi 0, %s44
    %s46 = sphi 0, %s44
    %s47 = sphi 0, %s46
    %s61 = sphi 0, %s47
    %s65 = sphi 0, %s65
    %s67 = sphi 0, %s65
    %s68 = sphi 0, %s67
    %s82 = sphi 0, %s68
    %s86 = sphi 0, %s86
    %s88 = sphi 0, %s86
    %s89 = sphi 0, %s88
    %s103 = sphi 0, %s89
    %s109 = sphi 0, %s111
    %s112 = sphi 0, %s109
    %s113 = sphi 0, %s112
    %s129 = sphi 0, %s113
  $region4: #{_lambda_.4} parent=0 // loop_header_branch
    %13 = sbr.rel (%p11) target = $region8
  $region5: #{_lambda_.4} parent=0 // loop_body
    %s15 = ssub.s32 %s10, 1
    %s16 = ssub.s32 %s10, 2
    %s17 = sadd.s32 %s10, 1
    %s18 = ssub.s32 %s10, %s17
    %p19 = scmp.eq.s32.totalorder %s18, 0
    %s21 = sadd.s32 %s20, 1
    %s22 = scalar_select %p19, %s20, %s21
    %p25 = pneg %p19
    %p26 = scmp.eq.s32.totalorder %s10, 1
    %p27 = por %p25, %p26
    %p28 = scmp.ne.s32.totalorder %s20, %s23
    %p29 = scmp.eq.s32.totalorder %s10, 0
    %p30 = por %p28, %p29
    %p31 = scmp.ne.s32.totalorder %s20, %s23
    %p32 = scmp.eq.s32.totalorder %s15, 1
    %p33 = por %p31, %p32
    %p34 = scmp.ne.s32.totalorder %s23, %s24
    %p35 = scmp.eq.s32.totalorder %s15, 0
    %p36 = por %p34, %p35
    %p37 = scmp.ne.s32.totalorder %s23, %s24
    %p38 = scmp.eq.s32.totalorder %s16, 1
    %p39 = por %p37, %p38
    %p41 = scmp.ne.s32.totalorder %s24, %s40
    %p42 = scmp.eq.s32.totalorder %s16, 0
    %p43 = por %p41, %p42
    %s45 = sadd.s32 %s44, 1
    %p48 = scmp.eq.s32.totalorder %s10, 1
    %p49 = scmp.ne.s32.totalorder %s44, %s46
    %p50 = scmp.eq.s32.totalorder %s10, 0
    %p51 = por %p49, %p50
    %p52 = scmp.ne.s32.totalorder %s44, %s46
    %p53 = scmp.eq.s32.totalorder %s15, 1
    %p54 = por %p52, %p53
    %p55 = scmp.ne.s32.totalorder %s46, %s47
    %p56 = scmp.eq.s32.totalorder %s15, 0
    %p57 = por %p55, %p56
    %p58 = scmp.ne.s32.totalorder %s46, %s47
    %p59 = scmp.eq.s32.totalorder %s16, 1
    %p60 = por %p58, %p59
    %p62 = scmp.ne.s32.totalorder %s47, %s61
    %p63 = scmp.eq.s32.totalorder %s16, 0
    %p64 = por %p62, %p63
    %s66 = sadd.s32 %s65, 1
    %p69 = scmp.eq.s32.totalorder %s10, 1
    %p70 = scmp.ne.s32.totalorder %s65, %s67
    %p71 = scmp.eq.s32.totalorder %s10, 0
    %p72 = por %p70, %p71
    %p73 = scmp.ne.s32.totalorder %s65, %s67
    %p74 = scmp.eq.s32.totalorder %s15, 1
    %p75 = por %p73, %p74
    %p76 = scmp.ne.s32.totalorder %s67, %s68
    %p77 = scmp.eq.s32.totalorder %s15, 0
    %p78 = por %p76, %p77
    %p79 = scmp.ne.s32.totalorder %s67, %s68
    %p80 = scmp.eq.s32.totalorder %s16, 1
    %p81 = por %p79, %p80
    %p83 = scmp.ne.s32.totalorder %s68, %s82
    %p84 = scmp.eq.s32.totalorder %s16, 0
    %p85 = por %p83, %p84
    %s87 = sadd.s32 %s86, 1
    %p90 = scmp.eq.s32.totalorder %s10, 1
    %p91 = scmp.ne.s32.totalorder %s86, %s88
    %p92 = scmp.eq.s32.totalorder %s10, 0
    %p93 = por %p91, %p92
    %p94 = scmp.ne.s32.totalorder %s86, %s88
    %p95 = scmp.eq.s32.totalorder %s15, 1
    %p96 = por %p94, %p95
    %p97 = scmp.ne.s32.totalorder %s88, %s89
    %p98 = scmp.eq.s32.totalorder %s15, 0
    %p99 = por %p97, %p98
    %p100 = scmp.ne.s32.totalorder %s88, %s89
    %p101 = scmp.eq.s32.totalorder %s16, 1
    %p102 = por %p100, %p101
    %p104 = scmp.ne.s32.totalorder %s89, %s103
    %p105 = scmp.eq.s32.totalorder %s16, 0
    %p106 = por %p104, %p105
    %s107 = ssub.s32 %s10, %s17
    %p108 = scmp.eq.s32.totalorder %s107, 0
    %s110 = sadd.s32 %s109, 1
    %s111 = scalar_select %p108, %s109, %s110
    %p114 = pneg %p108
    %p115 = scmp.eq.s32.totalorder %s10, 1
    %p116 = por %p114, %p115
    %p117 = scmp.ne.s32.totalorder %s109, %s112
    %p118 = scmp.eq.s32.totalorder %s10, 0
    %p119 = por %p117, %p118
    %p120 = scmp.ne.s32.totalorder %s109, %s112
    %p121 = scmp.eq.s32.totalorder %s15, 1
    %p122 = por %p120, %p121
    %p123 = scmp.ne.s32.totalorder %s112, %s113
    %p124 = scmp.eq.s32.totalorder %s15, 0
    %p125 = por %p123, %p124
    %p126 = scmp.ne.s32.totalorder %s112, %s113
    %p127 = scmp.eq.s32.totalorder %s16, 1
    %p128 = por %p126, %p127
    %p130 = scmp.ne.s32.totalorder %s113, %s129
    %p131 = scmp.eq.s32.totalorder %s16, 0
    %p132 = por %p130, %p131
    %p133 = scmp.le.s32.totalorder 1, %s10
    %p134 = scmp.lt.s32.totalorder %s10, 3
    %p135 = pnand %p133, %p134
    %p136 = pneg %p135
    // Predicated region
    $region9: #{_lambda_.4} parent=5 // pred_check
      _
    $region10: #{_lambda_.4} parent=5 // pred_check_branch
      %138 = sbr.rel (%p135) target = $region12
    $region11: #{_lambda_.4} parent=5 // pred_region
      %s139 = ssub.s32 %s10, 1
      // Predicated region
      $region13: #{_lambda_.4} parent=11 // pred_check
        %p140 = pneg %p57
      $region14: #{_lambda_.4} parent=11 // pred_check_branch
        %142 = sbr.rel (%p140) target = $region16
      $region15: #{_lambda_.4} parent=11 // pred_region
        _
      $region16: #{_lambda_.4} parent=11 // pred_fallthru
        _
      // Predicated region
      $region17: #{_lambda_.4} parent=11 // pred_check
        %p143 = pneg %p78
      $region18: #{_lambda_.4} parent=11 // pred_check_branch
        %145 = sbr.rel (%p143) target = $region20
      $region19: #{_lambda_.4} parent=11 // pred_region
        _
      $region20: #{_lambda_.4} parent=11 // pred_fallthru
        _
      // Predicated region
      $region21: #{_lambda_.4} parent=11 // pred_check
        %p146 = pneg %p99
      $region22: #{_lambda_.4} parent=11 // pred_check_branch
        %148 = sbr.rel (%p146) target = $region24
      $region23: #{_lambda_.4} parent=11 // pred_region
        _
      $region24: #{_lambda_.4} parent=11 // pred_fallthru
        _
    $region12: #{_lambda_.4} parent=5 // pred_fallthru
      _
    %p149 = scmp.lt.s32.totalorder %s10, 2
    // Predicated region
    $region25: #{_lambda_.4} parent=5 // pred_check
      %p150 = pneg %p149
    $region26: #{_lambda_.4} parent=5 // pred_check_branch
      %152 = sbr.rel (%p150) target = $region28
    $region27: #{_lambda_.4} parent=5 // pred_region
      // Predicated region
      $region29: #{_lambda_.4} parent=27 // pred_check
        %p153 = pneg %p30
      $region30: #{_lambda_.4} parent=27 // pred_check_branch
        %155 = sbr.rel (%p153) target = $region32
      $region31: #{_lambda_.4} parent=27 // pred_region
        %p156 = scmp.lt.s32.totalorder %s10, 1
        %s157 = scalar_select %p156, %s10, 1
        %s158 = smul.addr %s157, 4
        %s159 = scalar_lea.vmem %s0, %s158
      $region32: #{_lambda_.4} parent=27 // pred_fallthru
        _
    $region28: #{_lambda_.4} parent=5 // pred_fallthru
      _
    %p160 = scmp.le.s32.totalorder 1, %s10
    %p161 = scmp.lt.s32.totalorder %s10, 3
    %p162 = pnand %p160, %p161
    %p163 = pneg %p162
    // Predicated region
    $region33: #{_lambda_.4} parent=5 // pred_check
      _
    $region34: #{_lambda_.4} parent=5 // pred_check_branch
      %165 = sbr.rel (%p162) target = $region36
    $region35: #{_lambda_.4} parent=5 // pred_region
      %s166 = ssub.s32 %s10, 1
      %p167 = scmp.lt.s32.totalorder %s15, 1
      %s168 = scalar_select %p167, %s15, 1
      %s169 = smul.addr %s168, 4
      %s170 = scalar_lea.vmem %s0, %s169
      %p171 = pneg %p36
      %p172 = pneg %p33
      %p173 = pneg %p57
      %p174 = pneg %p54
      %p175 = pneg %p78
      %p176 = pneg %p75
      %p177 = pneg %p99
      %p178 = pneg %p96
      %p179 = pneg %p125
      %p180 = pneg %p122
      %p181 = scmp.lt.s32.totalorder %s15, 1
      %s182 = scalar_select %p181, %s15, 1
      %s183 = smul.addr %s182, 4
      %s184 = scalar_lea.vmem %s4, %s183
      %p185 = scmp.lt.s32.totalorder %s15, 1
      %s186 = scalar_select %p185, %s15, 1
      %s187 = smul.addr %s186, 4
      %s188 = scalar_lea.vmem %s0, %s187
      %p189 = scmp.lt.s32.totalorder %s15, 1
      %s190 = scalar_select %p189, %s15, 1
      %s191 = smul.addr %s190, 4
      %s192 = scalar_lea.vmem %s4, %s191
      %vm193 = vcmask 52224
      %194 = vst.msk [vmem:[#allocation2] sm:$0xf] %vm193, 0.0
      %vm195 = vcmask 404824
      %196 = vst.msk [vmem:[#allocation2] sm:$0xf] %vm195, 0.0
      %v197 = vld [vmem:[%s3] sm:$0x1]
      %v198 = vld [vmem:[%s188] sm:$0xf]
      %200 = vrot.lane.b32.xlu0 %v198, 7
      %v201 = vpop.permute.xlu0 %200
      %vm203 = vcmask 347192
      %204 = vst.msk [vmem:[#allocation2] sm:$0xf] %vm203, %v201
      %v205 = vld [vmem:[#allocation2] sm:$0xf]
      %v206 = vld [vmem:[%s1] sm:$0xf]
      %s207 = scalar_lea.vmem %s1, 4
      %v208 = vld [vmem:[%s207] sm:$0xf]
      %210 = vrot.lane.b32.xlu0 %v205, 127
      %v211 = vpop.permute.xlu0 %210
      %vm212 = vcmask 31744
      %v214 = vsel %vm212, %v208, 0
      %vm216 = vcmask 1043456
      %v217 = vsel %vm216, %v211, 0
      %219 = vmatpush.msra.mxu0 0.0
      %220 = vmatpush.msra.mxu0 0.0
      %221 = vmatpush.msra.mxu0 0.0
      %222 = vmatpush.msra.mxu0 0.0
      %223 = vmatpush.msra.mxu0 0.0
      %224 = vmatpush.msra.mxu0 0.0
      %225 = vmatpush.msra.mxu0 0.0
      %226 = vmatpush.msra.mxu0 0.0
      %227 = vmatpush.msra.mxu0 0.0
      %228 = vmatpush.msra.mxu0 0.0
      %229 = vmatpush.msra.mxu0 0.0
      %230 = vmatpush.msra.mxu0 0.0
      %231 = vmatpush.msra.mxu0 0.0
      %232 = vmatpush.msra.mxu0 0.0
      %233 = vmatpush.msra.mxu0 0.0
      %234 = vmatpush.msra.mxu0 %v217
      %235 = vmatmul.f32.gmra.mxu0 %v214
      %v236 = vpop.f32.mrf.mxu0
      %v237 = vadd.f32 0.0, %v236
      %238 = vdwg.mxu0
      %v240 = vsel %vm212, %v206, 0
      %v242 = vsel %vm216, %v205, 0
      %244 = vmatpush.msra.mxu0 0.0
      %245 = vmatpush.msra.mxu0 0.0
      %246 = vmatpush.msra.mxu0 0.0
      %247 = vmatpush.msra.mxu0 0.0
      %248 = vmatpush.msra.mxu0 0.0
      %249 = vmatpush.msra.mxu0 0.0
      %250 = vmatpush.msra.mxu0 0.0
      %251 = vmatpush.msra.mxu0 0.0
      %252 = vmatpush.msra.mxu0 0.0
      %253 = vmatpush.msra.mxu0 0.0
      %254 = vmatpush.msra.mxu0 0.0
      %255 = vmatpush.msra.mxu0 0.0
      %256 = vmatpush.msra.mxu0 0.0
      %257 = vmatpush.msra.mxu0 0.0
      %258 = vmatpush.msra.mxu0 0.0
      %259 = vmatpush.msra.mxu0 %v242
      %260 = vmatmul.f32.gmra.mxu0 %v240
      %v261 = vpop.f32.mrf.mxu0
      %v262 = vadd.f32 %v237, %v261
      %263 = vdwg.mxu0
      %s264 = scalar_lea.vmem %s1, 8
      %v265 = vld [vmem:[%s264] sm:$0xf]
      %266 = vrot.lane.b32.xlu0 %v205, 126
      %v267 = vpop.permute.xlu0 %266
      %v269 = vsel %vm212, %v265, 0
      %v271 = vsel %vm216, %v267, 0
      %273 = vmatpush.msra.mxu0 0.0
      %274 = vmatpush.msra.mxu0 0.0
      %275 = vmatpush.msra.mxu0 0.0
      %276 = vmatpush.msra.mxu0 0.0
      %277 = vmatpush.msra.mxu0 0.0
      %278 = vmatpush.msra.mxu0 0.0
      %279 = vmatpush.msra.mxu0 0.0
      %280 = vmatpush.msra.mxu0 0.0
      %281 = vmatpush.msra.mxu0 0.0
      %282 = vmatpush.msra.mxu0 0.0
      %283 = vmatpush.msra.mxu0 0.0
      %284 = vmatpush.msra.mxu0 0.0
      %285 = vmatpush.msra.mxu0 0.0
      %286 = vmatpush.msra.mxu0 0.0
      %287 = vmatpush.msra.mxu0 0.0
      %288 = vmatpush.msra.mxu0 %v271
      %289 = vmatmul.f32.gmra.mxu0 %v269
      %v290 = vpop.f32.mrf.mxu0
      %v291 = vadd.f32 0.0, %v290
      %292 = vdwg.mxu0
      %v293 = vadd.f32 %v262, %v291
      %s294 = scalar_lea.vmem %s1, 12
      %v295 = vld [vmem:[%s294] sm:$0xf]
      %296 = vrot.lane.b32.xlu0 %v205, 122
      %v297 = vpop.permute.xlu0 %296
      %v299 = vsel %vm212, %v295, 0
      %v301 = vsel %vm216, %v297, 0
      %303 = vmatpush.msra.mxu0 0.0
      %304 = vmatpush.msra.mxu0 0.0
      %305 = vmatpush.msra.mxu0 0.0
      %306 = vmatpush.msra.mxu0 0.0
      %307 = vmatpush.msra.mxu0 0.0
      %308 = vmatpush.msra.mxu0 0.0
      %309 = vmatpush.msra.mxu0 0.0
      %310 = vmatpush.msra.mxu0 0.0
      %311 = vmatpush.msra.mxu0 0.0
      %312 = vmatpush.msra.mxu0 0.0
      %313 = vmatpush.msra.mxu0 0.0
      %314 = vmatpush.msra.mxu0 0.0
      %315 = vmatpush.msra.mxu0 0.0
      %316 = vmatpush.msra.mxu0 0.0
      %317 = vmatpush.msra.mxu0 0.0
      %318 = vmatpush.msra.mxu0 %v301
      %319 = vmatmul.f32.gmra.mxu0 %v299
      %v320 = vpop.f32.mrf.mxu0
      %v321 = vadd.f32 0.0, %v320
      %322 = vdwg.mxu0
      %v323 = vadd.f32 %v293, %v321
      %s324 = scalar_lea.vmem %s1, 16
      %v325 = vld [vmem:[%s324] sm:$0xf]
      %326 = vrot.lane.b32.xlu0 %v205, 121
      %v327 = vpop.permute.xlu0 %326
      %v329 = vsel %vm212, %v325, 0
      %v331 = vsel %vm216, %v327, 0
      %333 = vmatpush.msra.mxu0 0.0
      %334 = vmatpush.msra.mxu0 0.0
      %335 = vmatpush.msra.mxu0 0.0
      %336 = vmatpush.msra.mxu0 0.0
      %337 = vmatpush.msra.mxu0 0.0
      %338 = vmatpush.msra.mxu0 0.0
      %339 = vmatpush.msra.mxu0 0.0
      %340 = vmatpush.msra.mxu0 0.0
      %341 = vmatpush.msra.mxu0 0.0
      %342 = vmatpush.msra.mxu0 0.0
      %343 = vmatpush.msra.mxu0 0.0
      %344 = vmatpush.msra.mxu0 0.0
      %345 = vmatpush.msra.mxu0 0.0
      %346 = vmatpush.msra.mxu0 0.0
      %347 = vmatpush.msra.mxu0 0.0
      %348 = vmatpush.msra.mxu0 %v331
      %349 = vmatmul.f32.gmra.mxu0 %v329
      %v350 = vpop.f32.mrf.mxu0
      %v351 = vadd.f32 0.0, %v350
      %352 = vdwg.mxu0
      %v353 = vadd.f32 %v323, %v351
      %s354 = scalar_lea.vmem %s1, 20
      %v355 = vld [vmem:[%s354] sm:$0xf]
      %356 = vrot.lane.b32.xlu0 %v205, 120
      %v357 = vpop.permute.xlu0 %356
      %v359 = vsel %vm212, %v355, 0
      %v361 = vsel %vm216, %v357, 0
      %363 = vmatpush.msra.mxu0 0.0
      %364 = vmatpush.msra.mxu0 0.0
      %365 = vmatpush.msra.mxu0 0.0
      %366 = vmatpush.msra.mxu0 0.0
      %367 = vmatpush.msra.mxu0 0.0
      %368 = vmatpush.msra.mxu0 0.0
      %369 = vmatpush.msra.mxu0 0.0
      %370 = vmatpush.msra.mxu0 0.0
      %371 = vmatpush.msra.mxu0 0.0
      %372 = vmatpush.msra.mxu0 0.0
      %373 = vmatpush.msra.mxu0 0.0
      %374 = vmatpush.msra.mxu0 0.0
      %375 = vmatpush.msra.mxu0 0.0
      %376 = vmatpush.msra.mxu0 0.0
      %377 = vmatpush.msra.mxu0 0.0
      %378 = vmatpush.msra.mxu0 %v361
      %379 = vmatmul.f32.gmra.mxu0 %v359
      %v380 = vpop.f32.mrf.mxu0
      %v381 = vadd.f32 0.0, %v380
      %382 = vdwg.mxu0
      %v383 = vadd.f32 %v353, %v381
      %s384 = scalar_lea.vmem %s1, 24
      %v385 = vld [vmem:[%s384] sm:$0xf]
      %386 = vrot.lane.b32.xlu0 %v205, 116
      %v387 = vpop.permute.xlu0 %386
      %v389 = vsel %vm212, %v385, 0
      %v391 = vsel %vm216, %v387, 0
      %393 = vmatpush.msra.mxu0 0.0
      %394 = vmatpush.msra.mxu0 0.0
      %395 = vmatpush.msra.mxu0 0.0
      %396 = vmatpush.msra.mxu0 0.0
      %397 = vmatpush.msra.mxu0 0.0
      %398 = vmatpush.msra.mxu0 0.0
      %399 = vmatpush.msra.mxu0 0.0
      %400 = vmatpush.msra.mxu0 0.0
      %401 = vmatpush.msra.mxu0 0.0
      %402 = vmatpush.msra.mxu0 0.0
      %403 = vmatpush.msra.mxu0 0.0
      %404 = vmatpush.msra.mxu0 0.0
      %405 = vmatpush.msra.mxu0 0.0
      %406 = vmatpush.msra.mxu0 0.0
      %407 = vmatpush.msra.mxu0 0.0
      %408 = vmatpush.msra.mxu0 %v391
      %409 = vmatmul.f32.gmra.mxu0 %v389
      %v410 = vpop.f32.mrf.mxu0
      %v411 = vadd.f32 0.0, %v410
      %412 = vdwg.mxu0
      %v413 = vadd.f32 %v383, %v411
      %s414 = scalar_lea.vmem %s1, 28
      %v415 = vld [vmem:[%s414] sm:$0xf]
      %416 = vrot.lane.b32.xlu0 %v205, 115
      %v417 = vpop.permute.xlu0 %416
      %v419 = vsel %vm212, %v415, 0
      %v421 = vsel %vm216, %v417, 0
      %423 = vmatpush.msra.mxu0 0.0
      %424 = vmatpush.msra.mxu0 0.0
      %425 = vmatpush.msra.mxu0 0.0
      %426 = vmatpush.msra.mxu0 0.0
      %427 = vmatpush.msra.mxu0 0.0
      %428 = vmatpush.msra.mxu0 0.0
      %429 = vmatpush.msra.mxu0 0.0
      %430 = vmatpush.msra.mxu0 0.0
      %431 = vmatpush.msra.mxu0 0.0
      %432 = vmatpush.msra.mxu0 0.0
      %433 = vmatpush.msra.mxu0 0.0
      %434 = vmatpush.msra.mxu0 0.0
      %435 = vmatpush.msra.mxu0 0.0
      %436 = vmatpush.msra.mxu0 0.0
      %437 = vmatpush.msra.mxu0 0.0
      %438 = vmatpush.msra.mxu0 %v421
      %439 = vmatmul.f32.gmra.mxu0 %v419
      %v440 = vpop.f32.mrf.mxu0
      %v441 = vadd.f32 0.0, %v440
      %442 = vdwg.mxu0
      %v443 = vadd.f32 %v413, %v441
      %s444 = scalar_lea.vmem %s1, 32
      %v445 = vld [vmem:[%s444] sm:$0xf]
      %446 = vrot.lane.b32.xlu0 %v205, 114
      %v447 = vpop.permute.xlu0 %446
      %v449 = vsel %vm212, %v445, 0
      %v451 = vsel %vm216, %v447, 0
      %453 = vmatpush.msra.mxu0 0.0
      %454 = vmatpush.msra.mxu0 0.0
      %455 = vmatpush.msra.mxu0 0.0
      %456 = vmatpush.msra.mxu0 0.0
      %457 = vmatpush.msra.mxu0 0.0
      %458 = vmatpush.msra.mxu0 0.0
      %459 = vmatpush.msra.mxu0 0.0
      %460 = vmatpush.msra.mxu0 0.0
      %461 = vmatpush.msra.mxu0 0.0
      %462 = vmatpush.msra.mxu0 0.0
      %463 = vmatpush.msra.mxu0 0.0
      %464 = vmatpush.msra.mxu0 0.0
      %465 = vmatpush.msra.mxu0 0.0
      %466 = vmatpush.msra.mxu0 0.0
      %467 = vmatpush.msra.mxu0 0.0
      %468 = vmatpush.msra.mxu0 %v451
      %469 = vmatmul.f32.gmra.mxu0 %v449
      %v470 = vpop.f32.mrf.mxu0
      %v471 = vadd.f32 0.0, %v470
      %472 = vdwg.mxu0
      %v473 = vadd.f32 %v443, %v471
      %v474 = vld [vmem:[%s2] sm:$0xf]
      %476 = vset.pattern.permute.xlu0 0
      %477 = vperm.xlu0 %476, %v474
      %v478 = vpop.permute.xlu0 %477
      %v480 = vadd.f32 %v473, %v478
      %v481 = vmul.f32 %v480, 0.2
      %v482 = vmax.f32 %v480, %v481
      %v484 = vperm.slane %v197, 0
      %v486 = vmul.f32 %v482, %v484
      %488 = vrot.lane.b32.xlu0 %v486, 7
      %v489 = vpop.permute.xlu0 %488
      %491 = vst.msk [vmem:[#allocation2] sm:$0xf] %vm203, %v489
      %v492 = vld [vmem:[#allocation2] sm:$0xf]
      %s493 = scalar_lea.vmem %s1, 36
      %v494 = vld [vmem:[%s493] sm:$0xf]
      %s495 = scalar_lea.vmem %s1, 40
      %v496 = vld [vmem:[%s495] sm:$0xf]
      %498 = vrot.lane.b32.xlu0 %v492, 127
      %v499 = vpop.permute.xlu0 %498
      %v501 = vsel %vm212, %v496, 0
      %v503 = vsel %vm216, %v499, 0
      %505 = vmatpush.msra.mxu0 0.0
      %506 = vmatpush.msra.mxu0 0.0
      %507 = vmatpush.msra.mxu0 0.0
      %508 = vmatpush.msra.mxu0 0.0
      %509 = vmatpush.msra.mxu0 0.0
      %510 = vmatpush.msra.mxu0 0.0
      %511 = vmatpush.msra.mxu0 0.0
      %512 = vmatpush.msra.mxu0 0.0
      %513 = vmatpush.msra.mxu0 0.0
      %514 = vmatpush.msra.mxu0 0.0
      %515 = vmatpush.msra.mxu0 0.0
      %516 = vmatpush.msra.mxu0 0.0
      %517 = vmatpush.msra.mxu0 0.0
      %518 = vmatpush.msra.mxu0 0.0
      %519 = vmatpush.msra.mxu0 0.0
      %520 = vmatpush.msra.mxu0 %v503
      %521 = vmatmul.f32.gmra.mxu0 %v501
      %v522 = vpop.f32.mrf.mxu0
      %v523 = vadd.f32 0.0, %v522
      %524 = vdwg.mxu0
      %v526 = vsel %vm212, %v494, 0
      %v528 = vsel %vm216, %v492, 0
      %530 = vmatpush.msra.mxu0 0.0
      %531 = vmatpush.msra.mxu0 0.0
      %532 = vmatpush.msra.mxu0 0.0
      %533 = vmatpush.msra.mxu0 0.0
      %534 = vmatpush.msra.mxu0 0.0
      %535 = vmatpush.msra.mxu0 0.0
      %536 = vmatpush.msra.mxu0 0.0
      %537 = vmatpush.msra.mxu0 0.0
      %538 = vmatpush.msra.mxu0 0.0
      %539 = vmatpush.msra.mxu0 0.0
      %540 = vmatpush.msra.mxu0 0.0
      %541 = vmatpush.msra.mxu0 0.0
      %542 = vmatpush.msra.mxu0 0.0
      %543 = vmatpush.msra.mxu0 0.0
      %544 = vmatpush.msra.mxu0 0.0
      %545 = vmatpush.msra.mxu0 %v528
      %546 = vmatmul.f32.gmra.mxu0 %v526
      %v547 = vpop.f32.mrf.mxu0
      %v548 = vadd.f32 %v523, %v547
      %549 = vdwg.mxu0
      %s550 = scalar_lea.vmem %s1, 44
      %v551 = vld [vmem:[%s550] sm:$0xf]
      %552 = vrot.lane.b32.xlu0 %v492, 126
      %v553 = vpop.permute.xlu0 %552
      %v555 = vsel %vm212, %v551, 0
      %v557 = vsel %vm216, %v553, 0
      %559 = vmatpush.msra.mxu0 0.0
      %560 = vmatpush.msra.mxu0 0.0
      %561 = vmatpush.msra.mxu0 0.0
      %562 = vmatpush.msra.mxu0 0.0
      %563 = vmatpush.msra.mxu0 0.0
      %564 = vmatpush.msra.mxu0 0.0
      %565 = vmatpush.msra.mxu0 0.0
      %566 = vmatpush.msra.mxu0 0.0
      %567 = vmatpush.msra.mxu0 0.0
      %568 = vmatpush.msra.mxu0 0.0
      %569 = vmatpush.msra.mxu0 0.0
      %570 = vmatpush.msra.mxu0 0.0
      %571 = vmatpush.msra.mxu0 0.0
      %572 = vmatpush.msra.mxu0 0.0
      %573 = vmatpush.msra.mxu0 0.0
      %574 = vmatpush.msra.mxu0 %v557
      %575 = vmatmul.f32.gmra.mxu0 %v555
      %v576 = vpop.f32.mrf.mxu0
      %v577 = vadd.f32 0.0, %v576
      %578 = vdwg.mxu0
      %v579 = vadd.f32 %v548, %v577
      %s580 = scalar_lea.vmem %s1, 48
      %v581 = vld [vmem:[%s580] sm:$0xf]
      %582 = vrot.lane.b32.xlu0 %v492, 122
      %v583 = vpop.permute.xlu0 %582
      %v585 = vsel %vm212, %v581, 0
      %v587 = vsel %vm216, %v583, 0
      %589 = vmatpush.msra.mxu0 0.0
      %590 = vmatpush.msra.mxu0 0.0
      %591 = vmatpush.msra.mxu0 0.0
      %592 = vmatpush.msra.mxu0 0.0
      %593 = vmatpush.msra.mxu0 0.0
      %594 = vmatpush.msra.mxu0 0.0
      %595 = vmatpush.msra.mxu0 0.0
      %596 = vmatpush.msra.mxu0 0.0
      %597 = vmatpush.msra.mxu0 0.0
      %598 = vmatpush.msra.mxu0 0.0
      %599 = vmatpush.msra.mxu0 0.0
      %600 = vmatpush.msra.mxu0 0.0
      %601 = vmatpush.msra.mxu0 0.0
      %602 = vmatpush.msra.mxu0 0.0
      %603 = vmatpush.msra.mxu0 0.0
      %604 = vmatpush.msra.mxu0 %v587
      %605 = vmatmul.f32.gmra.mxu0 %v585
      %v606 = vpop.f32.mrf.mxu0
      %v607 = vadd.f32 0.0, %v606
      %608 = vdwg.mxu0
      %v609 = vadd.f32 %v579, %v607
      %s610 = scalar_lea.vmem %s1, 52
      %v611 = vld [vmem:[%s610] sm:$0xf]
      %612 = vrot.lane.b32.xlu0 %v492, 121
      %v613 = vpop.permute.xlu0 %612
      %v615 = vsel %vm212, %v611, 0
      %v617 = vsel %vm216, %v613, 0
      %619 = vmatpush.msra.mxu0 0.0
      %620 = vmatpush.msra.mxu0 0.0
      %621 = vmatpush.msra.mxu0 0.0
      %622 = vmatpush.msra.mxu0 0.0
      %623 = vmatpush.msra.mxu0 0.0
      %624 = vmatpush.msra.mxu0 0.0
      %625 = vmatpush.msra.mxu0 0.0
      %626 = vmatpush.msra.mxu0 0.0
      %627 = vmatpush.msra.mxu0 0.0
      %628 = vmatpush.msra.mxu0 0.0
      %629 = vmatpush.msra.mxu0 0.0
      %630 = vmatpush.msra.mxu0 0.0
      %631 = vmatpush.msra.mxu0 0.0
      %632 = vmatpush.msra.mxu0 0.0
      %633 = vmatpush.msra.mxu0 0.0
      %634 = vmatpush.msra.mxu0 %v617
      %635 = vmatmul.f32.gmra.mxu0 %v615
      %v636 = vpop.f32.mrf.mxu0
      %v637 = vadd.f32 0.0, %v636
      %638 = vdwg.mxu0
      %v639 = vadd.f32 %v609, %v637
      %s640 = scalar_lea.vmem %s1, 56
      %v641 = vld [vmem:[%s640] sm:$0xf]
      %642 = vrot.lane.b32.xlu0 %v492, 120
      %v643 = vpop.permute.xlu0 %642
      %v645 = vsel %vm212, %v641, 0
      %v647 = vsel %vm216, %v643, 0
      %649 = vmatpush.msra.mxu0 0.0
      %650 = vmatpush.msra.mxu0 0.0
      %651 = vmatpush.msra.mxu0 0.0
      %652 = vmatpush.msra.mxu0 0.0
      %653 = vmatpush.msra.mxu0 0.0
      %654 = vmatpush.msra.mxu0 0.0
      %655 = vmatpush.msra.mxu0 0.0
      %656 = vmatpush.msra.mxu0 0.0
      %657 = vmatpush.msra.mxu0 0.0
      %658 = vmatpush.msra.mxu0 0.0
      %659 = vmatpush.msra.mxu0 0.0
      %660 = vmatpush.msra.mxu0 0.0
      %661 = vmatpush.msra.mxu0 0.0
      %662 = vmatpush.msra.mxu0 0.0
      %663 = vmatpush.msra.mxu0 0.0
      %664 = vmatpush.msra.mxu0 %v647
      %665 = vmatmul.f32.gmra.mxu0 %v645
      %v666 = vpop.f32.mrf.mxu0
      %v667 = vadd.f32 0.0, %v666
      %668 = vdwg.mxu0
      %v669 = vadd.f32 %v639, %v667
      %s670 = scalar_lea.vmem %s1, 60
      %v671 = vld [vmem:[%s670] sm:$0xf]
      %672 = vrot.lane.b32.xlu0 %v492, 116
      %v673 = vpop.permute.xlu0 %672
      %v675 = vsel %vm212, %v671, 0
      %v677 = vsel %vm216, %v673, 0
      %679 = vmatpush.msra.mxu0 0.0
      %680 = vmatpush.msra.mxu0 0.0
      %681 = vmatpush.msra.mxu0 0.0
      %682 = vmatpush.msra.mxu0 0.0
      %683 = vmatpush.msra.mxu0 0.0
      %684 = vmatpush.msra.mxu0 0.0
      %685 = vmatpush.msra.mxu0 0.0
      %686 = vmatpush.msra.mxu0 0.0
      %687 = vmatpush.msra.mxu0 0.0
      %688 = vmatpush.msra.mxu0 0.0
      %689 = vmatpush.msra.mxu0 0.0
      %690 = vmatpush.msra.mxu0 0.0
      %691 = vmatpush.msra.mxu0 0.0
      %692 = vmatpush.msra.mxu0 0.0
      %693 = vmatpush.msra.mxu0 0.0
      %694 = vmatpush.msra.mxu0 %v677
      %695 = vmatmul.f32.gmra.mxu0 %v675
      %v696 = vpop.f32.mrf.mxu0
      %v697 = vadd.f32 0.0, %v696
      %698 = vdwg.mxu0
      %v699 = vadd.f32 %v669, %v697
      %s700 = scalar_lea.vmem %s1, 64
      %v701 = vld [vmem:[%s700] sm:$0xf]
      %702 = vrot.lane.b32.xlu0 %v492, 115
      %v703 = vpop.permute.xlu0 %702
      %v705 = vsel %vm212, %v701, 0
      %v707 = vsel %vm216, %v703, 0
      %709 = vmatpush.msra.mxu0 0.0
      %710 = vmatpush.msra.mxu0 0.0
      %711 = vmatpush.msra.mxu0 0.0
      %712 = vmatpush.msra.mxu0 0.0
      %713 = vmatpush.msra.mxu0 0.0
      %714 = vmatpush.msra.mxu0 0.0
      %715 = vmatpush.msra.mxu0 0.0
      %716 = vmatpush.msra.mxu0 0.0
      %717 = vmatpush.msra.mxu0 0.0
      %718 = vmatpush.msra.mxu0 0.0
      %719 = vmatpush.msra.mxu0 0.0
      %720 = vmatpush.msra.mxu0 0.0
      %721 = vmatpush.msra.mxu0 0.0
      %722 = vmatpush.msra.mxu0 0.0
      %723 = vmatpush.msra.mxu0 0.0
      %724 = vmatpush.msra.mxu0 %v707
      %725 = vmatmul.f32.gmra.mxu0 %v705
      %v726 = vpop.f32.mrf.mxu0
      %v727 = vadd.f32 0.0, %v726
      %728 = vdwg.mxu0
      %v729 = vadd.f32 %v699, %v727
      %s730 = scalar_lea.vmem %s1, 68
      %v731 = vld [vmem:[%s730] sm:$0xf]
      %732 = vrot.lane.b32.xlu0 %v492, 114
      %v733 = vpop.permute.xlu0 %732
      %v735 = vsel %vm212, %v731, 0
      %v737 = vsel %vm216, %v733, 0
      %739 = vmatpush.msra.mxu0 0.0
      %740 = vmatpush.msra.mxu0 0.0
      %741 = vmatpush.msra.mxu0 0.0
      %742 = vmatpush.msra.mxu0 0.0
      %743 = vmatpush.msra.mxu0 0.0
      %744 = vmatpush.msra.mxu0 0.0
      %745 = vmatpush.msra.mxu0 0.0
      %746 = vmatpush.msra.mxu0 0.0
      %747 = vmatpush.msra.mxu0 0.0
      %748 = vmatpush.msra.mxu0 0.0
      %749 = vmatpush.msra.mxu0 0.0
      %750 = vmatpush.msra.mxu0 0.0
      %751 = vmatpush.msra.mxu0 0.0
      %752 = vmatpush.msra.mxu0 0.0
      %753 = vmatpush.msra.mxu0 0.0
      %754 = vmatpush.msra.mxu0 %v737
      %755 = vmatmul.f32.gmra.mxu0 %v735
      %v756 = vpop.f32.mrf.mxu0
      %v757 = vadd.f32 0.0, %v756
      %758 = vdwg.mxu0
      %v759 = vadd.f32 %v729, %v757
      %s760 = scalar_lea.vmem %s2, 4
      %v761 = vld [vmem:[%s760] sm:$0xf]
      %763 = vset.pattern.permute.xlu0 0
      %764 = vperm.xlu0 %763, %v761
      %v765 = vpop.permute.xlu0 %764
      %v767 = vadd.f32 %v759, %v765
      %v768 = vmul.f32 %v767, 0.2
      %v769 = vmax.f32 %v767, %v768
      %vm770 = vcmask 289792
      %771 = vst.msk [vmem:[%s192] sm:$0xf] %vm770, %v769
      %p772 = scmp.lt.s32.totalorder %s15, 1
      %s773 = scalar_select %p772, %s15, 1
      %s774 = smul.addr %s773, 4
      %s775 = scalar_lea.vmem %s4, %s774
      // Predicated region
      $region37: #{_lambda_.4} parent=35 // pred_check
        %p776 = pneg %p122
      $region38: #{_lambda_.4} parent=35 // pred_check_branch
        %778 = sbr.rel (%p776) target = $region40
      $region39: #{_lambda_.4} parent=35 // pred_region
        _
      $region40: #{_lambda_.4} parent=35 // pred_fallthru
        _
    $region36: #{_lambda_.4} parent=5 // pred_fallthru
      _
    %p779 = scmp.le.s32.totalorder 2, %s10
    // Predicated region
    $region41: #{_lambda_.4} parent=5 // pred_check
      %p780 = pneg %p779
    $region42: #{_lambda_.4} parent=5 // pred_check_branch
      %782 = sbr.rel (%p780) target = $region44
    $region43: #{_lambda_.4} parent=5 // pred_region
      %s783 = ssub.s32 %s10, 2
      // Predicated region
      $region45: #{_lambda_.4} parent=43 // pred_check
        %p784 = pneg %p128
      $region46: #{_lambda_.4} parent=43 // pred_check_branch
        %786 = sbr.rel (%p784) target = $region48
      $region47: #{_lambda_.4} parent=43 // pred_region
        %p787 = scmp.lt.s32.totalorder %s16, 1
        %s788 = scalar_select %p787, %s16, 1
        %s789 = smul.addr %s788, 4
        %s790 = scalar_lea.vmem %s4, %s789
      $region48: #{_lambda_.4} parent=43 // pred_fallthru
        _
    $region44: #{_lambda_.4} parent=5 // pred_fallthru
      _
  $region6: #{_lambda_.4} parent=0 // loop_footer
    %s14 = sadd.s32 1, %s10
  $region7: #{_lambda_.4} parent=0 // loop_footer_branch
    %9 = sbr.rel target = $region3
  $region8: #{_lambda_.4} parent=0 // loop_exit
    _

// kernel: _lambda_.5
$region0: #{_lambda_.5}
  #allocation0 [shape = 'u32[]', space=smem, size = 0x4, offset = 0x4, fixed_abs, tag = 'smem constant byte address 0x4 - core index']
  #allocation1 [shape = 'u32[72,128]{1,0:T(1,128)}', space=vmem, size = 0x9000, scoped, tag = 'internal scratch']
  #allocation2 [shape = 'f32[4,122]{1,0:T(4,128)}', space=vmem, size = 0x800, scoped, tag = 'scratch operand']
  %s0 = inlined_call_operand.vmem [shape: f32[2,4,100], index: 0, kind: input, shape index: {}]
  %s1 = inlined_call_operand.vmem [shape: f32[2,4,100], index: 1, kind: input, shape index: {}]
  %s2 = inlined_call_operand.vmem [shape: f32[2,4,4], index: 2, kind: input, shape index: {}]
  %s3 = inlined_call_operand.vmem [shape: f32[4,1], index: 3, kind: input, shape index: {}]
  %s4 = inlined_call_operand.vmem [shape: f32[18,4,4], index: 4, kind: input, shape index: {}]
  %s5 = inlined_call_operand.vmem [shape: f32[2,4,1], index: 5, kind: input, shape index: {}]
  %s6 = inlined_call_operand.vmem [shape: f32[1,100], index: 6, kind: input, shape index: {}]
  %s7 = inlined_call_operand.vmem [shape: f32[2,4,100], index: 7, kind: output, shape index: {}]
  %s8 = sld [smem:[#allocation0]]
  $region61: #{_lambda_.5} parent=0
    _
  %s10 = ssub.s32 1, %s8
  %s11 = scalar_select 0, %s10, %s8
  loop: start=0, step=1, limit=4
  $region2: #{_lambda_.5} parent=0 // loop_pre_header
    _
  $region3: #{_lambda_.5} parent=0 // loop_header
    %s13 = sphi 0, %s17
    %p14 = scmp.ge.s32.totalorder %s13, 4
    %s23 = sphi 0, %s25
    %s26 = sphi 0, %s23
    %s27 = sphi 0, %s26
    %s43 = sphi 0, %s27
    %s49 = sphi 0, %s51
    %s52 = sphi 0, %s49
    %s53 = sphi 0, %s52
    %s69 = sphi 0, %s53
    %s73 = sphi 0, %s73
    %s75 = sphi 0, %s73
    %s76 = sphi 0, %s75
    %s90 = sphi 0, %s76
    %s94 = sphi 0, %s94
    %s96 = sphi 0, %s94
    %s97 = sphi 0, %s96
    %s111 = sphi 0, %s97
    %s115 = sphi 0, %s115
    %s117 = sphi 0, %s115
    %s118 = sphi 0, %s117
    %s132 = sphi 0, %s118
    %s136 = sphi 0, %s136
    %s138 = sphi 0, %s136
    %s139 = sphi 0, %s138
    %s153 = sphi 0, %s139
    %s157 = sphi 0, %s157
    %s159 = sphi 0, %s157
    %s160 = sphi 0, %s159
    %s174 = sphi 0, %s160
    %s180 = sphi 0, %s182
    %s183 = sphi 0, %s180
    %s184 = sphi 0, %s183
    %s200 = sphi 0, %s184
  $region4: #{_lambda_.5} parent=0 // loop_header_branch
    %16 = sbr.rel (%p14) target = $region8
  $region5: #{_lambda_.5} parent=0 // loop_body
    %s18 = ssub.s32 %s13, 1
    %s19 = ssub.s32 %s13, 2
    %s20 = sadd.s32 %s13, 1
    %s21 = ssub.s32 %s13, %s20
    %p22 = scmp.eq.s32.totalorder %s21, 0
    %s24 = sadd.s32 %s23, 1
    %s25 = scalar_select %p22, %s23, %s24
    %p28 = pneg %p22
    %p29 = scmp.eq.s32.totalorder %s13, 1
    %p30 = por %p28, %p29
    %p31 = scmp.ne.s32.totalorder %s23, %s26
    %p32 = scmp.eq.s32.totalorder %s13, 0
    %p33 = por %p31, %p32
    %p34 = scmp.ne.s32.totalorder %s23, %s26
    %p35 = scmp.eq.s32.totalorder %s18, 1
    %p36 = por %p34, %p35
    %p37 = scmp.ne.s32.totalorder %s26, %s27
    %p38 = scmp.eq.s32.totalorder %s18, 0
    %p39 = por %p37, %p38
    %p40 = scmp.ne.s32.totalorder %s26, %s27
    %p41 = scmp.eq.s32.totalorder %s19, 1
    %p42 = por %p40, %p41
    %p44 = scmp.ne.s32.totalorder %s27, %s43
    %p45 = scmp.eq.s32.totalorder %s19, 0
    %p46 = por %p44, %p45
    %s47 = ssub.s32 %s13, %s20
    %p48 = scmp.eq.s32.totalorder %s47, 0
    %s50 = sadd.s32 %s49, 1
    %s51 = scalar_select %p48, %s49, %s50
    %p54 = pneg %p48
    %p55 = scmp.eq.s32.totalorder %s13, 1
    %p56 = por %p54, %p55
    %p57 = scmp.ne.s32.totalorder %s49, %s52
    %p58 = scmp.eq.s32.totalorder %s13, 0
    %p59 = por %p57, %p58
    %p60 = scmp.ne.s32.totalorder %s49, %s52
    %p61 = scmp.eq.s32.totalorder %s18, 1
    %p62 = por %p60, %p61
    %p63 = scmp.ne.s32.totalorder %s52, %s53
    %p64 = scmp.eq.s32.totalorder %s18, 0
    %p65 = por %p63, %p64
    %p66 = scmp.ne.s32.totalorder %s52, %s53
    %p67 = scmp.eq.s32.totalorder %s19, 1
    %p68 = por %p66, %p67
    %p70 = scmp.ne.s32.totalorder %s53, %s69
    %p71 = scmp.eq.s32.totalorder %s19, 0
    %p72 = por %p70, %p71
    %s74 = sadd.s32 %s73, 1
    %p77 = scmp.eq.s32.totalorder %s13, 1
    %p78 = scmp.ne.s32.totalorder %s73, %s75
    %p79 = scmp.eq.s32.totalorder %s13, 0
    %p80 = por %p78, %p79
    %p81 = scmp.ne.s32.totalorder %s73, %s75
    %p82 = scmp.eq.s32.totalorder %s18, 1
    %p83 = por %p81, %p82
    %p84 = scmp.ne.s32.totalorder %s75, %s76
    %p85 = scmp.eq.s32.totalorder %s18, 0
    %p86 = por %p84, %p85
    %p87 = scmp.ne.s32.totalorder %s75, %s76
    %p88 = scmp.eq.s32.totalorder %s19, 1
    %p89 = por %p87, %p88
    %p91 = scmp.ne.s32.totalorder %s76, %s90
    %p92 = scmp.eq.s32.totalorder %s19, 0
    %p93 = por %p91, %p92
    %s95 = sadd.s32 %s94, 1
    %p98 = scmp.eq.s32.totalorder %s13, 1
    %p99 = scmp.ne.s32.totalorder %s94, %s96
    %p100 = scmp.eq.s32.totalorder %s13, 0
    %p101 = por %p99, %p100
    %p102 = scmp.ne.s32.totalorder %s94, %s96
    %p103 = scmp.eq.s32.totalorder %s18, 1
    %p104 = por %p102, %p103
    %p105 = scmp.ne.s32.totalorder %s96, %s97
    %p106 = scmp.eq.s32.totalorder %s18, 0
    %p107 = por %p105, %p106
    %p108 = scmp.ne.s32.totalorder %s96, %s97
    %p109 = scmp.eq.s32.totalorder %s19, 1
    %p110 = por %p108, %p109
    %p112 = scmp.ne.s32.totalorder %s97, %s111
    %p113 = scmp.eq.s32.totalorder %s19, 0
    %p114 = por %p112, %p113
    %s116 = sadd.s32 %s115, 1
    %p119 = scmp.eq.s32.totalorder %s13, 1
    %p120 = scmp.ne.s32.totalorder %s115, %s117
    %p121 = scmp.eq.s32.totalorder %s13, 0
    %p122 = por %p120, %p121
    %p123 = scmp.ne.s32.totalorder %s115, %s117
    %p124 = scmp.eq.s32.totalorder %s18, 1
    %p125 = por %p123, %p124
    %p126 = scmp.ne.s32.totalorder %s117, %s118
    %p127 = scmp.eq.s32.totalorder %s18, 0
    %p128 = por %p126, %p127
    %p129 = scmp.ne.s32.totalorder %s117, %s118
    %p130 = scmp.eq.s32.totalorder %s19, 1
    %p131 = por %p129, %p130
    %p133 = scmp.ne.s32.totalorder %s118, %s132
    %p134 = scmp.eq.s32.totalorder %s19, 0
    %p135 = por %p133, %p134
    %s137 = sadd.s32 %s136, 1
    %p140 = scmp.eq.s32.totalorder %s13, 1
    %p141 = scmp.ne.s32.totalorder %s136, %s138
    %p142 = scmp.eq.s32.totalorder %s13, 0
    %p143 = por %p141, %p142
    %p144 = scmp.ne.s32.totalorder %s136, %s138
    %p145 = scmp.eq.s32.totalorder %s18, 1
    %p146 = por %p144, %p145
    %p147 = scmp.ne.s32.totalorder %s138, %s139
    %p148 = scmp.eq.s32.totalorder %s18, 0
    %p149 = por %p147, %p148
    %p150 = scmp.ne.s32.totalorder %s138, %s139
    %p151 = scmp.eq.s32.totalorder %s19, 1
    %p152 = por %p150, %p151
    %p154 = scmp.ne.s32.totalorder %s139, %s153
    %p155 = scmp.eq.s32.totalorder %s19, 0
    %p156 = por %p154, %p155
    %s158 = sadd.s32 %s157, 1
    %p161 = scmp.eq.s32.totalorder %s13, 1
    %p162 = scmp.ne.s32.totalorder %s157, %s159
    %p163 = scmp.eq.s32.totalorder %s13, 0
    %p164 = por %p162, %p163
    %p165 = scmp.ne.s32.totalorder %s157, %s159
    %p166 = scmp.eq.s32.totalorder %s18, 1
    %p167 = por %p165, %p166
    %p168 = scmp.ne.s32.totalorder %s159, %s160
    %p169 = scmp.eq.s32.totalorder %s18, 0
    %p170 = por %p168, %p169
    %p171 = scmp.ne.s32.totalorder %s159, %s160
    %p172 = scmp.eq.s32.totalorder %s19, 1
    %p173 = por %p171, %p172
    %p175 = scmp.ne.s32.totalorder %s160, %s174
    %p176 = scmp.eq.s32.totalorder %s19, 0
    %p177 = por %p175, %p176
    %s178 = ssub.s32 %s13, %s20
    %p179 = scmp.eq.s32.totalorder %s178, 0
    %s181 = sadd.s32 %s180, 1
    %s182 = scalar_select %p179, %s180, %s181
    %p185 = pneg %p179
    %p186 = scmp.eq.s32.totalorder %s13, 1
    %p187 = por %p185, %p186
    %p188 = scmp.ne.s32.totalorder %s180, %s183
    %p189 = scmp.eq.s32.totalorder %s13, 0
    %p190 = por %p188, %p189
    %p191 = scmp.ne.s32.totalorder %s180, %s183
    %p192 = scmp.eq.s32.totalorder %s18, 1
    %p193 = por %p191, %p192
    %p194 = scmp.ne.s32.totalorder %s183, %s184
    %p195 = scmp.eq.s32.totalorder %s18, 0
    %p196 = por %p194, %p195
    %p197 = scmp.ne.s32.totalorder %s183, %s184
    %p198 = scmp.eq.s32.totalorder %s19, 1
    %p199 = por %p197, %p198
    %p201 = scmp.ne.s32.totalorder %s184, %s200
    %p202 = scmp.eq.s32.totalorder %s19, 0
    %p203 = por %p201, %p202
    %p204 = scmp.le.s32.totalorder 1, %s13
    %p205 = scmp.lt.s32.totalorder %s13, 3
    %p206 = pnand %p204, %p205
    %p207 = pneg %p206
    // Predicated region
    $region9: #{_lambda_.5} parent=5 // pred_check
      _
    $region10: #{_lambda_.5} parent=5 // pred_check_branch
      %209 = sbr.rel (%p206) target = $region12
    $region11: #{_lambda_.5} parent=5 // pred_region
      %s210 = ssub.s32 %s13, 1
      // Predicated region
      $region13: #{_lambda_.5} parent=11 // pred_check
        %p211 = pneg %p86
      $region14: #{_lambda_.5} parent=11 // pred_check_branch
        %213 = sbr.rel (%p211) target = $region16
      $region15: #{_lambda_.5} parent=11 // pred_region
        _
      $region16: #{_lambda_.5} parent=11 // pred_fallthru
        _
      // Predicated region
      $region17: #{_lambda_.5} parent=11 // pred_check
        %p214 = pneg %p107
      $region18: #{_lambda_.5} parent=11 // pred_check_branch
        %216 = sbr.rel (%p214) target = $region20
      $region19: #{_lambda_.5} parent=11 // pred_region
        _
      $region20: #{_lambda_.5} parent=11 // pred_fallthru
        _
      // Predicated region
      $region21: #{_lambda_.5} parent=11 // pred_check
        %p217 = pneg %p128
      $region22: #{_lambda_.5} parent=11 // pred_check_branch
        %219 = sbr.rel (%p217) target = $region24
      $region23: #{_lambda_.5} parent=11 // pred_region
        _
      $region24: #{_lambda_.5} parent=11 // pred_fallthru
        _
      // Predicated region
      $region25: #{_lambda_.5} parent=11 // pred_check
        %p220 = pneg %p149
      $region26: #{_lambda_.5} parent=11 // pred_check_branch
        %222 = sbr.rel (%p220) target = $region28
      $region27: #{_lambda_.5} parent=11 // pred_region
        _
      $region28: #{_lambda_.5} parent=11 // pred_fallthru
        _
      // Predicated region
      $region29: #{_lambda_.5} parent=11 // pred_check
        %p223 = pneg %p170
      $region30: #{_lambda_.5} parent=11 // pred_check_branch
        %225 = sbr.rel (%p223) target = $region32
      $region31: #{_lambda_.5} parent=11 // pred_region
        _
      $region32: #{_lambda_.5} parent=11 // pred_fallthru
        _
    $region12: #{_lambda_.5} parent=5 // pred_fallthru
      _
    %p226 = scmp.lt.s32.totalorder %s13, 2
    // Predicated region
    $region33: #{_lambda_.5} parent=5 // pred_check
      %p227 = pneg %p226
    $region34: #{_lambda_.5} parent=5 // pred_check_branch
      %229 = sbr.rel (%p227) target = $region36
    $region35: #{_lambda_.5} parent=5 // pred_region
      // Predicated region
      $region37: #{_lambda_.5} parent=35 // pred_check
        %p230 = pneg %p33
      $region38: #{_lambda_.5} parent=35 // pred_check_branch
        %232 = sbr.rel (%p230) target = $region40
      $region39: #{_lambda_.5} parent=35 // pred_region
        %p233 = scmp.lt.s32.totalorder %s13, 1
        %s234 = scalar_select %p233, %s13, 1
        %s235 = smul.addr %s234, 4
        %s236 = scalar_lea.vmem %s0, %s235
      $region40: #{_lambda_.5} parent=35 // pred_fallthru
        _
      // Predicated region
      $region41: #{_lambda_.5} parent=35 // pred_check
        %p237 = pneg %p59
      $region42: #{_lambda_.5} parent=35 // pred_check_branch
        %239 = sbr.rel (%p237) target = $region44
      $region43: #{_lambda_.5} parent=35 // pred_region
        %p240 = scmp.lt.s32.totalorder %s13, 1
        %s241 = scalar_select %p240, %s13, 1
        %s242 = smul.addr %s241, 4
        %s243 = scalar_lea.vmem %s1, %s242
      $region44: #{_lambda_.5} parent=35 // pred_fallthru
        _
    $region36: #{_lambda_.5} parent=5 // pred_fallthru
      _
    %p244 = scmp.le.s32.totalorder 1, %s13
    %p245 = scmp.lt.s32.totalorder %s13, 3
    %p246 = pnand %p244, %p245
    %p247 = pneg %p246
    // Predicated region
    $region45: #{_lambda_.5} parent=5 // pred_check
      _
    $region46: #{_lambda_.5} parent=5 // pred_check_branch
      %249 = sbr.rel (%p246) target = $region48
    $region47: #{_lambda_.5} parent=5 // pred_region
      %s250 = ssub.s32 %s13, 1
      %p251 = scmp.lt.s32.totalorder %s18, 1
      %s252 = scalar_select %p251, %s18, 1
      %s253 = smul.addr %s252, 4
      %s254 = scalar_lea.vmem %s0, %s253
      %p255 = pneg %p39
      %p256 = pneg %p36
      %p257 = scmp.lt.s32.totalorder %s18, 1
      %s258 = scalar_select %p257, %s18, 1
      %s259 = smul.addr %s258, 4
      %s260 = scalar_lea.vmem %s1, %s259
      %p261 = pneg %p65
      %p262 = pneg %p62
      %p263 = pneg %p86
      %p264 = pneg %p83
      %p265 = pneg %p107
      %p266 = pneg %p104
      %p267 = pneg %p128
      %p268 = pneg %p125
      %p269 = pneg %p149
      %p270 = pneg %p146
      %p271 = pneg %p170
      %p272 = pneg %p167
      %p273 = pneg %p196
      %p274 = pneg %p193
      %p275 = scmp.lt.s32.totalorder %s18, 1
      %s276 = scalar_select %p275, %s18, 1
      %s277 = smul.addr %s276, 4
      %s278 = scalar_lea.vmem %s7, %s277
      %p279 = scmp.lt.s32.totalorder %s18, 1
      %s280 = scalar_select %p279, %s18, 1
      %s281 = smul.addr %s280, 4
      %s282 = scalar_lea.vmem %s0, %s281
      %p283 = scmp.lt.s32.totalorder %s18, 1
      %s284 = scalar_select %p283, %s18, 1
      %s285 = smul.addr %s284, 4
      %s286 = scalar_lea.vmem %s1, %s285
      %p287 = scmp.lt.s32.totalorder %s18, 1
      %s288 = scalar_select %p287, %s18, 1
      %s289 = smul.addr %s288, 4
      %s290 = scalar_lea.vmem %s7, %s289
      %vm291 = vcmask 84992
      %292 = vst.msk [vmem:[#allocation2] sm:$0xf] %vm291, 0.0
      %vm293 = vcmask 995192
      %294 = vst.msk [vmem:[#allocation2] sm:$0xf] %vm293, 0.0
      %v295 = vld [vmem:[%s6] sm:$0x1]
      %v296 = vld [vmem:[%s2] sm:$0xf]
      %v297 = vld [vmem:[%s282] sm:$0xf]
      %s298 = scalar_lea.vmem %s2, 4
      %v299 = vld [vmem:[%s298] sm:$0xf]
      %v300 = vld [vmem:[%s286] sm:$0xf]
      %vm301 = vcmask 31744
      %v303 = vsel %vm301, %v299, 0
      %vm305 = vcmask 1043456
      %v307 = vsel %vm305, %v300, 0
      %309 = vmatpush.msra.mxu0 0.0
      %310 = vmatpush.msra.mxu0 0.0
      %311 = vmatpush.msra.mxu0 0.0
      %312 = vmatpush.msra.mxu0 0.0
      %313 = vmatpush.msra.mxu0 0.0
      %314 = vmatpush.msra.mxu0 0.0
      %315 = vmatpush.msra.mxu0 0.0
      %316 = vmatpush.msra.mxu0 0.0
      %317 = vmatpush.msra.mxu0 0.0
      %318 = vmatpush.msra.mxu0 0.0
      %319 = vmatpush.msra.mxu0 0.0
      %320 = vmatpush.msra.mxu0 0.0
      %321 = vmatpush.msra.mxu0 0.0
      %322 = vmatpush.msra.mxu0 0.0
      %323 = vmatpush.msra.mxu0 0.0
      %324 = vmatpush.msra.mxu0 %v307
      %325 = vmatmul.f32.gmra.mxu0 %v303
      %v326 = vpop.f32.mrf.mxu0
      %v327 = vadd.f32 0.0, %v326
      %328 = vdwg.mxu0
      %v330 = vsel %vm301, %v296, 0
      %v333 = vsel %vm305, %v297, 0
      %335 = vmatpush.msra.mxu0 0.0
      %336 = vmatpush.msra.mxu0 0.0
      %337 = vmatpush.msra.mxu0 0.0
      %338 = vmatpush.msra.mxu0 0.0
      %339 = vmatpush.msra.mxu0 0.0
      %340 = vmatpush.msra.mxu0 0.0
      %341 = vmatpush.msra.mxu0 0.0
      %342 = vmatpush.msra.mxu0 0.0
      %343 = vmatpush.msra.mxu0 0.0
      %344 = vmatpush.msra.mxu0 0.0
      %345 = vmatpush.msra.mxu0 0.0
      %346 = vmatpush.msra.mxu0 0.0
      %347 = vmatpush.msra.mxu0 0.0
      %348 = vmatpush.msra.mxu0 0.0
      %349 = vmatpush.msra.mxu0 0.0
      %350 = vmatpush.msra.mxu0 %v333
      %351 = vmatmul.f32.gmra.mxu0 %v330
      %v352 = vpop.f32.mrf.mxu0
      %v353 = vadd.f32 %v327, %v352
      %354 = vdwg.mxu0
      %v355 = vld [vmem:[%s3] sm:$0xf]
      %357 = vset.pattern.permute.xlu0 0
      %358 = vperm.xlu0 %357, %v355
      %v359 = vpop.permute.xlu0 %358
      %v361 = vadd.f32 %v353, %v359
      %v362 = vmul.f32 %v361, 0.2
      %v363 = vmax.f32 %v361, %v362
      %v365 = vperm.slane %v295, 0
      %v367 = vmul.f32 %v363, %v365
      %369 = vrot.lane.b32.xlu0 %v367, 11
      %v370 = vpop.permute.xlu0 %369
      %vm372 = vcmask 904280
      %373 = vst.msk [vmem:[#allocation2] sm:$0xf] %vm372, %v370
      %v374 = vld [vmem:[#allocation2] sm:$0xf]
      %v375 = vld [vmem:[%s4] sm:$0xf]
      %s376 = scalar_lea.vmem %s4, 4
      %v377 = vld [vmem:[%s376] sm:$0xf]
      %379 = vrot.lane.b32.xlu0 %v374, 127
      %v380 = vpop.permute.xlu0 %379
      %v382 = vsel %vm301, %v377, 0
      %v384 = vsel %vm305, %v380, 0
      %386 = vmatpush.msra.mxu0 0.0
      %387 = vmatpush.msra.mxu0 0.0
      %388 = vmatpush.msra.mxu0 0.0
      %389 = vmatpush.msra.mxu0 0.0
      %390 = vmatpush.msra.mxu0 0.0
      %391 = vmatpush.msra.mxu0 0.0
      %392 = vmatpush.msra.mxu0 0.0
      %393 = vmatpush.msra.mxu0 0.0
      %394 = vmatpush.msra.mxu0 0.0
      %395 = vmatpush.msra.mxu0 0.0
      %396 = vmatpush.msra.mxu0 0.0
      %397 = vmatpush.msra.mxu0 0.0
      %398 = vmatpush.msra.mxu0 0.0
      %399 = vmatpush.msra.mxu0 0.0
      %400 = vmatpush.msra.mxu0 0.0
      %401 = vmatpush.msra.mxu0 %v384
      %402 = vmatmul.f32.gmra.mxu0 %v382
      %v403 = vpop.f32.mrf.mxu0
      %v404 = vadd.f32 0.0, %v403
      %405 = vdwg.mxu0
      %v407 = vsel %vm301, %v375, 0
      %v409 = vsel %vm305, %v374, 0
      %411 = vmatpush.msra.mxu0 0.0
      %412 = vmatpush.msra.mxu0 0.0
      %413 = vmatpush.msra.mxu0 0.0
      %414 = vmatpush.msra.mxu0 0.0
      %415 = vmatpush.msra.mxu0 0.0
      %416 = vmatpush.msra.mxu0 0.0
      %417 = vmatpush.msra.mxu0 0.0
      %418 = vmatpush.msra.mxu0 0.0
      %419 = vmatpush.msra.mxu0 0.0
      %420 = vmatpush.msra.mxu0 0.0
      %421 = vmatpush.msra.mxu0 0.0
      %422 = vmatpush.msra.mxu0 0.0
      %423 = vmatpush.msra.mxu0 0.0
      %424 = vmatpush.msra.mxu0 0.0
      %425 = vmatpush.msra.mxu0 0.0
      %426 = vmatpush.msra.mxu0 %v409
      %427 = vmatmul.f32.gmra.mxu0 %v407
      %v428 = vpop.f32.mrf.mxu0
      %v429 = vadd.f32 %v404, %v428
      %430 = vdwg.mxu0
      %s431 = scalar_lea.vmem %s4, 8
      %v432 = vld [vmem:[%s431] sm:$0xf]
      %433 = vrot.lane.b32.xlu0 %v374, 126
      %v434 = vpop.permute.xlu0 %433
      %v436 = vsel %vm301, %v432, 0
      %v438 = vsel %vm305, %v434, 0
      %440 = vmatpush.msra.mxu0 0.0
      %441 = vmatpush.msra.mxu0 0.0
      %442 = vmatpush.msra.mxu0 0.0
      %443 = vmatpush.msra.mxu0 0.0
      %444 = vmatpush.msra.mxu0 0.0
      %445 = vmatpush.msra.mxu0 0.0
      %446 = vmatpush.msra.mxu0 0.0
      %447 = vmatpush.msra.mxu0 0.0
      %448 = vmatpush.msra.mxu0 0.0
      %449 = vmatpush.msra.mxu0 0.0
      %450 = vmatpush.msra.mxu0 0.0
      %451 = vmatpush.msra.mxu0 0.0
      %452 = vmatpush.msra.mxu0 0.0
      %453 = vmatpush.msra.mxu0 0.0
      %454 = vmatpush.msra.mxu0 0.0
      %455 = vmatpush.msra.mxu0 %v438
      %456 = vmatmul.f32.gmra.mxu0 %v436
      %v457 = vpop.f32.mrf.mxu0
      %v458 = vadd.f32 0.0, %v457
      %459 = vdwg.mxu0
      %v460 = vadd.f32 %v429, %v458
      %s461 = scalar_lea.vmem %s4, 12
      %v462 = vld [vmem:[%s461] sm:$0xf]
      %463 = vrot.lane.b32.xlu0 %v374, 118
      %v464 = vpop.permute.xlu0 %463
      %v466 = vsel %vm301, %v462, 0
      %v468 = vsel %vm305, %v464, 0
      %470 = vmatpush.msra.mxu0 0.0
      %471 = vmatpush.msra.mxu0 0.0
      %472 = vmatpush.msra.mxu0 0.0
      %473 = vmatpush.msra.mxu0 0.0
      %474 = vmatpush.msra.mxu0 0.0
      %475 = vmatpush.msra.mxu0 0.0
      %476 = vmatpush.msra.mxu0 0.0
      %477 = vmatpush.msra.mxu0 0.0
      %478 = vmatpush.msra.mxu0 0.0
      %479 = vmatpush.msra.mxu0 0.0
      %480 = vmatpush.msra.mxu0 0.0
      %481 = vmatpush.msra.mxu0 0.0
      %482 = vmatpush.msra.mxu0 0.0
      %483 = vmatpush.msra.mxu0 0.0
      %484 = vmatpush.msra.mxu0 0.0
      %485 = vmatpush.msra.mxu0 %v468
      %486 = vmatmul.f32.gmra.mxu0 %v466
      %v487 = vpop.f32.mrf.mxu0
      %v488 = vadd.f32 0.0, %v487
      %489 = vdwg.mxu0
      %v490 = vadd.f32 %v460, %v488
      %s491 = scalar_lea.vmem %s4, 16
      %v492 = vld [vmem:[%s491] sm:$0xf]
      %493 = vrot.lane.b32.xlu0 %v374, 117
      %v494 = vpop.permute.xlu0 %493
      %v496 = vsel %vm301, %v492, 0
      %v498 = vsel %vm305, %v494, 0
      %500 = vmatpush.msra.mxu0 0.0
      %501 = vmatpush.msra.mxu0 0.0
      %502 = vmatpush.msra.mxu0 0.0
      %503 = vmatpush.msra.mxu0 0.0
      %504 = vmatpush.msra.mxu0 0.0
      %505 = vmatpush.msra.mxu0 0.0
      %506 = vmatpush.msra.mxu0 0.0
      %507 = vmatpush.msra.mxu0 0.0
      %508 = vmatpush.msra.mxu0 0.0
      %509 = vmatpush.msra.mxu0 0.0
      %510 = vmatpush.msra.mxu0 0.0
      %511 = vmatpush.msra.mxu0 0.0
      %512 = vmatpush.msra.mxu0 0.0
      %513 = vmatpush.msra.mxu0 0.0
      %514 = vmatpush.msra.mxu0 0.0
      %515 = vmatpush.msra.mxu0 %v498
      %516 = vmatmul.f32.gmra.mxu0 %v496
      %v517 = vpop.f32.mrf.mxu0
      %v518 = vadd.f32 0.0, %v517
      %519 = vdwg.mxu0
      %v520 = vadd.f32 %v490, %v518
      %s521 = scalar_lea.vmem %s4, 20
      %v522 = vld [vmem:[%s521] sm:$0xf]
      %523 = vrot.lane.b32.xlu0 %v374, 116
      %v524 = vpop.permute.xlu0 %523
      %v526 = vsel %vm301, %v522, 0
      %v528 = vsel %vm305, %v524, 0
      %530 = vmatpush.msra.mxu0 0.0
      %531 = vmatpush.msra.mxu0 0.0
      %532 = vmatpush.msra.mxu0 0.0
      %533 = vmatpush.msra.mxu0 0.0
      %534 = vmatpush.msra.mxu0 0.0
      %535 = vmatpush.msra.mxu0 0.0
      %536 = vmatpush.msra.mxu0 0.0
      %537 = vmatpush.msra.mxu0 0.0
      %538 = vmatpush.msra.mxu0 0.0
      %539 = vmatpush.msra.mxu0 0.0
      %540 = vmatpush.msra.mxu0 0.0
      %541 = vmatpush.msra.mxu0 0.0
      %542 = vmatpush.msra.mxu0 0.0
      %543 = vmatpush.msra.mxu0 0.0
      %544 = vmatpush.msra.mxu0 0.0
      %545 = vmatpush.msra.mxu0 %v528
      %546 = vmatmul.f32.gmra.mxu0 %v526
      %v547 = vpop.f32.mrf.mxu0
      %v548 = vadd.f32 0.0, %v547
      %549 = vdwg.mxu0
      %v550 = vadd.f32 %v520, %v548
      %s551 = scalar_lea.vmem %s4, 24
      %v552 = vld [vmem:[%s551] sm:$0xf]
      %553 = vrot.lane.b32.xlu0 %v374, 108
      %v554 = vpop.permute.xlu0 %553
      %v556 = vsel %vm301, %v552, 0
      %v558 = vsel %vm305, %v554, 0
      %560 = vmatpush.msra.mxu0 0.0
      %561 = vmatpush.msra.mxu0 0.0
      %562 = vmatpush.msra.mxu0 0.0
      %563 = vmatpush.msra.mxu0 0.0
      %564 = vmatpush.msra.mxu0 0.0
      %565 = vmatpush.msra.mxu0 0.0
      %566 = vmatpush.msra.mxu0 0.0
      %567 = vmatpush.msra.mxu0 0.0
      %568 = vmatpush.msra.mxu0 0.0
      %569 = vmatpush.msra.mxu0 0.0
      %570 = vmatpush.msra.mxu0 0.0
      %571 = vmatpush.msra.mxu0 0.0
      %572 = vmatpush.msra.mxu0 0.0
      %573 = vmatpush.msra.mxu0 0.0
      %574 = vmatpush.msra.mxu0 0.0
      %575 = vmatpush.msra.mxu0 %v558
      %576 = vmatmul.f32.gmra.mxu0 %v556
      %v577 = vpop.f32.mrf.mxu0
      %v578 = vadd.f32 0.0, %v577
      %579 = vdwg.mxu0
      %v580 = vadd.f32 %v550, %v578
      %s581 = scalar_lea.vmem %s4, 28
      %v582 = vld [vmem:[%s581] sm:$0xf]
      %583 = vrot.lane.b32.xlu0 %v374, 107
      %v584 = vpop.permute.xlu0 %583
      %v586 = vsel %vm301, %v582, 0
      %v588 = vsel %vm305, %v584, 0
      %590 = vmatpush.msra.mxu0 0.0
      %591 = vmatpush.msra.mxu0 0.0
      %592 = vmatpush.msra.mxu0 0.0
      %593 = vmatpush.msra.mxu0 0.0
      %594 = vmatpush.msra.mxu0 0.0
      %595 = vmatpush.msra.mxu0 0.0
      %596 = vmatpush.msra.mxu0 0.0
      %597 = vmatpush.msra.mxu0 0.0
      %598 = vmatpush.msra.mxu0 0.0
      %599 = vmatpush.msra.mxu0 0.0
      %600 = vmatpush.msra.mxu0 0.0
      %601 = vmatpush.msra.mxu0 0.0
      %602 = vmatpush.msra.mxu0 0.0
      %603 = vmatpush.msra.mxu0 0.0
      %604 = vmatpush.msra.mxu0 0.0
      %605 = vmatpush.msra.mxu0 %v588
      %606 = vmatmul.f32.gmra.mxu0 %v586
      %v607 = vpop.f32.mrf.mxu0
      %v608 = vadd.f32 0.0, %v607
      %609 = vdwg.mxu0
      %v610 = vadd.f32 %v580, %v608
      %s611 = scalar_lea.vmem %s4, 32
      %v612 = vld [vmem:[%s611] sm:$0xf]
      %613 = vrot.lane.b32.xlu0 %v374, 106
      %v614 = vpop.permute.xlu0 %613
      %v616 = vsel %vm301, %v612, 0
      %v618 = vsel %vm305, %v614, 0
      %620 = vmatpush.msra.mxu0 0.0
      %621 = vmatpush.msra.mxu0 0.0
      %622 = vmatpush.msra.mxu0 0.0
      %623 = vmatpush.msra.mxu0 0.0
      %624 = vmatpush.msra.mxu0 0.0
      %625 = vmatpush.msra.mxu0 0.0
      %626 = vmatpush.msra.mxu0 0.0
      %627 = vmatpush.msra.mxu0 0.0
      %628 = vmatpush.msra.mxu0 0.0
      %629 = vmatpush.msra.mxu0 0.0
      %630 = vmatpush.msra.mxu0 0.0
      %631 = vmatpush.msra.mxu0 0.0
      %632 = vmatpush.msra.mxu0 0.0
      %633 = vmatpush.msra.mxu0 0.0
      %634 = vmatpush.msra.mxu0 0.0
      %635 = vmatpush.msra.mxu0 %v618
      %636 = vmatmul.f32.gmra.mxu0 %v616
      %v637 = vpop.f32.mrf.mxu0
      %v638 = vadd.f32 0.0, %v637
      %639 = vdwg.mxu0
      %v640 = vadd.f32 %v610, %v638
      %v641 = vld [vmem:[%s5] sm:$0xf]
      %643 = vset.pattern.permute.xlu0 0
      %644 = vperm.xlu0 %643, %v641
      %v645 = vpop.permute.xlu0 %644
      %v647 = vadd.f32 %v640, %v645
      %v648 = vmul.f32 %v647, 0.2
      %v649 = vmax.f32 %v647, %v648
      %v650 = vmul.f32 %v649, %v365
      %652 = vrot.lane.b32.xlu0 %v650, 11
      %v653 = vpop.permute.xlu0 %652
      %655 = vst.msk [vmem:[#allocation2] sm:$0xf] %vm372, %v653
      %v656 = vld [vmem:[#allocation2] sm:$0xf]
      %s657 = scalar_lea.vmem %s4, 36
      %v658 = vld [vmem:[%s657] sm:$0xf]
      %s659 = scalar_lea.vmem %s4, 40
      %v660 = vld [vmem:[%s659] sm:$0xf]
      %662 = vrot.lane.b32.xlu0 %v656, 127
      %v663 = vpop.permute.xlu0 %662
      %v665 = vsel %vm301, %v660, 0
      %v667 = vsel %vm305, %v663, 0
      %669 = vmatpush.msra.mxu0 0.0
      %670 = vmatpush.msra.mxu0 0.0
      %671 = vmatpush.msra.mxu0 0.0
      %672 = vmatpush.msra.mxu0 0.0
      %673 = vmatpush.msra.mxu0 0.0
      %674 = vmatpush.msra.mxu0 0.0
      %675 = vmatpush.msra.mxu0 0.0
      %676 = vmatpush.msra.mxu0 0.0
      %677 = vmatpush.msra.mxu0 0.0
      %678 = vmatpush.msra.mxu0 0.0
      %679 = vmatpush.msra.mxu0 0.0
      %680 = vmatpush.msra.mxu0 0.0
      %681 = vmatpush.msra.mxu0 0.0
      %682 = vmatpush.msra.mxu0 0.0
      %683 = vmatpush.msra.mxu0 0.0
      %684 = vmatpush.msra.mxu0 %v667
      %685 = vmatmul.f32.gmra.mxu0 %v665
      %v686 = vpop.f32.mrf.mxu0
      %v687 = vadd.f32 0.0, %v686
      %688 = vdwg.mxu0
      %v690 = vsel %vm301, %v658, 0
      %v692 = vsel %vm305, %v656, 0
      %694 = vmatpush.msra.mxu0 0.0
      %695 = vmatpush.msra.mxu0 0.0
      %696 = vmatpush.msra.mxu0 0.0
      %697 = vmatpush.msra.mxu0 0.0
      %698 = vmatpush.msra.mxu0 0.0
      %699 = vmatpush.msra.mxu0 0.0
      %700 = vmatpush.msra.mxu0 0.0
      %701 = vmatpush.msra.mxu0 0.0
      %702 = vmatpush.msra.mxu0 0.0
      %703 = vmatpush.msra.mxu0 0.0
      %704 = vmatpush.msra.mxu0 0.0
      %705 = vmatpush.msra.mxu0 0.0
      %706 = vmatpush.msra.mxu0 0.0
      %707 = vmatpush.msra.mxu0 0.0
      %708 = vmatpush.msra.mxu0 0.0
      %709 = vmatpush.msra.mxu0 %v692
      %710 = vmatmul.f32.gmra.mxu0 %v690
      %v711 = vpop.f32.mrf.mxu0
      %v712 = vadd.f32 %v687, %v711
      %713 = vdwg.mxu0
      %s714 = scalar_lea.vmem %s4, 44
      %v715 = vld [vmem:[%s714] sm:$0xf]
      %716 = vrot.lane.b32.xlu0 %v656, 126
      %v717 = vpop.permute.xlu0 %716
      %v719 = vsel %vm301, %v715, 0
      %v721 = vsel %vm305, %v717, 0
      %723 = vmatpush.msra.mxu0 0.0
      %724 = vmatpush.msra.mxu0 0.0
      %725 = vmatpush.msra.mxu0 0.0
      %726 = vmatpush.msra.mxu0 0.0
      %727 = vmatpush.msra.mxu0 0.0
      %728 = vmatpush.msra.mxu0 0.0
      %729 = vmatpush.msra.mxu0 0.0
      %730 = vmatpush.msra.mxu0 0.0
      %731 = vmatpush.msra.mxu0 0.0
      %732 = vmatpush.msra.mxu0 0.0
      %733 = vmatpush.msra.mxu0 0.0
      %734 = vmatpush.msra.mxu0 0.0
      %735 = vmatpush.msra.mxu0 0.0
      %736 = vmatpush.msra.mxu0 0.0
      %737 = vmatpush.msra.mxu0 0.0
      %738 = vmatpush.msra.mxu0 %v721
      %739 = vmatmul.f32.gmra.mxu0 %v719
      %v740 = vpop.f32.mrf.mxu0
      %v741 = vadd.f32 0.0, %v740
      %742 = vdwg.mxu0
      %v743 = vadd.f32 %v712, %v741
      %s744 = scalar_lea.vmem %s4, 48
      %v745 = vld [vmem:[%s744] sm:$0xf]
      %746 = vrot.lane.b32.xlu0 %v656, 118
      %v747 = vpop.permute.xlu0 %746
      %v749 = vsel %vm301, %v745, 0
      %v751 = vsel %vm305, %v747, 0
      %753 = vmatpush.msra.mxu0 0.0
      %754 = vmatpush.msra.mxu0 0.0
      %755 = vmatpush.msra.mxu0 0.0
      %756 = vmatpush.msra.mxu0 0.0
      %757 = vmatpush.msra.mxu0 0.0
      %758 = vmatpush.msra.mxu0 0.0
      %759 = vmatpush.msra.mxu0 0.0
      %760 = vmatpush.msra.mxu0 0.0
      %761 = vmatpush.msra.mxu0 0.0
      %762 = vmatpush.msra.mxu0 0.0
      %763 = vmatpush.msra.mxu0 0.0
      %764 = vmatpush.msra.mxu0 0.0
      %765 = vmatpush.msra.mxu0 0.0
      %766 = vmatpush.msra.mxu0 0.0
      %767 = vmatpush.msra.mxu0 0.0
      %768 = vmatpush.msra.mxu0 %v751
      %769 = vmatmul.f32.gmra.mxu0 %v749
      %v770 = vpop.f32.mrf.mxu0
      %v771 = vadd.f32 0.0, %v770
      %772 = vdwg.mxu0
      %v773 = vadd.f32 %v743, %v771
      %s774 = scalar_lea.vmem %s4, 52
      %v775 = vld [vmem:[%s774] sm:$0xf]
      %776 = vrot.lane.b32.xlu0 %v656, 117
      %v777 = vpop.permute.xlu0 %776
      %v779 = vsel %vm301, %v775, 0
      %v781 = vsel %vm305, %v777, 0
      %783 = vmatpush.msra.mxu0 0.0
      %784 = vmatpush.msra.mxu0 0.0
      %785 = vmatpush.msra.mxu0 0.0
      %786 = vmatpush.msra.mxu0 0.0
      %787 = vmatpush.msra.mxu0 0.0
      %788 = vmatpush.msra.mxu0 0.0
      %789 = vmatpush.msra.mxu0 0.0
      %790 = vmatpush.msra.mxu0 0.0
      %791 = vmatpush.msra.mxu0 0.0
      %792 = vmatpush.msra.mxu0 0.0
      %793 = vmatpush.msra.mxu0 0.0
      %794 = vmatpush.msra.mxu0 0.0
      %795 = vmatpush.msra.mxu0 0.0
      %796 = vmatpush.msra.mxu0 0.0
      %797 = vmatpush.msra.mxu0 0.0
      %798 = vmatpush.msra.mxu0 %v781
      %799 = vmatmul.f32.gmra.mxu0 %v779
      %v800 = vpop.f32.mrf.mxu0
      %v801 = vadd.f32 0.0, %v800
      %802 = vdwg.mxu0
      %v803 = vadd.f32 %v773, %v801
      %s804 = scalar_lea.vmem %s4, 56
      %v805 = vld [vmem:[%s804] sm:$0xf]
      %806 = vrot.lane.b32.xlu0 %v656, 116
      %v807 = vpop.permute.xlu0 %806
      %v809 = vsel %vm301, %v805, 0
      %v811 = vsel %vm305, %v807, 0
      %813 = vmatpush.msra.mxu0 0.0
      %814 = vmatpush.msra.mxu0 0.0
      %815 = vmatpush.msra.mxu0 0.0
      %816 = vmatpush.msra.mxu0 0.0
      %817 = vmatpush.msra.mxu0 0.0
      %818 = vmatpush.msra.mxu0 0.0
      %819 = vmatpush.msra.mxu0 0.0
      %820 = vmatpush.msra.mxu0 0.0
      %821 = vmatpush.msra.mxu0 0.0
      %822 = vmatpush.msra.mxu0 0.0
      %823 = vmatpush.msra.mxu0 0.0
      %824 = vmatpush.msra.mxu0 0.0
      %825 = vmatpush.msra.mxu0 0.0
      %826 = vmatpush.msra.mxu0 0.0
      %827 = vmatpush.msra.mxu0 0.0
      %828 = vmatpush.msra.mxu0 %v811
      %829 = vmatmul.f32.gmra.mxu0 %v809
      %v830 = vpop.f32.mrf.mxu0
      %v831 = vadd.f32 0.0, %v830
      %832 = vdwg.mxu0
      %v833 = vadd.f32 %v803, %v831
      %s834 = scalar_lea.vmem %s4, 60
      %v835 = vld [vmem:[%s834] sm:$0xf]
      %836 = vrot.lane.b32.xlu0 %v656, 108
      %v837 = vpop.permute.xlu0 %836
      %v839 = vsel %vm301, %v835, 0
      %v841 = vsel %vm305, %v837, 0
      %843 = vmatpush.msra.mxu0 0.0
      %844 = vmatpush.msra.mxu0 0.0
      %845 = vmatpush.msra.mxu0 0.0
      %846 = vmatpush.msra.mxu0 0.0
      %847 = vmatpush.msra.mxu0 0.0
      %848 = vmatpush.msra.mxu0 0.0
      %849 = vmatpush.msra.mxu0 0.0
      %850 = vmatpush.msra.mxu0 0.0
      %851 = vmatpush.msra.mxu0 0.0
      %852 = vmatpush.msra.mxu0 0.0
      %853 = vmatpush.msra.mxu0 0.0
      %854 = vmatpush.msra.mxu0 0.0
      %855 = vmatpush.msra.mxu0 0.0
      %856 = vmatpush.msra.mxu0 0.0
      %857 = vmatpush.msra.mxu0 0.0
      %858 = vmatpush.msra.mxu0 %v841
      %859 = vmatmul.f32.gmra.mxu0 %v839
      %v860 = vpop.f32.mrf.mxu0
      %v861 = vadd.f32 0.0, %v860
      %862 = vdwg.mxu0
      %v863 = vadd.f32 %v833, %v861
      %s864 = scalar_lea.vmem %s4, 64
      %v865 = vld [vmem:[%s864] sm:$0xf]
      %866 = vrot.lane.b32.xlu0 %v656, 107
      %v867 = vpop.permute.xlu0 %866
      %v869 = vsel %vm301, %v865, 0
      %v871 = vsel %vm305, %v867, 0
      %873 = vmatpush.msra.mxu0 0.0
      %874 = vmatpush.msra.mxu0 0.0
      %875 = vmatpush.msra.mxu0 0.0
      %876 = vmatpush.msra.mxu0 0.0
      %877 = vmatpush.msra.mxu0 0.0
      %878 = vmatpush.msra.mxu0 0.0
      %879 = vmatpush.msra.mxu0 0.0
      %880 = vmatpush.msra.mxu0 0.0
      %881 = vmatpush.msra.mxu0 0.0
      %882 = vmatpush.msra.mxu0 0.0
      %883 = vmatpush.msra.mxu0 0.0
      %884 = vmatpush.msra.mxu0 0.0
      %885 = vmatpush.msra.mxu0 0.0
      %886 = vmatpush.msra.mxu0 0.0
      %887 = vmatpush.msra.mxu0 0.0
      %888 = vmatpush.msra.mxu0 %v871
      %889 = vmatmul.f32.gmra.mxu0 %v869
      %v890 = vpop.f32.mrf.mxu0
      %v891 = vadd.f32 0.0, %v890
      %892 = vdwg.mxu0
      %v893 = vadd.f32 %v863, %v891
      %s894 = scalar_lea.vmem %s4, 68
      %v895 = vld [vmem:[%s894] sm:$0xf]
      %896 = vrot.lane.b32.xlu0 %v656, 106
      %v897 = vpop.permute.xlu0 %896
      %v899 = vsel %vm301, %v895, 0
      %v901 = vsel %vm305, %v897, 0
      %903 = vmatpush.msra.mxu0 0.0
      %904 = vmatpush.msra.mxu0 0.0
      %905 = vmatpush.msra.mxu0 0.0
      %906 = vmatpush.msra.mxu0 0.0
      %907 = vmatpush.msra.mxu0 0.0
      %908 = vmatpush.msra.mxu0 0.0
      %909 = vmatpush.msra.mxu0 0.0
      %910 = vmatpush.msra.mxu0 0.0
      %911 = vmatpush.msra.mxu0 0.0
      %912 = vmatpush.msra.mxu0 0.0
      %913 = vmatpush.msra.mxu0 0.0
      %914 = vmatpush.msra.mxu0 0.0
      %915 = vmatpush.msra.mxu0 0.0
      %916 = vmatpush.msra.mxu0 0.0
      %917 = vmatpush.msra.mxu0 0.0
      %918 = vmatpush.msra.mxu0 %v901
      %919 = vmatmul.f32.gmra.mxu0 %v899
      %v920 = vpop.f32.mrf.mxu0
      %v921 = vadd.f32 0.0, %v920
      %922 = vdwg.mxu0
      %v923 = vadd.f32 %v893, %v921
      %s924 = scalar_lea.vmem %s5, 4
      %v925 = vld [vmem:[%s924] sm:$0xf]
      %927 = vset.pattern.permute.xlu0 0
      %928 = vperm.xlu0 %927, %v925
      %v929 = vpop.permute.xlu0 %928
      %v931 = vadd.f32 %v923, %v929
      %v932 = vmul.f32 %v931, 0.2
      %v933 = vmax.f32 %v931, %v932
      %vm934 = vcmask 814080
      %935 = vst.msk [vmem:[%s290] sm:$0xf] %vm934, %v933
      %p936 = scmp.lt.s32.totalorder %s18, 1
      %s937 = scalar_select %p936, %s18, 1
      %s938 = smul.addr %s937, 4
      %s939 = scalar_lea.vmem %s7, %s938
      // Predicated region
      $region49: #{_lambda_.5} parent=47 // pred_check
        %p940 = pneg %p193
      $region50: #{_lambda_.5} parent=47 // pred_check_branch
        %942 = sbr.rel (%p940) target = $region52
      $region51: #{_lambda_.5} parent=47 // pred_region
        _
      $region52: #{_lambda_.5} parent=47 // pred_fallthru
        _
    $region48: #{_lambda_.5} parent=5 // pred_fallthru
      _
    %p943 = scmp.le.s32.totalorder 2, %s13
    // Predicated region
    $region53: #{_lambda_.5} parent=5 // pred_check
      %p944 = pneg %p943
    $region54: #{_lambda_.5} parent=5 // pred_check_branch
      %946 = sbr.rel (%p944) target = $region56
    $region55: #{_lambda_.5} parent=5 // pred_region
      %s947 = ssub.s32 %s13, 2
      // Predicated region
      $region57: #{_lambda_.5} parent=55 // pred_check
        %p948 = pneg %p199
      $region58: #{_lambda_.5} parent=55 // pred_check_branch
        %950 = sbr.rel (%p948) target = $region60
      $region59: #{_lambda_.5} parent=55 // pred_region
        %p951 = scmp.lt.s32.totalorder %s19, 1
        %s952 = scalar_select %p951, %s19, 1
        %s953 = smul.addr %s952, 4
        %s954 = scalar_lea.vmem %s7, %s953
      $region60: #{_lambda_.5} parent=55 // pred_fallthru
        _
    $region56: #{_lambda_.5} parent=5 // pred_fallthru
      _
  $region6: #{_lambda_.5} parent=0 // loop_footer
    %s17 = sadd.s32 1, %s13
  $region7: #{_lambda_.5} parent=0 // loop_footer_branch
    %12 = sbr.rel target = $region3
  $region8: #{_lambda_.5} parent=0 // loop_exit
    _

// kernel: _lambda_.7
$region0: #{_lambda_.7}
  #allocation0 [shape = 'u32[]', space=smem, size = 0x4, offset = 0x4, fixed_abs, tag = 'smem constant byte address 0x4 - core index']
  #allocation1 [shape = 'u32[72,128]{1,0:T(1,128)}', space=vmem, size = 0x9000, scoped, tag = 'internal scratch']
  %s0 = inlined_call_operand.vmem [shape: f32[2,4,256], index: 0, kind: input, shape index: {}]
  %s1 = inlined_call_operand.vmem [shape: f32[2,4,256], index: 1, kind: input, shape index: {}]
  %s2 = inlined_call_operand.vmem [shape: f32[2,4,256], index: 2, kind: input, shape index: {}]
  %s3 = inlined_call_operand.vmem [shape: f32[2,4,256], index: 3, kind: input, shape index: {}]
  %s4 = inlined_call_operand.vmem [shape: f32[3,4,4], index: 4, kind: input, shape index: {}]
  %s5 = inlined_call_operand.vmem [shape: f32[4,1], index: 5, kind: input, shape index: {}]
  %s6 = inlined_call_operand.vmem [shape: f32[2,4,256], index: 6, kind: output, shape index: {}]
  %s7 = sld [smem:[#allocation0]]
  $region57: #{_lambda_.7} parent=0
    _
  %s9 = ssub.s32 1, %s7
  %s10 = scalar_select 0, %s9, %s7
  loop: start=0, step=1, limit=4
  $region2: #{_lambda_.7} parent=0 // loop_pre_header
    _
  $region3: #{_lambda_.7} parent=0 // loop_header
    %s12 = sphi 0, %s16
    %p13 = scmp.ge.s32.totalorder %s12, 4
    %s19 = sphi 0, %s31
    %s20 = sphi 0, %s27
    %s21 = sphi 0, %s19
    %s22 = sphi 0, %s20
    %s23 = sphi 0, %s21
    %s24 = sphi 0, %s22
    %s36 = sphi 0, %s38
    %s39 = sphi 0, %s36
    %s40 = sphi 0, %s39
    %s56 = sphi 0, %s40
    %s64 = sphi 0, %s66
    %s67 = sphi 0, %s64
    %s68 = sphi 0, %s67
    %s84 = sphi 0, %s68
    %s92 = sphi 0, %s94
    %s95 = sphi 0, %s92
    %s96 = sphi 0, %s95
    %s112 = sphi 0, %s96
    %s120 = sphi 0, %s122
    %s123 = sphi 0, %s120
    %s124 = sphi 0, %s123
    %s140 = sphi 0, %s124
    %s144 = sphi 0, %s144
    %s146 = sphi 0, %s144
    %s147 = sphi 0, %s146
    %s161 = sphi 0, %s147
    %s165 = sphi 0, %s165
    %s167 = sphi 0, %s165
    %s168 = sphi 0, %s167
    %s182 = sphi 0, %s168
    %s190 = sphi 0, %s192
    %s193 = sphi 0, %s190
    %s194 = sphi 0, %s193
    %s210 = sphi 0, %s194
  $region4: #{_lambda_.7} parent=0 // loop_header_branch
    %15 = sbr.rel (%p13) target = $region8
  $region5: #{_lambda_.7} parent=0 // loop_body
    %s17 = ssub.s32 %s12, 1
    %s18 = ssub.s32 %s12, 2
    %s25 = sadd.s32 1, %s20
    %p26 = scmp.ge.s32.totalorder %s25, 1
    %s27 = scalar_select %p26, 0, %s25
    %s28 = sadd.s32 1, %s19
    %s29 = scalar_select %p26, %s28, %s19
    %p30 = scmp.ge.s32.totalorder %s29, 2
    %s31 = scalar_select %p30, 0, %s29
    %s32 = ssub.s32 %s19, %s31
    %s33 = ssub.s32 %s20, %s27
    %s34 = sor.u32 %s32, %s33
    %p35 = scmp.eq.s32.totalorder %s34, 0
    %s37 = sadd.s32 %s36, 1
    %s38 = scalar_select %p35, %s36, %s37
    %p41 = pneg %p35
    %p42 = scmp.eq.s32.totalorder %s12, 1
    %p43 = por %p41, %p42
    %p44 = scmp.ne.s32.totalorder %s36, %s39
    %p45 = scmp.eq.s32.totalorder %s12, 0
    %p46 = por %p44, %p45
    %p47 = scmp.ne.s32.totalorder %s36, %s39
    %p48 = scmp.eq.s32.totalorder %s17, 1
    %p49 = por %p47, %p48
    %p50 = scmp.ne.s32.totalorder %s39, %s40
    %p51 = scmp.eq.s32.totalorder %s17, 0
    %p52 = por %p50, %p51
    %p53 = scmp.ne.s32.totalorder %s39, %s40
    %p54 = scmp.eq.s32.totalorder %s18, 1
    %p55 = por %p53, %p54
    %p57 = scmp.ne.s32.totalorder %s40, %s56
    %p58 = scmp.eq.s32.totalorder %s18, 0
    %p59 = por %p57, %p58
    %s60 = ssub.s32 %s19, %s31
    %s61 = ssub.s32 %s20, %s27
    %s62 = sor.u32 %s60, %s61
    %p63 = scmp.eq.s32.totalorder %s62, 0
    %s65 = sadd.s32 %s64, 1
    %s66 = scalar_select %p63, %s64, %s65
    %p69 = pneg %p63
    %p70 = scmp.eq.s32.totalorder %s12, 1
    %p71 = por %p69, %p70
    %p72 = scmp.ne.s32.totalorder %s64, %s67
    %p73 = scmp.eq.s32.totalorder %s12, 0
    %p74 = por %p72, %p73
    %p75 = scmp.ne.s32.totalorder %s64, %s67
    %p76 = scmp.eq.s32.totalorder %s17, 1
    %p77 = por %p75, %p76
    %p78 = scmp.ne.s32.totalorder %s67, %s68
    %p79 = scmp.eq.s32.totalorder %s17, 0
    %p80 = por %p78, %p79
    %p81 = scmp.ne.s32.totalorder %s67, %s68
    %p82 = scmp.eq.s32.totalorder %s18, 1
    %p83 = por %p81, %p82
    %p85 = scmp.ne.s32.totalorder %s68, %s84
    %p86 = scmp.eq.s32.totalorder %s18, 0
    %p87 = por %p85, %p86
    %s88 = ssub.s32 %s19, %s31
    %s89 = ssub.s32 %s20, %s27
    %s90 = sor.u32 %s88, %s89
    %p91 = scmp.eq.s32.totalorder %s90, 0
    %s93 = sadd.s32 %s92, 1
    %s94 = scalar_select %p91, %s92, %s93
    %p97 = pneg %p91
    %p98 = scmp.eq.s32.totalorder %s12, 1
    %p99 = por %p97, %p98
    %p100 = scmp.ne.s32.totalorder %s92, %s95
    %p101 = scmp.eq.s32.totalorder %s12, 0
    %p102 = por %p100, %p101
    %p103 = scmp.ne.s32.totalorder %s92, %s95
    %p104 = scmp.eq.s32.totalorder %s17, 1
    %p105 = por %p103, %p104
    %p106 = scmp.ne.s32.totalorder %s95, %s96
    %p107 = scmp.eq.s32.totalorder %s17, 0
    %p108 = por %p106, %p107
    %p109 = scmp.ne.s32.totalorder %s95, %s96
    %p110 = scmp.eq.s32.totalorder %s18, 1
    %p111 = por %p109, %p110
    %p113 = scmp.ne.s32.totalorder %s96, %s112
    %p114 = scmp.eq.s32.totalorder %s18, 0
    %p115 = por %p113, %p114
    %s116 = ssub.s32 %s19, %s31
    %s117 = ssub.s32 %s20, %s27
    %s118 = sor.u32 %s116, %s117
    %p119 = scmp.eq.s32.totalorder %s118, 0
    %s121 = sadd.s32 %s120, 1
    %s122 = scalar_select %p119, %s120, %s121
    %p125 = pneg %p119
    %p126 = scmp.eq.s32.totalorder %s12, 1
    %p127 = por %p125, %p126
    %p128 = scmp.ne.s32.totalorder %s120, %s123
    %p129 = scmp.eq.s32.totalorder %s12, 0
    %p130 = por %p128, %p129
    %p131 = scmp.ne.s32.totalorder %s120, %s123
    %p132 = scmp.eq.s32.totalorder %s17, 1
    %p133 = por %p131, %p132
    %p134 = scmp.ne.s32.totalorder %s123, %s124
    %p135 = scmp.eq.s32.totalorder %s17, 0
    %p136 = por %p134, %p135
    %p137 = scmp.ne.s32.totalorder %s123, %s124
    %p138 = scmp.eq.s32.totalorder %s18, 1
    %p139 = por %p137, %p138
    %p141 = scmp.ne.s32.totalorder %s124, %s140
    %p142 = scmp.eq.s32.totalorder %s18, 0
    %p143 = por %p141, %p142
    %s145 = sadd.s32 %s144, 1
    %p148 = scmp.eq.s32.totalorder %s12, 1
    %p149 = scmp.ne.s32.totalorder %s144, %s146
    %p150 = scmp.eq.s32.totalorder %s12, 0
    %p151 = por %p149, %p150
    %p152 = scmp.ne.s32.totalorder %s144, %s146
    %p153 = scmp.eq.s32.totalorder %s17, 1
    %p154 = por %p152, %p153
    %p155 = scmp.ne.s32.totalorder %s146, %s147
    %p156 = scmp.eq.s32.totalorder %s17, 0
    %p157 = por %p155, %p156
    %p158 = scmp.ne.s32.totalorder %s146, %s147
    %p159 = scmp.eq.s32.totalorder %s18, 1
    %p160 = por %p158, %p159
    %p162 = scmp.ne.s32.totalorder %s147, %s161
    %p163 = scmp.eq.s32.totalorder %s18, 0
    %p164 = por %p162, %p163
    %s166 = sadd.s32 %s165, 1
    %p169 = scmp.eq.s32.totalorder %s12, 1
    %p170 = scmp.ne.s32.totalorder %s165, %s167
    %p171 = scmp.eq.s32.totalorder %s12, 0
    %p172 = por %p170, %p171
    %p173 = scmp.ne.s32.totalorder %s165, %s167
    %p174 = scmp.eq.s32.totalorder %s17, 1
    %p175 = por %p173, %p174
    %p176 = scmp.ne.s32.totalorder %s167, %s168
    %p177 = scmp.eq.s32.totalorder %s17, 0
    %p178 = por %p176, %p177
    %p179 = scmp.ne.s32.totalorder %s167, %s168
    %p180 = scmp.eq.s32.totalorder %s18, 1
    %p181 = por %p179, %p180
    %p183 = scmp.ne.s32.totalorder %s168, %s182
    %p184 = scmp.eq.s32.totalorder %s18, 0
    %p185 = por %p183, %p184
    %s186 = ssub.s32 %s19, %s31
    %s187 = ssub.s32 %s20, %s27
    %s188 = sor.u32 %s186, %s187
    %p189 = scmp.eq.s32.totalorder %s188, 0
    %s191 = sadd.s32 %s190, 1
    %s192 = scalar_select %p189, %s190, %s191
    %p195 = pneg %p189
    %p196 = scmp.eq.s32.totalorder %s12, 1
    %p197 = por %p195, %p196
    %p198 = scmp.ne.s32.totalorder %s190, %s193
    %p199 = scmp.eq.s32.totalorder %s12, 0
    %p200 = por %p198, %p199
    %p201 = scmp.ne.s32.totalorder %s190, %s193
    %p202 = scmp.eq.s32.totalorder %s17, 1
    %p203 = por %p201, %p202
    %p204 = scmp.ne.s32.totalorder %s193, %s194
    %p205 = scmp.eq.s32.totalorder %s17, 0
    %p206 = por %p204, %p205
    %p207 = scmp.ne.s32.totalorder %s193, %s194
    %p208 = scmp.eq.s32.totalorder %s18, 1
    %p209 = por %p207, %p208
    %p211 = scmp.ne.s32.totalorder %s194, %s210
    %p212 = scmp.eq.s32.totalorder %s18, 0
    %p213 = por %p211, %p212
    %p214 = scmp.le.s32.totalorder 1, %s12
    %p215 = scmp.lt.s32.totalorder %s12, 3
    %p216 = pnand %p214, %p215
    %p217 = pneg %p216
    // Predicated region
    $region9: #{_lambda_.7} parent=5 // pred_check
      _
    $region10: #{_lambda_.7} parent=5 // pred_check_branch
      %219 = sbr.rel (%p216) target = $region12
    $region11: #{_lambda_.7} parent=5 // pred_region
      %s220 = ssub.s32 %s12, 1
      // Predicated region
      $region13: #{_lambda_.7} parent=11 // pred_check
        %p221 = pneg %p157
      $region14: #{_lambda_.7} parent=11 // pred_check_branch
        %223 = sbr.rel (%p221) target = $region16
      $region15: #{_lambda_.7} parent=11 // pred_region
        _
      $region16: #{_lambda_.7} parent=11 // pred_fallthru
        _
      // Predicated region
      $region17: #{_lambda_.7} parent=11 // pred_check
        %p224 = pneg %p178
      $region18: #{_lambda_.7} parent=11 // pred_check_branch
        %226 = sbr.rel (%p224) target = $region20
      $region19: #{_lambda_.7} parent=11 // pred_region
        _
      $region20: #{_lambda_.7} parent=11 // pred_fallthru
        _
    $region12: #{_lambda_.7} parent=5 // pred_fallthru
      _
    %p227 = scmp.lt.s32.totalorder %s12, 2
    // Predicated region
    $region21: #{_lambda_.7} parent=5 // pred_check
      %p228 = pneg %p227
    $region22: #{_lambda_.7} parent=5 // pred_check_branch
      %230 = sbr.rel (%p228) target = $region24
    $region23: #{_lambda_.7} parent=5 // pred_region
      // Predicated region
      $region25: #{_lambda_.7} parent=23 // pred_check
        %p231 = pneg %p46
      $region26: #{_lambda_.7} parent=23 // pred_check_branch
        %233 = sbr.rel (%p231) target = $region28
      $region27: #{_lambda_.7} parent=23 // pred_region
        %s234 = smul.u32 2, %s20
        %p235 = scmp.lt.s32.totalorder %s19, 1
        %s236 = scalar_select %p235, %s19, 1
        %p237 = scmp.lt.s32.totalorder %s234, 1
        %s238 = scalar_select %p237, %s234, 1
        %s239 = smul.addr %s236, 2
        %s240 = sadd.s32 %s238, %s239
        %s241 = smul.addr %s240, 4
        %s242 = scalar_lea.vmem %s0, %s241
        %s243 = smul.u32 2, %s20
      $region28: #{_lambda_.7} parent=23 // pred_fallthru
        _
      // Predicated region
      $region29: #{_lambda_.7} parent=23 // pred_check
        %p244 = pneg %p74
      $region30: #{_lambda_.7} parent=23 // pred_check_branch
        %246 = sbr.rel (%p244) target = $region32
      $region31: #{_lambda_.7} parent=23 // pred_region
        %s247 = smul.u32 2, %s20
        %p248 = scmp.lt.s32.totalorder %s19, 1
        %s249 = scalar_select %p248, %s19, 1
        %p250 = scmp.lt.s32.totalorder %s247, 1
        %s251 = scalar_select %p250, %s247, 1
        %s252 = smul.addr %s249, 2
        %s253 = sadd.s32 %s251, %s252
        %s254 = smul.addr %s253, 4
        %s255 = scalar_lea.vmem %s1, %s254
        %s256 = smul.u32 2, %s20
      $region32: #{_lambda_.7} parent=23 // pred_fallthru
        _
      // Predicated region
      $region33: #{_lambda_.7} parent=23 // pred_check
        %p257 = pneg %p102
      $region34: #{_lambda_.7} parent=23 // pred_check_branch
        %259 = sbr.rel (%p257) target = $region36
      $region35: #{_lambda_.7} parent=23 // pred_region
        %s260 = smul.u32 2, %s20
        %p261 = scmp.lt.s32.totalorder %s19, 1
        %s262 = scalar_select %p261, %s19, 1
        %p263 = scmp.lt.s32.totalorder %s260, 1
        %s264 = scalar_select %p263, %s260, 1
        %s265 = smul.addr %s262, 2
        %s266 = sadd.s32 %s264, %s265
        %s267 = smul.addr %s266, 4
        %s268 = scalar_lea.vmem %s2, %s267
        %s269 = smul.u32 2, %s20
      $region36: #{_lambda_.7} parent=23 // pred_fallthru
        _
      // Predicated region
      $region37: #{_lambda_.7} parent=23 // pred_check
        %p270 = pneg %p130
      $region38: #{_lambda_.7} parent=23 // pred_check_branch
        %272 = sbr.rel (%p270) target = $region40
      $region39: #{_lambda_.7} parent=23 // pred_region
        %s273 = smul.u32 2, %s20
        %p274 = scmp.lt.s32.totalorder %s19, 1
        %s275 = scalar_select %p274, %s19, 1
        %p276 = scmp.lt.s32.totalorder %s273, 1
        %s277 = scalar_select %p276, %s273, 1
        %s278 = smul.addr %s275, 2
        %s279 = sadd.s32 %s277, %s278
        %s280 = smul.addr %s279, 4
        %s281 = scalar_lea.vmem %s3, %s280
        %s282 = smul.u32 2, %s20
      $region40: #{_lambda_.7} parent=23 // pred_fallthru
        _
    $region24: #{_lambda_.7} parent=5 // pred_fallthru
      _
    %p283 = scmp.le.s32.totalorder 1, %s12
    %p284 = scmp.lt.s32.totalorder %s12, 3
    %p285 = pnand %p283, %p284
    %p286 = pneg %p285
    // Predicated region
    $region41: #{_lambda_.7} parent=5 // pred_check
      _
    $region42: #{_lambda_.7} parent=5 // pred_check_branch
      %288 = sbr.rel (%p285) target = $region44
    $region43: #{_lambda_.7} parent=5 // pred_region
      %s289 = ssub.s32 %s12, 1
      %s290 = smul.u32 2, %s22
      %p291 = scmp.lt.s32.totalorder %s21, 1
      %s292 = scalar_select %p291, %s21, 1
      %p293 = scmp.lt.s32.totalorder %s290, 1
      %s294 = scalar_select %p293, %s290, 1
      %s295 = smul.addr %s292, 2
      %s296 = sadd.s32 %s294, %s295
      %s297 = smul.addr %s296, 4
      %s298 = scalar_lea.vmem %s0, %s297
      %p299 = pneg %p52
      %p300 = pneg %p49
      %s301 = smul.u32 2, %s22
      %p302 = scmp.lt.s32.totalorder %s21, 1
      %s303 = scalar_select %p302, %s21, 1
      %p304 = scmp.lt.s32.totalorder %s301, 1
      %s305 = scalar_select %p304, %s301, 1
      %s306 = smul.addr %s303, 2
      %s307 = sadd.s32 %s305, %s306
      %s308 = smul.addr %s307, 4
      %s309 = scalar_lea.vmem %s1, %s308
      %p310 = pneg %p80
      %p311 = pneg %p77
      %s312 = smul.u32 2, %s22
      %p313 = scmp.lt.s32.totalorder %s21, 1
      %s314 = scalar_select %p313, %s21, 1
      %p315 = scmp.lt.s32.totalorder %s312, 1
      %s316 = scalar_select %p315, %s312, 1
      %s317 = smul.addr %s314, 2
      %s318 = sadd.s32 %s316, %s317
      %s319 = smul.addr %s318, 4
      %s320 = scalar_lea.vmem %s2, %s319
      %p321 = pneg %p108
      %p322 = pneg %p105
      %s323 = smul.u32 2, %s22
      %p324 = scmp.lt.s32.totalorder %s21, 1
      %s325 = scalar_select %p324, %s21, 1
      %p326 = scmp.lt.s32.totalorder %s323, 1
      %s327 = scalar_select %p326, %s323, 1
      %s328 = smul.addr %s325, 2
      %s329 = sadd.s32 %s327, %s328
      %s330 = smul.addr %s329, 4
      %s331 = scalar_lea.vmem %s3, %s330
      %p332 = pneg %p136
      %p333 = pneg %p133
      %p334 = pneg %p157
      %p335 = pneg %p154
      %p336 = pneg %p178
      %p337 = pneg %p175
      %p338 = pneg %p206
      %p339 = pneg %p203
      %s340 = smul.u32 2, %s22
      %p341 = scmp.lt.s32.totalorder %s21, 1
      %s342 = scalar_select %p341, %s21, 1
      %p343 = scmp.lt.s32.totalorder %s340, 1
      %s344 = scalar_select %p343, %s340, 1
      %s345 = smul.addr %s342, 2
      %s346 = sadd.s32 %s344, %s345
      %s347 = smul.addr %s346, 4
      %s348 = scalar_lea.vmem %s6, %s347
      %s349 = smul.u32 2, %s22
      %p350 = scmp.lt.s32.totalorder %s21, 1
      %s351 = scalar_select %p350, %s21, 1
      %p352 = scmp.lt.s32.totalorder %s349, 1
      %s353 = scalar_select %p352, %s349, 1
      %s354 = smul.addr %s351, 2
      %s355 = sadd.s32 %s353, %s354
      %s356 = smul.addr %s355, 4
      %s357 = scalar_lea.vmem %s0, %s356
      %s358 = smul.u32 2, %s22
      %s359 = smul.u32 2, %s22
      %p360 = scmp.lt.s32.totalorder %s21, 1
      %s361 = scalar_select %p360, %s21, 1
      %p362 = scmp.lt.s32.totalorder %s359, 1
      %s363 = scalar_select %p362, %s359, 1
      %s364 = smul.addr %s361, 2
      %s365 = sadd.s32 %s363, %s364
      %s366 = smul.addr %s365, 4
      %s367 = scalar_lea.vmem %s1, %s366
      %s368 = smul.u32 2, %s22
      %s369 = smul.u32 2, %s22
      %p370 = scmp.lt.s32.totalorder %s21, 1
      %s371 = scalar_select %p370, %s21, 1
      %p372 = scmp.lt.s32.totalorder %s369, 1
      %s373 = scalar_select %p372, %s369, 1
      %s374 = smul.addr %s371, 2
      %s375 = sadd.s32 %s373, %s374
      %s376 = smul.addr %s375, 4
      %s377 = scalar_lea.vmem %s2, %s376
      %s378 = smul.u32 2, %s22
      %s379 = smul.u32 2, %s22
      %p380 = scmp.lt.s32.totalorder %s21, 1
      %s381 = scalar_select %p380, %s21, 1
      %p382 = scmp.lt.s32.totalorder %s379, 1
      %s383 = scalar_select %p382, %s379, 1
      %s384 = smul.addr %s381, 2
      %s385 = sadd.s32 %s383, %s384
      %s386 = smul.addr %s385, 4
      %s387 = scalar_lea.vmem %s3, %s386
      %s388 = smul.u32 2, %s22
      %s389 = smul.u32 2, %s22
      %p390 = scmp.lt.s32.totalorder %s21, 1
      %s391 = scalar_select %p390, %s21, 1
      %p392 = scmp.lt.s32.totalorder %s389, 1
      %s393 = scalar_select %p392, %s389, 1
      %s394 = smul.addr %s391, 2
      %s395 = sadd.s32 %s393, %s394
      %s396 = smul.addr %s395, 4
      %s397 = scalar_lea.vmem %s6, %s396
      %s398 = smul.u32 2, %s22
      %v399 = vld [vmem:[%s4] sm:$0xf]
      %v400 = vld [vmem:[%s357] sm:$0xff]
      %v401 = vld [vmem:[%s5] sm:$0xf]
      %403 = vset.pattern.permute.xlu0 0
      %404 = vperm.xlu0 %403, %v401
      %v405 = vpop.permute.xlu0 %404
      %408 = vst [vmem:[#allocation1] ss:$2 sm:$0xff] %v400
      %v409 = vld.sshfl [vmem:[#allocation1] sm:$0xff pattern:$0x75316420]
      %v410 = vld.sshfl [vmem:[#allocation1 + $0x8] sm:$0xff pattern:$0x75316420]
      %vm411 = vcmask 31744
      %v413 = vsel %vm411, %v399, 0
      %vm415 = vcmask 1043456
      %v416 = vsel %vm415, %v409, 0
      %v418 = vsel %vm415, %v410, 0
      %420 = vmatpush.msra.mxu0 0.0
      %421 = vmatpush.msra.mxu0 0.0
      %422 = vmatpush.msra.mxu0 0.0
      %423 = vmatpush.msra.mxu0 0.0
      %424 = vmatpush.msra.mxu0 0.0
      %425 = vmatpush.msra.mxu0 0.0
      %426 = vmatpush.msra.mxu0 0.0
      %427 = vmatpush.msra.mxu0 0.0
      %428 = vmatpush.msra.mxu0 0.0
      %429 = vmatpush.msra.mxu0 0.0
      %430 = vmatpush.msra.mxu0 0.0
      %431 = vmatpush.msra.mxu0 0.0
      %432 = vmatpush.msra.mxu0 0.0
      %433 = vmatpush.msra.mxu0 0.0
      %434 = vmatpush.msra.mxu0 0.0
      %435 = vmatpush.msra.mxu0 %v416
      %436 = vmatmul.f32.gmra.mxu0 %v413
      %v437 = vpop.f32.mrf.mxu0
      %v438 = vadd.f32 %v405, %v437
      %439 = vdwg.mxu0
      %440 = vmatpush.msra.mxu0 0.0
      %441 = vmatpush.msra.mxu0 0.0
      %442 = vmatpush.msra.mxu0 0.0
      %443 = vmatpush.msra.mxu0 0.0
      %444 = vmatpush.msra.mxu0 0.0
      %445 = vmatpush.msra.mxu0 0.0
      %446 = vmatpush.msra.mxu0 0.0
      %447 = vmatpush.msra.mxu0 0.0
      %448 = vmatpush.msra.mxu0 0.0
      %449 = vmatpush.msra.mxu0 0.0
      %450 = vmatpush.msra.mxu0 0.0
      %451 = vmatpush.msra.mxu0 0.0
      %452 = vmatpush.msra.mxu0 0.0
      %453 = vmatpush.msra.mxu0 0.0
      %454 = vmatpush.msra.mxu0 0.0
      %455 = vmatpush.msra.mxu0 %v418
      %456 = vmatmul.f32.gmra.mxu0 %v413
      %v457 = vpop.f32.mrf.mxu0
      %v458 = vadd.f32 %v405, %v457
      %459 = vdwg.mxu0
      %s460 = scalar_lea.vmem %s4, 4
      %v461 = vld [vmem:[%s460] sm:$0xf]
      %v462 = vld [vmem:[%s367] sm:$0xff]
      %464 = vst [vmem:[#allocation1] ss:$2 sm:$0xff] %v462
      %v465 = vld.sshfl [vmem:[#allocation1] sm:$0xff pattern:$0x75316420]
      %v466 = vld.sshfl [vmem:[#allocation1 + $0x8] sm:$0xff pattern:$0x75316420]
      %v468 = vsel %vm411, %v461, 0
      %v470 = vsel %vm415, %v465, 0
      %v472 = vsel %vm415, %v466, 0
      %474 = vmatpush.msra.mxu0 0.0
      %475 = vmatpush.msra.mxu0 0.0
      %476 = vmatpush.msra.mxu0 0.0
      %477 = vmatpush.msra.mxu0 0.0
      %478 = vmatpush.msra.mxu0 0.0
      %479 = vmatpush.msra.mxu0 0.0
      %480 = vmatpush.msra.mxu0 0.0
      %481 = vmatpush.msra.mxu0 0.0
      %482 = vmatpush.msra.mxu0 0.0
      %483 = vmatpush.msra.mxu0 0.0
      %484 = vmatpush.msra.mxu0 0.0
      %485 = vmatpush.msra.mxu0 0.0
      %486 = vmatpush.msra.mxu0 0.0
      %487 = vmatpush.msra.mxu0 0.0
      %488 = vmatpush.msra.mxu0 0.0
      %489 = vmatpush.msra.mxu0 %v470
      %490 = vmatmul.f32.gmra.mxu0 %v468
      %v491 = vpop.f32.mrf.mxu0
      %v492 = vadd.f32 0.0, %v491
      %493 = vdwg.mxu0
      %494 = vmatpush.msra.mxu0 0.0
      %495 = vmatpush.msra.mxu0 0.0
      %496 = vmatpush.msra.mxu0 0.0
      %497 = vmatpush.msra.mxu0 0.0
      %498 = vmatpush.msra.mxu0 0.0
      %499 = vmatpush.msra.mxu0 0.0
      %500 = vmatpush.msra.mxu0 0.0
      %501 = vmatpush.msra.mxu0 0.0
      %502 = vmatpush.msra.mxu0 0.0
      %503 = vmatpush.msra.mxu0 0.0
      %504 = vmatpush.msra.mxu0 0.0
      %505 = vmatpush.msra.mxu0 0.0
      %506 = vmatpush.msra.mxu0 0.0
      %507 = vmatpush.msra.mxu0 0.0
      %508 = vmatpush.msra.mxu0 0.0
      %509 = vmatpush.msra.mxu0 %v472
      %510 = vmatmul.f32.gmra.mxu0 %v468
      %v511 = vpop.f32.mrf.mxu0
      %v512 = vadd.f32 0.0, %v511
      %513 = vdwg.mxu0
      %v514 = vadd.f32 %v438, %v492
      %v515 = vadd.f32 %v458, %v512
      %s516 = scalar_lea.vmem %s4, 8
      %v517 = vld [vmem:[%s516] sm:$0xf]
      %v518 = vld [vmem:[%s377] sm:$0xff]
      %520 = vst [vmem:[#allocation1] ss:$2 sm:$0xff] %v518
      %v521 = vld.sshfl [vmem:[#allocation1] sm:$0xff pattern:$0x75316420]
      %v522 = vld.sshfl [vmem:[#allocation1 + $0x8] sm:$0xff pattern:$0x75316420]
      %v524 = vsel %vm411, %v517, 0
      %v526 = vsel %vm415, %v521, 0
      %v528 = vsel %vm415, %v522, 0
      %530 = vmatpush.msra.mxu0 0.0
      %531 = vmatpush.msra.mxu0 0.0
      %532 = vmatpush.msra.mxu0 0.0
      %533 = vmatpush.msra.mxu0 0.0
      %534 = vmatpush.msra.mxu0 0.0
      %535 = vmatpush.msra.mxu0 0.0
      %536 = vmatpush.msra.mxu0 0.0
      %537 = vmatpush.msra.mxu0 0.0
      %538 = vmatpush.msra.mxu0 0.0
      %539 = vmatpush.msra.mxu0 0.0
      %540 = vmatpush.msra.mxu0 0.0
      %541 = vmatpush.msra.mxu0 0.0
      %542 = vmatpush.msra.mxu0 0.0
      %543 = vmatpush.msra.mxu0 0.0
      %544 = vmatpush.msra.mxu0 0.0
      %545 = vmatpush.msra.mxu0 %v526
      %546 = vmatmul.f32.gmra.mxu0 %v524
      %v547 = vpop.f32.mrf.mxu0
      %v548 = vadd.f32 0.0, %v547
      %549 = vdwg.mxu0
      %550 = vmatpush.msra.mxu0 0.0
      %551 = vmatpush.msra.mxu0 0.0
      %552 = vmatpush.msra.mxu0 0.0
      %553 = vmatpush.msra.mxu0 0.0
      %554 = vmatpush.msra.mxu0 0.0
      %555 = vmatpush.msra.mxu0 0.0
      %556 = vmatpush.msra.mxu0 0.0
      %557 = vmatpush.msra.mxu0 0.0
      %558 = vmatpush.msra.mxu0 0.0
      %559 = vmatpush.msra.mxu0 0.0
      %560 = vmatpush.msra.mxu0 0.0
      %561 = vmatpush.msra.mxu0 0.0
      %562 = vmatpush.msra.mxu0 0.0
      %563 = vmatpush.msra.mxu0 0.0
      %564 = vmatpush.msra.mxu0 0.0
      %565 = vmatpush.msra.mxu0 %v528
      %566 = vmatmul.f32.gmra.mxu0 %v524
      %v567 = vpop.f32.mrf.mxu0
      %v568 = vadd.f32 0.0, %v567
      %569 = vdwg.mxu0
      %v570 = vadd.f32 %v514, %v548
      %v571 = vadd.f32 %v515, %v568
      %v572 = vmul.f32 %v570, 0.2
      %v573 = vmul.f32 %v571, 0.2
      %v574 = vmax.f32 %v570, %v572
      %v575 = vmax.f32 %v571, %v573
      %v576 = vld [vmem:[%s387] sm:$0xff]
      %578 = vst [vmem:[#allocation1] ss:$2 sm:$0xff] %v576
      %v579 = vld.sshfl [vmem:[#allocation1] sm:$0xff pattern:$0x75316420]
      %v580 = vld.sshfl [vmem:[#allocation1 + $0x8] sm:$0xff pattern:$0x75316420]
      %v583 = vadd.f32 %v574, %v579
      %v584 = vadd.f32 %v575, %v580
      %v587 = vrot.slane %v584, 4
      %v588 = vsel %vm415, %v583, %v587
      %590 = vst [vmem:[%s397] sm:$0xff] %v588
      %s591 = smul.u32 2, %s22
      %p592 = scmp.lt.s32.totalorder %s21, 1
      %s593 = scalar_select %p592, %s21, 1
      %p594 = scmp.lt.s32.totalorder %s591, 1
      %s595 = scalar_select %p594, %s591, 1
      %s596 = smul.addr %s593, 2
      %s597 = sadd.s32 %s595, %s596
      %s598 = smul.addr %s597, 4
      %s599 = scalar_lea.vmem %s6, %s598
      // Predicated region
      $region45: #{_lambda_.7} parent=43 // pred_check
        %p600 = pneg %p203
      $region46: #{_lambda_.7} parent=43 // pred_check_branch
        %602 = sbr.rel (%p600) target = $region48
      $region47: #{_lambda_.7} parent=43 // pred_region
        %s603 = smul.u32 2, %s22
      $region48: #{_lambda_.7} parent=43 // pred_fallthru
        _
    $region44: #{_lambda_.7} parent=5 // pred_fallthru
      _
    %p604 = scmp.le.s32.totalorder 2, %s12
    // Predicated region
    $region49: #{_lambda_.7} parent=5 // pred_check
      %p605 = pneg %p604
    $region50: #{_lambda_.7} parent=5 // pred_check_branch
      %607 = sbr.rel (%p605) target = $region52
    $region51: #{_lambda_.7} parent=5 // pred_region
      %s608 = ssub.s32 %s12, 2
      // Predicated region
      $region53: #{_lambda_.7} parent=51 // pred_check
        %p609 = pneg %p209
      $region54: #{_lambda_.7} parent=51 // pred_check_branch
        %611 = sbr.rel (%p609) target = $region56
      $region55: #{_lambda_.7} parent=51 // pred_region
        %s612 = smul.u32 2, %s24
        %p613 = scmp.lt.s32.totalorder %s23, 1
        %s614 = scalar_select %p613, %s23, 1
        %p615 = scmp.lt.s32.totalorder %s612, 1
        %s616 = scalar_select %p615, %s612, 1
        %s617 = smul.addr %s614, 2
        %s618 = sadd.s32 %s616, %s617
        %s619 = smul.addr %s618, 4
        %s620 = scalar_lea.vmem %s6, %s619
      $region56: #{_lambda_.7} parent=51 // pred_fallthru
        _
    $region52: #{_lambda_.7} parent=5 // pred_fallthru
      _
  $region6: #{_lambda_.7} parent=0 // loop_footer
    %s16 = sadd.s32 1, %s12
  $region7: #{_lambda_.7} parent=0 // loop_footer_branch
    %11 = sbr.rel target = $region3
  $region8: #{_lambda_.7} parent=0 // loop_exit
    _

// kernel: _lambda_.6
$region0: #{_lambda_.6}
  #allocation0 [shape = 'u32[]', space=smem, size = 0x4, offset = 0x4, fixed_abs, tag = 'smem constant byte address 0x4 - core index']
  #allocation1 [shape = 'u32[72,128]{1,0:T(1,128)}', space=vmem, size = 0x9000, scoped, tag = 'internal scratch']
  #allocation2 [shape = 'f32[4,362]{1,0:T(4,128)}', space=vmem, size = 0x1800, scoped, tag = 'scratch operand']
  %s0 = inlined_call_operand.vmem [shape: f32[2,4,324], index: 0, kind: input, shape index: {}]
  %s1 = inlined_call_operand.vmem [shape: f32[2,4,324], index: 1, kind: input, shape index: {}]
  %s2 = inlined_call_operand.vmem [shape: f32[2,4,4], index: 2, kind: input, shape index: {}]
  %s3 = inlined_call_operand.vmem [shape: f32[4,1], index: 3, kind: input, shape index: {}]
  %s4 = inlined_call_operand.vmem [shape: f32[18,4,4], index: 4, kind: input, shape index: {}]
  %s5 = inlined_call_operand.vmem [shape: f32[2,4,1], index: 5, kind: input, shape index: {}]
  %s6 = inlined_call_operand.vmem [shape: f32[1,324], index: 6, kind: input, shape index: {}]
  %s7 = inlined_call_operand.vmem [shape: f32[2,4,324], index: 7, kind: output, shape index: {}]
  %s8 = sld [smem:[#allocation0]]
  $region61: #{_lambda_.6} parent=0
    _
  %s10 = ssub.s32 1, %s8
  %s11 = scalar_select 0, %s10, %s8
  loop: start=0, step=1, limit=4
  $region2: #{_lambda_.6} parent=0 // loop_pre_header
    _
  $region3: #{_lambda_.6} parent=0 // loop_header
    %s13 = sphi 0, %s17
    %p14 = scmp.ge.s32.totalorder %s13, 4
    %s23 = sphi 0, %s25
    %s26 = sphi 0, %s23
    %s27 = sphi 0, %s26
    %s43 = sphi 0, %s27
    %s49 = sphi 0, %s51
    %s52 = sphi 0, %s49
    %s53 = sphi 0, %s52
    %s69 = sphi 0, %s53
    %s73 = sphi 0, %s73
    %s75 = sphi 0, %s73
    %s76 = sphi 0, %s75
    %s90 = sphi 0, %s76
    %s94 = sphi 0, %s94
    %s96 = sphi 0, %s94
    %s97 = sphi 0, %s96
    %s111 = sphi 0, %s97
    %s115 = sphi 0, %s115
    %s117 = sphi 0, %s115
    %s118 = sphi 0, %s117
    %s132 = sphi 0, %s118
    %s136 = sphi 0, %s136
    %s138 = sphi 0, %s136
    %s139 = sphi 0, %s138
    %s153 = sphi 0, %s139
    %s157 = sphi 0, %s157
    %s159 = sphi 0, %s157
    %s160 = sphi 0, %s159
    %s174 = sphi 0, %s160
    %s180 = sphi 0, %s182
    %s183 = sphi 0, %s180
    %s184 = sphi 0, %s183
    %s200 = sphi 0, %s184
  $region4: #{_lambda_.6} parent=0 // loop_header_branch
    %16 = sbr.rel (%p14) target = $region8
  $region5: #{_lambda_.6} parent=0 // loop_body
    %s18 = ssub.s32 %s13, 1
    %s19 = ssub.s32 %s13, 2
    %s20 = sadd.s32 %s13, 1
    %s21 = ssub.s32 %s13, %s20
    %p22 = scmp.eq.s32.totalorder %s21, 0
    %s24 = sadd.s32 %s23, 1
    %s25 = scalar_select %p22, %s23, %s24
    %p28 = pneg %p22
    %p29 = scmp.eq.s32.totalorder %s13, 1
    %p30 = por %p28, %p29
    %p31 = scmp.ne.s32.totalorder %s23, %s26
    %p32 = scmp.eq.s32.totalorder %s13, 0
    %p33 = por %p31, %p32
    %p34 = scmp.ne.s32.totalorder %s23, %s26
    %p35 = scmp.eq.s32.totalorder %s18, 1
    %p36 = por %p34, %p35
    %p37 = scmp.ne.s32.totalorder %s26, %s27
    %p38 = scmp.eq.s32.totalorder %s18, 0
    %p39 = por %p37, %p38
    %p40 = scmp.ne.s32.totalorder %s26, %s27
    %p41 = scmp.eq.s32.totalorder %s19, 1
    %p42 = por %p40, %p41
    %p44 = scmp.ne.s32.totalorder %s27, %s43
    %p45 = scmp.eq.s32.totalorder %s19, 0
    %p46 = por %p44, %p45
    %s47 = ssub.s32 %s13, %s20
    %p48 = scmp.eq.s32.totalorder %s47, 0
    %s50 = sadd.s32 %s49, 1
    %s51 = scalar_select %p48, %s49, %s50
    %p54 = pneg %p48
    %p55 = scmp.eq.s32.totalorder %s13, 1
    %p56 = por %p54, %p55
    %p57 = scmp.ne.s32.totalorder %s49, %s52
    %p58 = scmp.eq.s32.totalorder %s13, 0
    %p59 = por %p57, %p58
    %p60 = scmp.ne.s32.totalorder %s49, %s52
    %p61 = scmp.eq.s32.totalorder %s18, 1
    %p62 = por %p60, %p61
    %p63 = scmp.ne.s32.totalorder %s52, %s53
    %p64 = scmp.eq.s32.totalorder %s18, 0
    %p65 = por %p63, %p64
    %p66 = scmp.ne.s32.totalorder %s52, %s53
    %p67 = scmp.eq.s32.totalorder %s19, 1
    %p68 = por %p66, %p67
    %p70 = scmp.ne.s32.totalorder %s53, %s69
    %p71 = scmp.eq.s32.totalorder %s19, 0
    %p72 = por %p70, %p71
    %s74 = sadd.s32 %s73, 1
    %p77 = scmp.eq.s32.totalorder %s13, 1
    %p78 = scmp.ne.s32.totalorder %s73, %s75
    %p79 = scmp.eq.s32.totalorder %s13, 0
    %p80 = por %p78, %p79
    %p81 = scmp.ne.s32.totalorder %s73, %s75
    %p82 = scmp.eq.s32.totalorder %s18, 1
    %p83 = por %p81, %p82
    %p84 = scmp.ne.s32.totalorder %s75, %s76
    %p85 = scmp.eq.s32.totalorder %s18, 0
    %p86 = por %p84, %p85
    %p87 = scmp.ne.s32.totalorder %s75, %s76
    %p88 = scmp.eq.s32.totalorder %s19, 1
    %p89 = por %p87, %p88
    %p91 = scmp.ne.s32.totalorder %s76, %s90
    %p92 = scmp.eq.s32.totalorder %s19, 0
    %p93 = por %p91, %p92
    %s95 = sadd.s32 %s94, 1
    %p98 = scmp.eq.s32.totalorder %s13, 1
    %p99 = scmp.ne.s32.totalorder %s94, %s96
    %p100 = scmp.eq.s32.totalorder %s13, 0
    %p101 = por %p99, %p100
    %p102 = scmp.ne.s32.totalorder %s94, %s96
    %p103 = scmp.eq.s32.totalorder %s18, 1
    %p104 = por %p102, %p103
    %p105 = scmp.ne.s32.totalorder %s96, %s97
    %p106 = scmp.eq.s32.totalorder %s18, 0
    %p107 = por %p105, %p106
    %p108 = scmp.ne.s32.totalorder %s96, %s97
    %p109 = scmp.eq.s32.totalorder %s19, 1
    %p110 = por %p108, %p109
    %p112 = scmp.ne.s32.totalorder %s97, %s111
    %p113 = scmp.eq.s32.totalorder %s19, 0
    %p114 = por %p112, %p113
    %s116 = sadd.s32 %s115, 1
    %p119 = scmp.eq.s32.totalorder %s13, 1
    %p120 = scmp.ne.s32.totalorder %s115, %s117
    %p121 = scmp.eq.s32.totalorder %s13, 0
    %p122 = por %p120, %p121
    %p123 = scmp.ne.s32.totalorder %s115, %s117
    %p124 = scmp.eq.s32.totalorder %s18, 1
    %p125 = por %p123, %p124
    %p126 = scmp.ne.s32.totalorder %s117, %s118
    %p127 = scmp.eq.s32.totalorder %s18, 0
    %p128 = por %p126, %p127
    %p129 = scmp.ne.s32.totalorder %s117, %s118
    %p130 = scmp.eq.s32.totalorder %s19, 1
    %p131 = por %p129, %p130
    %p133 = scmp.ne.s32.totalorder %s118, %s132
    %p134 = scmp.eq.s32.totalorder %s19, 0
    %p135 = por %p133, %p134
    %s137 = sadd.s32 %s136, 1
    %p140 = scmp.eq.s32.totalorder %s13, 1
    %p141 = scmp.ne.s32.totalorder %s136, %s138
    %p142 = scmp.eq.s32.totalorder %s13, 0
    %p143 = por %p141, %p142
    %p144 = scmp.ne.s32.totalorder %s136, %s138
    %p145 = scmp.eq.s32.totalorder %s18, 1
    %p146 = por %p144, %p145
    %p147 = scmp.ne.s32.totalorder %s138, %s139
    %p148 = scmp.eq.s32.totalorder %s18, 0
    %p149 = por %p147, %p148
    %p150 = scmp.ne.s32.totalorder %s138, %s139
    %p151 = scmp.eq.s32.totalorder %s19, 1
    %p152 = por %p150, %p151
    %p154 = scmp.ne.s32.totalorder %s139, %s153
    %p155 = scmp.eq.s32.totalorder %s19, 0
    %p156 = por %p154, %p155
    %s158 = sadd.s32 %s157, 1
    %p161 = scmp.eq.s32.totalorder %s13, 1
    %p162 = scmp.ne.s32.totalorder %s157, %s159
    %p163 = scmp.eq.s32.totalorder %s13, 0
    %p164 = por %p162, %p163
    %p165 = scmp.ne.s32.totalorder %s157, %s159
    %p166 = scmp.eq.s32.totalorder %s18, 1
    %p167 = por %p165, %p166
    %p168 = scmp.ne.s32.totalorder %s159, %s160
    %p169 = scmp.eq.s32.totalorder %s18, 0
    %p170 = por %p168, %p169
    %p171 = scmp.ne.s32.totalorder %s159, %s160
    %p172 = scmp.eq.s32.totalorder %s19, 1
    %p173 = por %p171, %p172
    %p175 = scmp.ne.s32.totalorder %s160, %s174
    %p176 = scmp.eq.s32.totalorder %s19, 0
    %p177 = por %p175, %p176
    %s178 = ssub.s32 %s13, %s20
    %p179 = scmp.eq.s32.totalorder %s178, 0
    %s181 = sadd.s32 %s180, 1
    %s182 = scalar_select %p179, %s180, %s181
    %p185 = pneg %p179
    %p186 = scmp.eq.s32.totalorder %s13, 1
    %p187 = por %p185, %p186
    %p188 = scmp.ne.s32.totalorder %s180, %s183
    %p189 = scmp.eq.s32.totalorder %s13, 0
    %p190 = por %p188, %p189
    %p191 = scmp.ne.s32.totalorder %s180, %s183
    %p192 = scmp.eq.s32.totalorder %s18, 1
    %p193 = por %p191, %p192
    %p194 = scmp.ne.s32.totalorder %s183, %s184
    %p195 = scmp.eq.s32.totalorder %s18, 0
    %p196 = por %p194, %p195
    %p197 = scmp.ne.s32.totalorder %s183, %s184
    %p198 = scmp.eq.s32.totalorder %s19, 1
    %p199 = por %p197, %p198
    %p201 = scmp.ne.s32.totalorder %s184, %s200
    %p202 = scmp.eq.s32.totalorder %s19, 0
    %p203 = por %p201, %p202
    %p204 = scmp.le.s32.totalorder 1, %s13
    %p205 = scmp.lt.s32.totalorder %s13, 3
    %p206 = pnand %p204, %p205
    %p207 = pneg %p206
    // Predicated region
    $region9: #{_lambda_.6} parent=5 // pred_check
      _
    $region10: #{_lambda_.6} parent=5 // pred_check_branch
      %209 = sbr.rel (%p206) target = $region12
    $region11: #{_lambda_.6} parent=5 // pred_region
      %s210 = ssub.s32 %s13, 1
      // Predicated region
      $region13: #{_lambda_.6} parent=11 // pred_check
        %p211 = pneg %p86
      $region14: #{_lambda_.6} parent=11 // pred_check_branch
        %213 = sbr.rel (%p211) target = $region16
      $region15: #{_lambda_.6} parent=11 // pred_region
        _
      $region16: #{_lambda_.6} parent=11 // pred_fallthru
        _
      // Predicated region
      $region17: #{_lambda_.6} parent=11 // pred_check
        %p214 = pneg %p107
      $region18: #{_lambda_.6} parent=11 // pred_check_branch
        %216 = sbr.rel (%p214) target = $region20
      $region19: #{_lambda_.6} parent=11 // pred_region
        _
      $region20: #{_lambda_.6} parent=11 // pred_fallthru
        _
      // Predicated region
      $region21: #{_lambda_.6} parent=11 // pred_check
        %p217 = pneg %p128
      $region22: #{_lambda_.6} parent=11 // pred_check_branch
        %219 = sbr.rel (%p217) target = $region24
      $region23: #{_lambda_.6} parent=11 // pred_region
        _
      $region24: #{_lambda_.6} parent=11 // pred_fallthru
        _
      // Predicated region
      $region25: #{_lambda_.6} parent=11 // pred_check
        %p220 = pneg %p149
      $region26: #{_lambda_.6} parent=11 // pred_check_branch
        %222 = sbr.rel (%p220) target = $region28
      $region27: #{_lambda_.6} parent=11 // pred_region
        _
      $region28: #{_lambda_.6} parent=11 // pred_fallthru
        _
      // Predicated region
      $region29: #{_lambda_.6} parent=11 // pred_check
        %p223 = pneg %p170
      $region30: #{_lambda_.6} parent=11 // pred_check_branch
        %225 = sbr.rel (%p223) target = $region32
      $region31: #{_lambda_.6} parent=11 // pred_region
        _
      $region32: #{_lambda_.6} parent=11 // pred_fallthru
        _
    $region12: #{_lambda_.6} parent=5 // pred_fallthru
      _
    %p226 = scmp.lt.s32.totalorder %s13, 2
    // Predicated region
    $region33: #{_lambda_.6} parent=5 // pred_check
      %p227 = pneg %p226
    $region34: #{_lambda_.6} parent=5 // pred_check_branch
      %229 = sbr.rel (%p227) target = $region36
    $region35: #{_lambda_.6} parent=5 // pred_region
      // Predicated region
      $region37: #{_lambda_.6} parent=35 // pred_check
        %p230 = pneg %p33
      $region38: #{_lambda_.6} parent=35 // pred_check_branch
        %232 = sbr.rel (%p230) target = $region40
      $region39: #{_lambda_.6} parent=35 // pred_region
        %p233 = scmp.lt.s32.totalorder %s13, 1
        %s234 = scalar_select %p233, %s13, 1
        %s235 = smul.addr %s234, 3
        %s236 = smul.addr %s235, 4
        %s237 = scalar_lea.vmem %s0, %s236
      $region40: #{_lambda_.6} parent=35 // pred_fallthru
        _
      // Predicated region
      $region41: #{_lambda_.6} parent=35 // pred_check
        %p238 = pneg %p59
      $region42: #{_lambda_.6} parent=35 // pred_check_branch
        %240 = sbr.rel (%p238) target = $region44
      $region43: #{_lambda_.6} parent=35 // pred_region
        %p241 = scmp.lt.s32.totalorder %s13, 1
        %s242 = scalar_select %p241, %s13, 1
        %s243 = smul.addr %s242, 3
        %s244 = smul.addr %s243, 4
        %s245 = scalar_lea.vmem %s1, %s244
      $region44: #{_lambda_.6} parent=35 // pred_fallthru
        _
    $region36: #{_lambda_.6} parent=5 // pred_fallthru
      _
    %p246 = scmp.le.s32.totalorder 1, %s13
    %p247 = scmp.lt.s32.totalorder %s13, 3
    %p248 = pnand %p246, %p247
    %p249 = pneg %p248
    // Predicated region
    $region45: #{_lambda_.6} parent=5 // pred_check
      _
    $region46: #{_lambda_.6} parent=5 // pred_check_branch
      %251 = sbr.rel (%p248) target = $region48
    $region47: #{_lambda_.6} parent=5 // pred_region
      %s252 = ssub.s32 %s13, 1
      %p253 = scmp.lt.s32.totalorder %s18, 1
      %s254 = scalar_select %p253, %s18, 1
      %s255 = smul.addr %s254, 3
      %s256 = smul.addr %s255, 4
      %s257 = scalar_lea.vmem %s0, %s256
      %p258 = pneg %p39
      %p259 = pneg %p36
      %p260 = scmp.lt.s32.totalorder %s18, 1
      %s261 = scalar_select %p260, %s18, 1
      %s262 = smul.addr %s261, 3
      %s263 = smul.addr %s262, 4
      %s264 = scalar_lea.vmem %s1, %s263
      %p265 = pneg %p65
      %p266 = pneg %p62
      %p267 = pneg %p86
      %p268 = pneg %p83
      %p269 = pneg %p107
      %p270 = pneg %p104
      %p271 = pneg %p128
      %p272 = pneg %p125
      %p273 = pneg %p149
      %p274 = pneg %p146
      %p275 = pneg %p170
      %p276 = pneg %p167
      %p277 = pneg %p196
      %p278 = pneg %p193
      %p279 = scmp.lt.s32.totalorder %s18, 1
      %s280 = scalar_select %p279, %s18, 1
      %s281 = smul.addr %s280, 3
      %s282 = smul.addr %s281, 4
      %s283 = scalar_lea.vmem %s7, %s282
      %p284 = scmp.lt.s32.totalorder %s18, 1
      %s285 = scalar_select %p284, %s18, 1
      %s286 = smul.addr %s285, 3
      %s287 = smul.addr %s286, 4
      %s288 = scalar_lea.vmem %s0, %s287
      %p289 = scmp.lt.s32.totalorder %s18, 1
      %s290 = scalar_select %p289, %s18, 1
      %s291 = smul.addr %s290, 3
      %s292 = smul.addr %s291, 4
      %s293 = scalar_lea.vmem %s1, %s292
      %p294 = scmp.lt.s32.totalorder %s18, 1
      %s295 = scalar_select %p294, %s18, 1
      %s296 = smul.addr %s295, 3
      %s297 = smul.addr %s296, 4
      %s298 = scalar_lea.vmem %s7, %s297
      %vm299 = vcmask 150528
      %300 = vst.msk [vmem:[#allocation2] sm:$0xf] %vm299, 0.0
      %vm301 = vcmask 863928
      %302 = vst.msk [vmem:[#allocation2 + $0x8] sm:$0xf] %vm301, 0.0
      %v303 = vld [vmem:[%s6] sm:$0x7]
      %v304 = vld [vmem:[%s2] sm:$0xf]
      %v305 = vld [vmem:[%s288] sm:$0xff]
      %v306 = vld [vmem:[%s288 + $0x8] sm:$0xf]
      %s307 = scalar_lea.vmem %s2, 4
      %v308 = vld [vmem:[%s307] sm:$0xf]
      %v309 = vld [vmem:[%s293] sm:$0xff]
      %v310 = vld [vmem:[%s293 + $0x8] sm:$0xf]
      %313 = vst [vmem:[#allocation1] ss:$2 sm:$0xff] %v309
      %s314 = scalar_lea.vmem [#allocation1], 16
      %315 = vst [vmem:[%s314] ss:$2 sm:$0xff] %v310
      %v316 = vld.sshfl [vmem:[#allocation1] sm:$0xff pattern:$0x75316420]
      %v317 = vld.sshfl [vmem:[#allocation1 + $0x8] sm:$0xff pattern:$0x75316420]
      %v318 = vld.sshfl [vmem:[#allocation1 + $0x10] sm:$0xff pattern:$0x75316420]
      %vm319 = vcmask 31744
      %v321 = vsel %vm319, %v308, 0
      %vm323 = vcmask 1043456
      %v324 = vsel %vm323, %v316, 0
      %v326 = vsel %vm323, %v317, 0
      %v328 = vsel %vm323, %v318, 0
      %330 = vmatpush.msra.mxu0 0.0
      %331 = vmatpush.msra.mxu0 0.0
      %332 = vmatpush.msra.mxu0 0.0
      %333 = vmatpush.msra.mxu0 0.0
      %334 = vmatpush.msra.mxu0 0.0
      %335 = vmatpush.msra.mxu0 0.0
      %336 = vmatpush.msra.mxu0 0.0
      %337 = vmatpush.msra.mxu0 0.0
      %338 = vmatpush.msra.mxu0 0.0
      %339 = vmatpush.msra.mxu0 0.0
      %340 = vmatpush.msra.mxu0 0.0
      %341 = vmatpush.msra.mxu0 0.0
      %342 = vmatpush.msra.mxu0 0.0
      %343 = vmatpush.msra.mxu0 0.0
      %344 = vmatpush.msra.mxu0 0.0
      %345 = vmatpush.msra.mxu0 %v324
      %346 = vmatmul.f32.gmra.mxu0 %v321
      %v347 = vpop.f32.mrf.mxu0
      %v348 = vadd.f32 0.0, %v347
      %349 = vdwg.mxu0
      %350 = vmatpush.msra.mxu0 0.0
      %351 = vmatpush.msra.mxu0 0.0
      %352 = vmatpush.msra.mxu0 0.0
      %353 = vmatpush.msra.mxu0 0.0
      %354 = vmatpush.msra.mxu0 0.0
      %355 = vmatpush.msra.mxu0 0.0
      %356 = vmatpush.msra.mxu0 0.0
      %357 = vmatpush.msra.mxu0 0.0
      %358 = vmatpush.msra.mxu0 0.0
      %359 = vmatpush.msra.mxu0 0.0
      %360 = vmatpush.msra.mxu0 0.0
      %361 = vmatpush.msra.mxu0 0.0
      %362 = vmatpush.msra.mxu0 0.0
      %363 = vmatpush.msra.mxu0 0.0
      %364 = vmatpush.msra.mxu0 0.0
      %365 = vmatpush.msra.mxu0 %v326
      %366 = vmatmul.f32.gmra.mxu0 %v321
      %v367 = vpop.f32.mrf.mxu0
      %v368 = vadd.f32 0.0, %v367
      %369 = vdwg.mxu0
      %370 = vmatpush.msra.mxu0 0.0
      %371 = vmatpush.msra.mxu0 0.0
      %372 = vmatpush.msra.mxu0 0.0
      %373 = vmatpush.msra.mxu0 0.0
      %374 = vmatpush.msra.mxu0 0.0
      %375 = vmatpush.msra.mxu0 0.0
      %376 = vmatpush.msra.mxu0 0.0
      %377 = vmatpush.msra.mxu0 0.0
      %378 = vmatpush.msra.mxu0 0.0
      %379 = vmatpush.msra.mxu0 0.0
      %380 = vmatpush.msra.mxu0 0.0
      %381 = vmatpush.msra.mxu0 0.0
      %382 = vmatpush.msra.mxu0 0.0
      %383 = vmatpush.msra.mxu0 0.0
      %384 = vmatpush.msra.mxu0 0.0
      %385 = vmatpush.msra.mxu0 %v328
      %386 = vmatmul.f32.gmra.mxu0 %v321
      %v387 = vpop.f32.mrf.mxu0
      %v388 = vadd.f32 0.0, %v387
      %389 = vdwg.mxu0
      %392 = vst [vmem:[#allocation1] ss:$2 sm:$0xff] %v305
      %s393 = scalar_lea.vmem [#allocation1], 16
      %394 = vst [vmem:[%s393] ss:$2 sm:$0xff] %v306
      %v395 = vld.sshfl [vmem:[#allocation1] sm:$0xff pattern:$0x75316420]
      %v396 = vld.sshfl [vmem:[#allocation1 + $0x8] sm:$0xff pattern:$0x75316420]
      %v397 = vld.sshfl [vmem:[#allocation1 + $0x10] sm:$0xff pattern:$0x75316420]
      %v399 = vsel %vm319, %v304, 0
      %v401 = vsel %vm323, %v395, 0
      %v403 = vsel %vm323, %v396, 0
      %v405 = vsel %vm323, %v397, 0
      %407 = vmatpush.msra.mxu0 0.0
      %408 = vmatpush.msra.mxu0 0.0
      %409 = vmatpush.msra.mxu0 0.0
      %410 = vmatpush.msra.mxu0 0.0
      %411 = vmatpush.msra.mxu0 0.0
      %412 = vmatpush.msra.mxu0 0.0
      %413 = vmatpush.msra.mxu0 0.0
      %414 = vmatpush.msra.mxu0 0.0
      %415 = vmatpush.msra.mxu0 0.0
      %416 = vmatpush.msra.mxu0 0.0
      %417 = vmatpush.msra.mxu0 0.0
      %418 = vmatpush.msra.mxu0 0.0
      %419 = vmatpush.msra.mxu0 0.0
      %420 = vmatpush.msra.mxu0 0.0
      %421 = vmatpush.msra.mxu0 0.0
      %422 = vmatpush.msra.mxu0 %v401
      %423 = vmatmul.f32.gmra.mxu0 %v399
      %v424 = vpop.f32.mrf.mxu0
      %v425 = vadd.f32 %v348, %v424
      %426 = vdwg.mxu0
      %427 = vmatpush.msra.mxu0 0.0
      %428 = vmatpush.msra.mxu0 0.0
      %429 = vmatpush.msra.mxu0 0.0
      %430 = vmatpush.msra.mxu0 0.0
      %431 = vmatpush.msra.mxu0 0.0
      %432 = vmatpush.msra.mxu0 0.0
      %433 = vmatpush.msra.mxu0 0.0
      %434 = vmatpush.msra.mxu0 0.0
      %435 = vmatpush.msra.mxu0 0.0
      %436 = vmatpush.msra.mxu0 0.0
      %437 = vmatpush.msra.mxu0 0.0
      %438 = vmatpush.msra.mxu0 0.0
      %439 = vmatpush.msra.mxu0 0.0
      %440 = vmatpush.msra.mxu0 0.0
      %441 = vmatpush.msra.mxu0 0.0
      %442 = vmatpush.msra.mxu0 %v403
      %443 = vmatmul.f32.gmra.mxu0 %v399
      %v444 = vpop.f32.mrf.mxu0
      %v445 = vadd.f32 %v368, %v444
      %446 = vdwg.mxu0
      %447 = vmatpush.msra.mxu0 0.0
      %448 = vmatpush.msra.mxu0 0.0
      %449 = vmatpush.msra.mxu0 0.0
      %450 = vmatpush.msra.mxu0 0.0
      %451 = vmatpush.msra.mxu0 0.0
      %452 = vmatpush.msra.mxu0 0.0
      %453 = vmatpush.msra.mxu0 0.0
      %454 = vmatpush.msra.mxu0 0.0
      %455 = vmatpush.msra.mxu0 0.0
      %456 = vmatpush.msra.mxu0 0.0
      %457 = vmatpush.msra.mxu0 0.0
      %458 = vmatpush.msra.mxu0 0.0
      %459 = vmatpush.msra.mxu0 0.0
      %460 = vmatpush.msra.mxu0 0.0
      %461 = vmatpush.msra.mxu0 0.0
      %462 = vmatpush.msra.mxu0 %v405
      %463 = vmatmul.f32.gmra.mxu0 %v399
      %v464 = vpop.f32.mrf.mxu0
      %v465 = vadd.f32 %v388, %v464
      %466 = vdwg.mxu0
      %v467 = vld [vmem:[%s3] sm:$0xf]
      %469 = vset.pattern.permute.xlu0 0
      %470 = vperm.xlu0 %469, %v467
      %v471 = vpop.permute.xlu0 %470
      %v473 = vadd.f32 %v425, %v471
      %v474 = vadd.f32 %v445, %v471
      %v475 = vadd.f32 %v465, %v471
      %v476 = vmul.f32 %v473, 0.2
      %v477 = vmul.f32 %v474, 0.2
      %v478 = vmul.f32 %v475, 0.2
      %v479 = vmax.f32 %v473, %v476
      %v480 = vmax.f32 %v474, %v477
      %v481 = vmax.f32 %v475, %v478
      %v483 = vperm.slane %v303, 0
      %v484 = vperm.slane %v303, 1
      %v485 = vperm.slane %v303, 2
      %v489 = vmul.f32 %v479, %v483
      %v490 = vmul.f32 %v480, %v484
      %v491 = vmul.f32 %v481, %v485
      %v495 = vrot.slane %v490, 4
      %v496 = vsel %vm323, %v489, %v495
      %497 = vrot.lane.b32.xlu0 %v496, 19
      %v498 = vpop.permute.xlu0 %497
      %499 = vrot.lane.b32.xlu0 %v491, 19
      %v500 = vpop.permute.xlu0 %499
      %v501 = vrot.slane %v498, 4
      %vm502 = vcmask 154624
      %v503 = vsel %vm502, %v501, %v498
      %v504 = vsel %vm502, %v501, %v500
      %vm507 = vcmask 1043608
      %vm508 = vcmask 1047556
      %vm509 = vmor %vm508, %vm507
      %510 = vst.msk [vmem:[#allocation2] sm:$0xff] %vm509, %v503
      %vm511 = vcmask 707584
      %512 = vst.msk [vmem:[#allocation2 + $0x8] sm:$0xf] %vm511, %v504
      %v513 = vld [vmem:[#allocation2] sm:$0xff]
      %v514 = vld [vmem:[#allocation2 + $0x8] sm:$0xf]
      %v515 = vld [vmem:[%s4] sm:$0xf]
      %s516 = scalar_lea.vmem %s4, 4
      %v517 = vld [vmem:[%s516] sm:$0xf]
      %520 = vst [vmem:[#allocation1] ss:$2 sm:$0xff] %v513
      %s521 = scalar_lea.vmem [#allocation1], 16
      %522 = vst [vmem:[%s521] ss:$2 sm:$0xff] %v514
      %v523 = vld.sshfl [vmem:[#allocation1] sm:$0xff pattern:$0x75316420]
      %v524 = vld.sshfl [vmem:[#allocation1 + $0x8] sm:$0xff pattern:$0x75316420]
      %v525 = vld.sshfl [vmem:[#allocation1 + $0x10] sm:$0xff pattern:$0x75316420]
      %526 = vrot.lane.b32.xlu0 %v523, 127
      %v527 = vpop.permute.xlu0 %526
      %528 = vrot.lane.b32.xlu0 %v524, 127
      %v529 = vpop.permute.xlu0 %528
      %530 = vrot.lane.b32.xlu0 %v525, 127
      %v531 = vpop.permute.xlu0 %530
      %vm532 = vcmask 1039360
      %v533 = vsel %vm532, %v527, %v529
      %v534 = vsel %vm532, %v529, %v531
      %v536 = vsel %vm319, %v517, 0
      %v538 = vsel %vm323, %v533, 0
      %v540 = vsel %vm323, %v534, 0
      %v542 = vsel %vm323, %v531, 0
      %544 = vmatpush.msra.mxu0 0.0
      %545 = vmatpush.msra.mxu0 0.0
      %546 = vmatpush.msra.mxu0 0.0
      %547 = vmatpush.msra.mxu0 0.0
      %548 = vmatpush.msra.mxu0 0.0
      %549 = vmatpush.msra.mxu0 0.0
      %550 = vmatpush.msra.mxu0 0.0
      %551 = vmatpush.msra.mxu0 0.0
      %552 = vmatpush.msra.mxu0 0.0
      %553 = vmatpush.msra.mxu0 0.0
      %554 = vmatpush.msra.mxu0 0.0
      %555 = vmatpush.msra.mxu0 0.0
      %556 = vmatpush.msra.mxu0 0.0
      %557 = vmatpush.msra.mxu0 0.0
      %558 = vmatpush.msra.mxu0 0.0
      %559 = vmatpush.msra.mxu0 %v538
      %560 = vmatmul.f32.gmra.mxu0 %v536
      %v561 = vpop.f32.mrf.mxu0
      %v562 = vadd.f32 0.0, %v561
      %563 = vdwg.mxu0
      %564 = vmatpush.msra.mxu0 0.0
      %565 = vmatpush.msra.mxu0 0.0
      %566 = vmatpush.msra.mxu0 0.0
      %567 = vmatpush.msra.mxu0 0.0
      %568 = vmatpush.msra.mxu0 0.0
      %569 = vmatpush.msra.mxu0 0.0
      %570 = vmatpush.msra.mxu0 0.0
      %571 = vmatpush.msra.mxu0 0.0
      %572 = vmatpush.msra.mxu0 0.0
      %573 = vmatpush.msra.mxu0 0.0
      %574 = vmatpush.msra.mxu0 0.0
      %575 = vmatpush.msra.mxu0 0.0
      %576 = vmatpush.msra.mxu0 0.0
      %577 = vmatpush.msra.mxu0 0.0
      %578 = vmatpush.msra.mxu0 0.0
      %579 = vmatpush.msra.mxu0 %v540
      %580 = vmatmul.f32.gmra.mxu0 %v536
      %v581 = vpop.f32.mrf.mxu0
      %v582 = vadd.f32 0.0, %v581
      %583 = vdwg.mxu0
      %584 = vmatpush.msra.mxu0 0.0
      %585 = vmatpush.msra.mxu0 0.0
      %586 = vmatpush.msra.mxu0 0.0
      %587 = vmatpush.msra.mxu0 0.0
      %588 = vmatpush.msra.mxu0 0.0
      %589 = vmatpush.msra.mxu0 0.0
      %590 = vmatpush.msra.mxu0 0.0
      %591 = vmatpush.msra.mxu0 0.0
      %592 = vmatpush.msra.mxu0 0.0
      %593 = vmatpush.msra.mxu0 0.0
      %594 = vmatpush.msra.mxu0 0.0
      %595 = vmatpush.msra.mxu0 0.0
      %596 = vmatpush.msra.mxu0 0.0
      %597 = vmatpush.msra.mxu0 0.0
      %598 = vmatpush.msra.mxu0 0.0
      %599 = vmatpush.msra.mxu0 %v542
      %600 = vmatmul.f32.gmra.mxu0 %v536
      %v601 = vpop.f32.mrf.mxu0
      %v602 = vadd.f32 0.0, %v601
      %603 = vdwg.mxu0
      %604 = vst [vmem:[#allocation1] ss:$2 sm:$0xff] %v513
      %s605 = scalar_lea.vmem [#allocation1], 16
      %606 = vst [vmem:[%s605] ss:$2 sm:$0xff] %v514
      %v607 = vld.sshfl [vmem:[#allocation1] sm:$0xff pattern:$0x75316420]
      %v608 = vld.sshfl [vmem:[#allocation1 + $0x8] sm:$0xff pattern:$0x75316420]
      %v609 = vld.sshfl [vmem:[#allocation1 + $0x10] sm:$0xff pattern:$0x75316420]
      %v611 = vsel %vm319, %v515, 0
      %v613 = vsel %vm323, %v607, 0
      %v615 = vsel %vm323, %v608, 0
      %v617 = vsel %vm323, %v609, 0
      %619 = vmatpush.msra.mxu0 0.0
      %620 = vmatpush.msra.mxu0 0.0
      %621 = vmatpush.msra.mxu0 0.0
      %622 = vmatpush.msra.mxu0 0.0
      %623 = vmatpush.msra.mxu0 0.0
      %624 = vmatpush.msra.mxu0 0.0
      %625 = vmatpush.msra.mxu0 0.0
      %626 = vmatpush.msra.mxu0 0.0
      %627 = vmatpush.msra.mxu0 0.0
      %628 = vmatpush.msra.mxu0 0.0
      %629 = vmatpush.msra.mxu0 0.0
      %630 = vmatpush.msra.mxu0 0.0
      %631 = vmatpush.msra.mxu0 0.0
      %632 = vmatpush.msra.mxu0 0.0
      %633 = vmatpush.msra.mxu0 0.0
      %634 = vmatpush.msra.mxu0 %v613
      %635 = vmatmul.f32.gmra.mxu0 %v611
      %v636 = vpop.f32.mrf.mxu0
      %v637 = vadd.f32 %v562, %v636
      %638 = vdwg.mxu0
      %639 = vmatpush.msra.mxu0 0.0
      %640 = vmatpush.msra.mxu0 0.0
      %641 = vmatpush.msra.mxu0 0.0
      %642 = vmatpush.msra.mxu0 0.0
      %643 = vmatpush.msra.mxu0 0.0
      %644 = vmatpush.msra.mxu0 0.0
      %645 = vmatpush.msra.mxu0 0.0
      %646 = vmatpush.msra.mxu0 0.0
      %647 = vmatpush.msra.mxu0 0.0
      %648 = vmatpush.msra.mxu0 0.0
      %649 = vmatpush.msra.mxu0 0.0
      %650 = vmatpush.msra.mxu0 0.0
      %651 = vmatpush.msra.mxu0 0.0
      %652 = vmatpush.msra.mxu0 0.0
      %653 = vmatpush.msra.mxu0 0.0
      %654 = vmatpush.msra.mxu0 %v615
      %655 = vmatmul.f32.gmra.mxu0 %v611
      %v656 = vpop.f32.mrf.mxu0
      %v657 = vadd.f32 %v582, %v656
      %658 = vdwg.mxu0
      %659 = vmatpush.msra.mxu0 0.0
      %660 = vmatpush.msra.mxu0 0.0
      %661 = vmatpush.msra.mxu0 0.0
      %662 = vmatpush.msra.mxu0 0.0
      %663 = vmatpush.msra.mxu0 0.0
      %664 = vmatpush.msra.mxu0 0.0
      %665 = vmatpush.msra.mxu0 0.0
      %666 = vmatpush.msra.mxu0 0.0
      %667 = vmatpush.msra.mxu0 0.0
      %668 = vmatpush.msra.mxu0 0.0
      %669 = vmatpush.msra.mxu0 0.0
      %670 = vmatpush.msra.mxu0 0.0
      %671 = vmatpush.msra.mxu0 0.0
      %672 = vmatpush.msra.mxu0 0.0
      %673 = vmatpush.msra.mxu0 0.0
      %674 = vmatpush.msra.mxu0 %v617
      %675 = vmatmul.f32.gmra.mxu0 %v611
      %v676 = vpop.f32.mrf.mxu0
      %v677 = vadd.f32 %v602, %v676
      %678 = vdwg.mxu0
      %v679 = vld [vmem:[#allocation2] sm:$0xff]
      %v680 = vld [vmem:[#allocation2 + $0x8] sm:$0xf]
      %s681 = scalar_lea.vmem %s4, 8
      %v682 = vld [vmem:[%s681] sm:$0xf]
      %685 = vst [vmem:[#allocation1] ss:$2 sm:$0xff] %v679
      %s686 = scalar_lea.vmem [#allocation1], 16
      %687 = vst [vmem:[%s686] ss:$2 sm:$0xff] %v680
      %v688 = vld.sshfl [vmem:[#allocation1] sm:$0xff pattern:$0x75316420]
      %v689 = vld.sshfl [vmem:[#allocation1 + $0x8] sm:$0xff pattern:$0x75316420]
      %v690 = vld.sshfl [vmem:[#allocation1 + $0x10] sm:$0xff pattern:$0x75316420]
      %691 = vrot.lane.b32.xlu0 %v688, 126
      %v692 = vpop.permute.xlu0 %691
      %693 = vrot.lane.b32.xlu0 %v689, 126
      %v694 = vpop.permute.xlu0 %693
      %695 = vrot.lane.b32.xlu0 %v690, 126
      %v696 = vpop.permute.xlu0 %695
      %vm697 = vcmask 1031168
      %v698 = vsel %vm697, %v692, %v694
      %v699 = vsel %vm697, %v694, %v696
      %v701 = vsel %vm319, %v682, 0
      %v703 = vsel %vm323, %v698, 0
      %v705 = vsel %vm323, %v699, 0
      %v707 = vsel %vm323, %v696, 0
      %709 = vmatpush.msra.mxu0 0.0
      %710 = vmatpush.msra.mxu0 0.0
      %711 = vmatpush.msra.mxu0 0.0
      %712 = vmatpush.msra.mxu0 0.0
      %713 = vmatpush.msra.mxu0 0.0
      %714 = vmatpush.msra.mxu0 0.0
      %715 = vmatpush.msra.mxu0 0.0
      %716 = vmatpush.msra.mxu0 0.0
      %717 = vmatpush.msra.mxu0 0.0
      %718 = vmatpush.msra.mxu0 0.0
      %719 = vmatpush.msra.mxu0 0.0
      %720 = vmatpush.msra.mxu0 0.0
      %721 = vmatpush.msra.mxu0 0.0
      %722 = vmatpush.msra.mxu0 0.0
      %723 = vmatpush.msra.mxu0 0.0
      %724 = vmatpush.msra.mxu0 %v703
      %725 = vmatmul.f32.gmra.mxu0 %v701
      %v726 = vpop.f32.mrf.mxu0
      %v727 = vadd.f32 0.0, %v726
      %728 = vdwg.mxu0
      %729 = vmatpush.msra.mxu0 0.0
      %730 = vmatpush.msra.mxu0 0.0
      %731 = vmatpush.msra.mxu0 0.0
      %732 = vmatpush.msra.mxu0 0.0
      %733 = vmatpush.msra.mxu0 0.0
      %734 = vmatpush.msra.mxu0 0.0
      %735 = vmatpush.msra.mxu0 0.0
      %736 = vmatpush.msra.mxu0 0.0
      %737 = vmatpush.msra.mxu0 0.0
      %738 = vmatpush.msra.mxu0 0.0
      %739 = vmatpush.msra.mxu0 0.0
      %740 = vmatpush.msra.mxu0 0.0
      %741 = vmatpush.msra.mxu0 0.0
      %742 = vmatpush.msra.mxu0 0.0
      %743 = vmatpush.msra.mxu0 0.0
      %744 = vmatpush.msra.mxu0 %v705
      %745 = vmatmul.f32.gmra.mxu0 %v701
      %v746 = vpop.f32.mrf.mxu0
      %v747 = vadd.f32 0.0, %v746
      %748 = vdwg.mxu0
      %749 = vmatpush.msra.mxu0 0.0
      %750 = vmatpush.msra.mxu0 0.0
      %751 = vmatpush.msra.mxu0 0.0
      %752 = vmatpush.msra.mxu0 0.0
      %753 = vmatpush.msra.mxu0 0.0
      %754 = vmatpush.msra.mxu0 0.0
      %755 = vmatpush.msra.mxu0 0.0
      %756 = vmatpush.msra.mxu0 0.0
      %757 = vmatpush.msra.mxu0 0.0
      %758 = vmatpush.msra.mxu0 0.0
      %759 = vmatpush.msra.mxu0 0.0
      %760 = vmatpush.msra.mxu0 0.0
      %761 = vmatpush.msra.mxu0 0.0
      %762 = vmatpush.msra.mxu0 0.0
      %763 = vmatpush.msra.mxu0 0.0
      %764 = vmatpush.msra.mxu0 %v707
      %765 = vmatmul.f32.gmra.mxu0 %v701
      %v766 = vpop.f32.mrf.mxu0
      %v767 = vadd.f32 0.0, %v766
      %768 = vdwg.mxu0
      %v769 = vadd.f32 %v637, %v727
      %v770 = vadd.f32 %v657, %v747
      %v771 = vadd.f32 %v677, %v767
      %v772 = vld [vmem:[#allocation2] sm:$0xff]
      %v773 = vld [vmem:[#allocation2 + $0x8] sm:$0xf]
      %s774 = scalar_lea.vmem %s4, 12
      %v775 = vld [vmem:[%s774] sm:$0xf]
      %778 = vst [vmem:[#allocation1] ss:$2 sm:$0xff] %v772
      %s779 = scalar_lea.vmem [#allocation1], 16
      %780 = vst [vmem:[%s779] ss:$2 sm:$0xff] %v773
      %v781 = vld.sshfl [vmem:[#allocation1] sm:$0xff pattern:$0x75316420]
      %v782 = vld.sshfl [vmem:[#allocation1 + $0x8] sm:$0xff pattern:$0x75316420]
      %v783 = vld.sshfl [vmem:[#allocation1 + $0x10] sm:$0xff pattern:$0x75316420]
      %784 = vrot.lane.b32.xlu0 %v781, 110
      %v785 = vpop.permute.xlu0 %784
      %786 = vrot.lane.b32.xlu0 %v782, 110
      %v787 = vpop.permute.xlu0 %786
      %788 = vrot.lane.b32.xlu0 %v783, 110
      %v789 = vpop.permute.xlu0 %788
      %vm790 = vcmask 900096
      %v791 = vsel %vm790, %v785, %v787
      %v792 = vsel %vm790, %v787, %v789
      %v794 = vsel %vm319, %v775, 0
      %v796 = vsel %vm323, %v791, 0
      %v798 = vsel %vm323, %v792, 0
      %v800 = vsel %vm323, %v789, 0
      %802 = vmatpush.msra.mxu0 0.0
      %803 = vmatpush.msra.mxu0 0.0
      %804 = vmatpush.msra.mxu0 0.0
      %805 = vmatpush.msra.mxu0 0.0
      %806 = vmatpush.msra.mxu0 0.0
      %807 = vmatpush.msra.mxu0 0.0
      %808 = vmatpush.msra.mxu0 0.0
      %809 = vmatpush.msra.mxu0 0.0
      %810 = vmatpush.msra.mxu0 0.0
      %811 = vmatpush.msra.mxu0 0.0
      %812 = vmatpush.msra.mxu0 0.0
      %813 = vmatpush.msra.mxu0 0.0
      %814 = vmatpush.msra.mxu0 0.0
      %815 = vmatpush.msra.mxu0 0.0
      %816 = vmatpush.msra.mxu0 0.0
      %817 = vmatpush.msra.mxu0 %v796
      %818 = vmatmul.f32.gmra.mxu0 %v794
      %v819 = vpop.f32.mrf.mxu0
      %v820 = vadd.f32 0.0, %v819
      %821 = vdwg.mxu0
      %822 = vmatpush.msra.mxu0 0.0
      %823 = vmatpush.msra.mxu0 0.0
      %824 = vmatpush.msra.mxu0 0.0
      %825 = vmatpush.msra.mxu0 0.0
      %826 = vmatpush.msra.mxu0 0.0
      %827 = vmatpush.msra.mxu0 0.0
      %828 = vmatpush.msra.mxu0 0.0
      %829 = vmatpush.msra.mxu0 0.0
      %830 = vmatpush.msra.mxu0 0.0
      %831 = vmatpush.msra.mxu0 0.0
      %832 = vmatpush.msra.mxu0 0.0
      %833 = vmatpush.msra.mxu0 0.0
      %834 = vmatpush.msra.mxu0 0.0
      %835 = vmatpush.msra.mxu0 0.0
      %836 = vmatpush.msra.mxu0 0.0
      %837 = vmatpush.msra.mxu0 %v798
      %838 = vmatmul.f32.gmra.mxu0 %v794
      %v839 = vpop.f32.mrf.mxu0
      %v840 = vadd.f32 0.0, %v839
      %841 = vdwg.mxu0
      %842 = vmatpush.msra.mxu0 0.0
      %843 = vmatpush.msra.mxu0 0.0
      %844 = vmatpush.msra.mxu0 0.0
      %845 = vmatpush.msra.mxu0 0.0
      %846 = vmatpush.msra.mxu0 0.0
      %847 = vmatpush.msra.mxu0 0.0
      %848 = vmatpush.msra.mxu0 0.0
      %849 = vmatpush.msra.mxu0 0.0
      %850 = vmatpush.msra.mxu0 0.0
      %851 = vmatpush.msra.mxu0 0.0
      %852 = vmatpush.msra.mxu0 0.0
      %853 = vmatpush.msra.mxu0 0.0
      %854 = vmatpush.msra.mxu0 0.0
      %855 = vmatpush.msra.mxu0 0.0
      %856 = vmatpush.msra.mxu0 0.0
      %857 = vmatpush.msra.mxu0 %v800
      %858 = vmatmul.f32.gmra.mxu0 %v794
      %v859 = vpop.f32.mrf.mxu0
      %v860 = vadd.f32 0.0, %v859
      %861 = vdwg.mxu0
      %v862 = vadd.f32 %v769, %v820
      %v863 = vadd.f32 %v770, %v840
      %v864 = vadd.f32 %v771, %v860
      %v865 = vld [vmem:[#allocation2] sm:$0xff]
      %v866 = vld [vmem:[#allocation2 + $0x8] sm:$0xf]
      %s867 = scalar_lea.vmem %s4, 16
      %v868 = vld [vmem:[%s867] sm:$0xf]
      %871 = vst [vmem:[#allocation1] ss:$2 sm:$0xff] %v865
      %s872 = scalar_lea.vmem [#allocation1], 16
      %873 = vst [vmem:[%s872] ss:$2 sm:$0xff] %v866
      %v874 = vld.sshfl [vmem:[#allocation1] sm:$0xff pattern:$0x75316420]
      %v875 = vld.sshfl [vmem:[#allocation1 + $0x8] sm:$0xff pattern:$0x75316420]
      %v876 = vld.sshfl [vmem:[#allocation1 + $0x10] sm:$0xff pattern:$0x75316420]
      %877 = vrot.lane.b32.xlu0 %v874, 109
      %v878 = vpop.permute.xlu0 %877
      %879 = vrot.lane.b32.xlu0 %v875, 109
      %v880 = vpop.permute.xlu0 %879
      %881 = vrot.lane.b32.xlu0 %v876, 109
      %v882 = vpop.permute.xlu0 %881
      %vm883 = vcmask 891904
      %v884 = vsel %vm883, %v878, %v880
      %v885 = vsel %vm883, %v880, %v882
      %v887 = vsel %vm319, %v868, 0
      %v889 = vsel %vm323, %v884, 0
      %v891 = vsel %vm323, %v885, 0
      %v893 = vsel %vm323, %v882, 0
      %895 = vmatpush.msra.mxu0 0.0
      %896 = vmatpush.msra.mxu0 0.0
      %897 = vmatpush.msra.mxu0 0.0
      %898 = vmatpush.msra.mxu0 0.0
      %899 = vmatpush.msra.mxu0 0.0
      %900 = vmatpush.msra.mxu0 0.0
      %901 = vmatpush.msra.mxu0 0.0
      %902 = vmatpush.msra.mxu0 0.0
      %903 = vmatpush.msra.mxu0 0.0
      %904 = vmatpush.msra.mxu0 0.0
      %905 = vmatpush.msra.mxu0 0.0
      %906 = vmatpush.msra.mxu0 0.0
      %907 = vmatpush.msra.mxu0 0.0
      %908 = vmatpush.msra.mxu0 0.0
      %909 = vmatpush.msra.mxu0 0.0
      %910 = vmatpush.msra.mxu0 %v889
      %911 = vmatmul.f32.gmra.mxu0 %v887
      %v912 = vpop.f32.mrf.mxu0
      %v913 = vadd.f32 0.0, %v912
      %914 = vdwg.mxu0
      %915 = vmatpush.msra.mxu0 0.0
      %916 = vmatpush.msra.mxu0 0.0
      %917 = vmatpush.msra.mxu0 0.0
      %918 = vmatpush.msra.mxu0 0.0
      %919 = vmatpush.msra.mxu0 0.0
      %920 = vmatpush.msra.mxu0 0.0
      %921 = vmatpush.msra.mxu0 0.0
      %922 = vmatpush.msra.mxu0 0.0
      %923 = vmatpush.msra.mxu0 0.0
      %924 = vmatpush.msra.mxu0 0.0
      %925 = vmatpush.msra.mxu0 0.0
      %926 = vmatpush.msra.mxu0 0.0
      %927 = vmatpush.msra.mxu0 0.0
      %928 = vmatpush.msra.mxu0 0.0
      %929 = vmatpush.msra.mxu0 0.0
      %930 = vmatpush.msra.mxu0 %v891
      %931 = vmatmul.f32.gmra.mxu0 %v887
      %v932 = vpop.f32.mrf.mxu0
      %v933 = vadd.f32 0.0, %v932
      %934 = vdwg.mxu0
      %935 = vmatpush.msra.mxu0 0.0
      %936 = vmatpush.msra.mxu0 0.0
      %937 = vmatpush.msra.mxu0 0.0
      %938 = vmatpush.msra.mxu0 0.0
      %939 = vmatpush.msra.mxu0 0.0
      %940 = vmatpush.msra.mxu0 0.0
      %941 = vmatpush.msra.mxu0 0.0
      %942 = vmatpush.msra.mxu0 0.0
      %943 = vmatpush.msra.mxu0 0.0
      %944 = vmatpush.msra.mxu0 0.0
      %945 = vmatpush.msra.mxu0 0.0
      %946 = vmatpush.msra.mxu0 0.0
      %947 = vmatpush.msra.mxu0 0.0
      %948 = vmatpush.msra.mxu0 0.0
      %949 = vmatpush.msra.mxu0 0.0
      %950 = vmatpush.msra.mxu0 %v893
      %951 = vmatmul.f32.gmra.mxu0 %v887
      %v952 = vpop.f32.mrf.mxu0
      %v953 = vadd.f32 0.0, %v952
      %954 = vdwg.mxu0
      %v955 = vadd.f32 %v862, %v913
      %v956 = vadd.f32 %v863, %v933
      %v957 = vadd.f32 %v864, %v953
      %v958 = vld [vmem:[#allocation2] sm:$0xff]
      %v959 = vld [vmem:[#allocation2 + $0x8] sm:$0xf]
      %s960 = scalar_lea.vmem %s4, 20
      %v961 = vld [vmem:[%s960] sm:$0xf]
      %964 = vst [vmem:[#allocation1] ss:$2 sm:$0xff] %v958
      %s965 = scalar_lea.vmem [#allocation1], 16
      %966 = vst [vmem:[%s965] ss:$2 sm:$0xff] %v959
      %v967 = vld.sshfl [vmem:[#allocation1] sm:$0xff pattern:$0x75316420]
      %v968 = vld.sshfl [vmem:[#allocation1 + $0x8] sm:$0xff pattern:$0x75316420]
      %v969 = vld.sshfl [vmem:[#allocation1 + $0x10] sm:$0xff pattern:$0x75316420]
      %970 = vrot.lane.b32.xlu0 %v967, 108
      %v971 = vpop.permute.xlu0 %970
      %972 = vrot.lane.b32.xlu0 %v968, 108
      %v973 = vpop.permute.xlu0 %972
      %974 = vrot.lane.b32.xlu0 %v969, 108
      %v975 = vpop.permute.xlu0 %974
      %vm976 = vcmask 883712
      %v977 = vsel %vm976, %v971, %v973
      %v978 = vsel %vm976, %v973, %v975
      %v980 = vsel %vm319, %v961, 0
      %v982 = vsel %vm323, %v977, 0
      %v984 = vsel %vm323, %v978, 0
      %v986 = vsel %vm323, %v975, 0
      %988 = vmatpush.msra.mxu0 0.0
      %989 = vmatpush.msra.mxu0 0.0
      %990 = vmatpush.msra.mxu0 0.0
      %991 = vmatpush.msra.mxu0 0.0
      %992 = vmatpush.msra.mxu0 0.0
      %993 = vmatpush.msra.mxu0 0.0
      %994 = vmatpush.msra.mxu0 0.0
      %995 = vmatpush.msra.mxu0 0.0
      %996 = vmatpush.msra.mxu0 0.0
      %997 = vmatpush.msra.mxu0 0.0
      %998 = vmatpush.msra.mxu0 0.0
      %999 = vmatpush.msra.mxu0 0.0
      %1000 = vmatpush.msra.mxu0 0.0
      %1001 = vmatpush.msra.mxu0 0.0
      %1002 = vmatpush.msra.mxu0 0.0
      %1003 = vmatpush.msra.mxu0 %v982
      %1004 = vmatmul.f32.gmra.mxu0 %v980
      %v1005 = vpop.f32.mrf.mxu0
      %v1006 = vadd.f32 0.0, %v1005
      %1007 = vdwg.mxu0
      %1008 = vmatpush.msra.mxu0 0.0
      %1009 = vmatpush.msra.mxu0 0.0
      %1010 = vmatpush.msra.mxu0 0.0
      %1011 = vmatpush.msra.mxu0 0.0
      %1012 = vmatpush.msra.mxu0 0.0
      %1013 = vmatpush.msra.mxu0 0.0
      %1014 = vmatpush.msra.mxu0 0.0
      %1015 = vmatpush.msra.mxu0 0.0
      %1016 = vmatpush.msra.mxu0 0.0
      %1017 = vmatpush.msra.mxu0 0.0
      %1018 = vmatpush.msra.mxu0 0.0
      %1019 = vmatpush.msra.mxu0 0.0
      %1020 = vmatpush.msra.mxu0 0.0
      %1021 = vmatpush.msra.mxu0 0.0
      %1022 = vmatpush.msra.mxu0 0.0
      %1023 = vmatpush.msra.mxu0 %v984
      %1024 = vmatmul.f32.gmra.mxu0 %v980
      %v1025 = vpop.f32.mrf.mxu0
      %v1026 = vadd.f32 0.0, %v1025
      %1027 = vdwg.mxu0
      %1028 = vmatpush.msra.mxu0 0.0
      %1029 = vmatpush.msra.mxu0 0.0
      %1030 = vmatpush.msra.mxu0 0.0
      %1031 = vmatpush.msra.mxu0 0.0
      %1032 = vmatpush.msra.mxu0 0.0
      %1033 = vmatpush.msra.mxu0 0.0
      %1034 = vmatpush.msra.mxu0 0.0
      %1035 = vmatpush.msra.mxu0 0.0
      %1036 = vmatpush.msra.mxu0 0.0
      %1037 = vmatpush.msra.mxu0 0.0
      %1038 = vmatpush.msra.mxu0 0.0
      %1039 = vmatpush.msra.mxu0 0.0
      %1040 = vmatpush.msra.mxu0 0.0
      %1041 = vmatpush.msra.mxu0 0.0
      %1042 = vmatpush.msra.mxu0 0.0
      %1043 = vmatpush.msra.mxu0 %v986
      %1044 = vmatmul.f32.gmra.mxu0 %v980
      %v1045 = vpop.f32.mrf.mxu0
      %v1046 = vadd.f32 0.0, %v1045
      %1047 = vdwg.mxu0
      %v1048 = vadd.f32 %v955, %v1006
      %v1049 = vadd.f32 %v956, %v1026
      %v1050 = vadd.f32 %v957, %v1046
      %v1051 = vld [vmem:[#allocation2] sm:$0xff]
      %v1052 = vld [vmem:[#allocation2 + $0x8] sm:$0xf]
      %s1053 = scalar_lea.vmem %s4, 24
      %v1054 = vld [vmem:[%s1053] sm:$0xf]
      %1057 = vst [vmem:[#allocation1] ss:$2 sm:$0xff] %v1051
      %s1058 = scalar_lea.vmem [#allocation1], 16
      %1059 = vst [vmem:[%s1058] ss:$2 sm:$0xff] %v1052
      %v1060 = vld.sshfl [vmem:[#allocation1] sm:$0xff pattern:$0x75316420]
      %v1061 = vld.sshfl [vmem:[#allocation1 + $0x8] sm:$0xff pattern:$0x75316420]
      %v1062 = vld.sshfl [vmem:[#allocation1 + $0x10] sm:$0xff pattern:$0x75316420]
      %1063 = vrot.lane.b32.xlu0 %v1060, 92
      %v1064 = vpop.permute.xlu0 %1063
      %1065 = vrot.lane.b32.xlu0 %v1061, 92
      %v1066 = vpop.permute.xlu0 %1065
      %1067 = vrot.lane.b32.xlu0 %v1062, 92
      %v1068 = vpop.permute.xlu0 %1067
      %vm1069 = vcmask 752640
      %v1070 = vsel %vm1069, %v1064, %v1066
      %v1071 = vsel %vm1069, %v1066, %v1068
      %v1073 = vsel %vm319, %v1054, 0
      %v1075 = vsel %vm323, %v1070, 0
      %v1077 = vsel %vm323, %v1071, 0
      %v1079 = vsel %vm323, %v1068, 0
      %1081 = vmatpush.msra.mxu0 0.0
      %1082 = vmatpush.msra.mxu0 0.0
      %1083 = vmatpush.msra.mxu0 0.0
      %1084 = vmatpush.msra.mxu0 0.0
      %1085 = vmatpush.msra.mxu0 0.0
      %1086 = vmatpush.msra.mxu0 0.0
      %1087 = vmatpush.msra.mxu0 0.0
      %1088 = vmatpush.msra.mxu0 0.0
      %1089 = vmatpush.msra.mxu0 0.0
      %1090 = vmatpush.msra.mxu0 0.0
      %1091 = vmatpush.msra.mxu0 0.0
      %1092 = vmatpush.msra.mxu0 0.0
      %1093 = vmatpush.msra.mxu0 0.0
      %1094 = vmatpush.msra.mxu0 0.0
      %1095 = vmatpush.msra.mxu0 0.0
      %1096 = vmatpush.msra.mxu0 %v1075
      %1097 = vmatmul.f32.gmra.mxu0 %v1073
      %v1098 = vpop.f32.mrf.mxu0
      %v1099 = vadd.f32 0.0, %v1098
      %1100 = vdwg.mxu0
      %1101 = vmatpush.msra.mxu0 0.0
      %1102 = vmatpush.msra.mxu0 0.0
      %1103 = vmatpush.msra.mxu0 0.0
      %1104 = vmatpush.msra.mxu0 0.0
      %1105 = vmatpush.msra.mxu0 0.0
      %1106 = vmatpush.msra.mxu0 0.0
      %1107 = vmatpush.msra.mxu0 0.0
      %1108 = vmatpush.msra.mxu0 0.0
      %1109 = vmatpush.msra.mxu0 0.0
      %1110 = vmatpush.msra.mxu0 0.0
      %1111 = vmatpush.msra.mxu0 0.0
      %1112 = vmatpush.msra.mxu0 0.0
      %1113 = vmatpush.msra.mxu0 0.0
      %1114 = vmatpush.msra.mxu0 0.0
      %1115 = vmatpush.msra.mxu0 0.0
      %1116 = vmatpush.msra.mxu0 %v1077
      %1117 = vmatmul.f32.gmra.mxu0 %v1073
      %v1118 = vpop.f32.mrf.mxu0
      %v1119 = vadd.f32 0.0, %v1118
      %1120 = vdwg.mxu0
      %1121 = vmatpush.msra.mxu0 0.0
      %1122 = vmatpush.msra.mxu0 0.0
      %1123 = vmatpush.msra.mxu0 0.0
      %1124 = vmatpush.msra.mxu0 0.0
      %1125 = vmatpush.msra.mxu0 0.0
      %1126 = vmatpush.msra.mxu0 0.0
      %1127 = vmatpush.msra.mxu0 0.0
      %1128 = vmatpush.msra.mxu0 0.0
      %1129 = vmatpush.msra.mxu0 0.0
      %1130 = vmatpush.msra.mxu0 0.0
      %1131 = vmatpush.msra.mxu0 0.0
      %1132 = vmatpush.msra.mxu0 0.0
      %1133 = vmatpush.msra.mxu0 0.0
      %1134 = vmatpush.msra.mxu0 0.0
      %1135 = vmatpush.msra.mxu0 0.0
      %1136 = vmatpush.msra.mxu0 %v1079
      %1137 = vmatmul.f32.gmra.mxu0 %v1073
      %v1138 = vpop.f32.mrf.mxu0
      %v1139 = vadd.f32 0.0, %v1138
      %1140 = vdwg.mxu0
      %v1141 = vadd.f32 %v1048, %v1099
      %v1142 = vadd.f32 %v1049, %v1119
      %v1143 = vadd.f32 %v1050, %v1139
      %v1144 = vld [vmem:[#allocation2] sm:$0xff]
      %v1145 = vld [vmem:[#allocation2 + $0x8] sm:$0xf]
      %s1146 = scalar_lea.vmem %s4, 28
      %v1147 = vld [vmem:[%s1146] sm:$0xf]
      %1150 = vst [vmem:[#allocation1] ss:$2 sm:$0xff] %v1144
      %s1151 = scalar_lea.vmem [#allocation1], 16
      %1152 = vst [vmem:[%s1151] ss:$2 sm:$0xff] %v1145
      %v1153 = vld.sshfl [vmem:[#allocation1] sm:$0xff pattern:$0x75316420]
      %v1154 = vld.sshfl [vmem:[#allocation1 + $0x8] sm:$0xff pattern:$0x75316420]
      %v1155 = vld.sshfl [vmem:[#allocation1 + $0x10] sm:$0xff pattern:$0x75316420]
      %1156 = vrot.lane.b32.xlu0 %v1153, 91
      %v1157 = vpop.permute.xlu0 %1156
      %1158 = vrot.lane.b32.xlu0 %v1154, 91
      %v1159 = vpop.permute.xlu0 %1158
      %1160 = vrot.lane.b32.xlu0 %v1155, 91
      %v1161 = vpop.permute.xlu0 %1160
      %vm1162 = vcmask 744448
      %v1163 = vsel %vm1162, %v1157, %v1159
      %v1164 = vsel %vm1162, %v1159, %v1161
      %v1166 = vsel %vm319, %v1147, 0
      %v1168 = vsel %vm323, %v1163, 0
      %v1170 = vsel %vm323, %v1164, 0
      %v1172 = vsel %vm323, %v1161, 0
      %1174 = vmatpush.msra.mxu0 0.0
      %1175 = vmatpush.msra.mxu0 0.0
      %1176 = vmatpush.msra.mxu0 0.0
      %1177 = vmatpush.msra.mxu0 0.0
      %1178 = vmatpush.msra.mxu0 0.0
      %1179 = vmatpush.msra.mxu0 0.0
      %1180 = vmatpush.msra.mxu0 0.0
      %1181 = vmatpush.msra.mxu0 0.0
      %1182 = vmatpush.msra.mxu0 0.0
      %1183 = vmatpush.msra.mxu0 0.0
      %1184 = vmatpush.msra.mxu0 0.0
      %1185 = vmatpush.msra.mxu0 0.0
      %1186 = vmatpush.msra.mxu0 0.0
      %1187 = vmatpush.msra.mxu0 0.0
      %1188 = vmatpush.msra.mxu0 0.0
      %1189 = vmatpush.msra.mxu0 %v1168
      %1190 = vmatmul.f32.gmra.mxu0 %v1166
      %v1191 = vpop.f32.mrf.mxu0
      %v1192 = vadd.f32 0.0, %v1191
      %1193 = vdwg.mxu0
      %1194 = vmatpush.msra.mxu0 0.0
      %1195 = vmatpush.msra.mxu0 0.0
      %1196 = vmatpush.msra.mxu0 0.0
      %1197 = vmatpush.msra.mxu0 0.0
      %1198 = vmatpush.msra.mxu0 0.0
      %1199 = vmatpush.msra.mxu0 0.0
      %1200 = vmatpush.msra.mxu0 0.0
      %1201 = vmatpush.msra.mxu0 0.0
      %1202 = vmatpush.msra.mxu0 0.0
      %1203 = vmatpush.msra.mxu0 0.0
      %1204 = vmatpush.msra.mxu0 0.0
      %1205 = vmatpush.msra.mxu0 0.0
      %1206 = vmatpush.msra.mxu0 0.0
      %1207 = vmatpush.msra.mxu0 0.0
      %1208 = vmatpush.msra.mxu0 0.0
      %1209 = vmatpush.msra.mxu0 %v1170
      %1210 = vmatmul.f32.gmra.mxu0 %v1166
      %v1211 = vpop.f32.mrf.mxu0
      %v1212 = vadd.f32 0.0, %v1211
      %1213 = vdwg.mxu0
      %1214 = vmatpush.msra.mxu0 0.0
      %1215 = vmatpush.msra.mxu0 0.0
      %1216 = vmatpush.msra.mxu0 0.0
      %1217 = vmatpush.msra.mxu0 0.0
      %1218 = vmatpush.msra.mxu0 0.0
      %1219 = vmatpush.msra.mxu0 0.0
      %1220 = vmatpush.msra.mxu0 0.0
      %1221 = vmatpush.msra.mxu0 0.0
      %1222 = vmatpush.msra.mxu0 0.0
      %1223 = vmatpush.msra.mxu0 0.0
      %1224 = vmatpush.msra.mxu0 0.0
      %1225 = vmatpush.msra.mxu0 0.0
      %1226 = vmatpush.msra.mxu0 0.0
      %1227 = vmatpush.msra.mxu0 0.0
      %1228 = vmatpush.msra.mxu0 0.0
      %1229 = vmatpush.msra.mxu0 %v1172
      %1230 = vmatmul.f32.gmra.mxu0 %v1166
      %v1231 = vpop.f32.mrf.mxu0
      %v1232 = vadd.f32 0.0, %v1231
      %1233 = vdwg.mxu0
      %v1234 = vadd.f32 %v1141, %v1192
      %v1235 = vadd.f32 %v1142, %v1212
      %v1236 = vadd.f32 %v1143, %v1232
      %v1237 = vld [vmem:[#allocation2] sm:$0xff]
      %v1238 = vld [vmem:[#allocation2 + $0x8] sm:$0xf]
      %s1239 = scalar_lea.vmem %s4, 32
      %v1240 = vld [vmem:[%s1239] sm:$0xf]
      %1243 = vst [vmem:[#allocation1] ss:$2 sm:$0xff] %v1237
      %s1244 = scalar_lea.vmem [#allocation1], 16
      %1245 = vst [vmem:[%s1244] ss:$2 sm:$0xff] %v1238
      %v1246 = vld.sshfl [vmem:[#allocation1] sm:$0xff pattern:$0x75316420]
      %v1247 = vld.sshfl [vmem:[#allocation1 + $0x8] sm:$0xff pattern:$0x75316420]
      %v1248 = vld.sshfl [vmem:[#allocation1 + $0x10] sm:$0xff pattern:$0x75316420]
      %1249 = vrot.lane.b32.xlu0 %v1246, 90
      %v1250 = vpop.permute.xlu0 %1249
      %1251 = vrot.lane.b32.xlu0 %v1247, 90
      %v1252 = vpop.permute.xlu0 %1251
      %1253 = vrot.lane.b32.xlu0 %v1248, 90
      %v1254 = vpop.permute.xlu0 %1253
      %vm1255 = vcmask 736256
      %v1256 = vsel %vm1255, %v1250, %v1252
      %v1257 = vsel %vm1255, %v1252, %v1254
      %v1259 = vsel %vm319, %v1240, 0
      %v1261 = vsel %vm323, %v1256, 0
      %v1263 = vsel %vm323, %v1257, 0
      %v1265 = vsel %vm323, %v1254, 0
      %1267 = vmatpush.msra.mxu0 0.0
      %1268 = vmatpush.msra.mxu0 0.0
      %1269 = vmatpush.msra.mxu0 0.0
      %1270 = vmatpush.msra.mxu0 0.0
      %1271 = vmatpush.msra.mxu0 0.0
      %1272 = vmatpush.msra.mxu0 0.0
      %1273 = vmatpush.msra.mxu0 0.0
      %1274 = vmatpush.msra.mxu0 0.0
      %1275 = vmatpush.msra.mxu0 0.0
      %1276 = vmatpush.msra.mxu0 0.0
      %1277 = vmatpush.msra.mxu0 0.0
      %1278 = vmatpush.msra.mxu0 0.0
      %1279 = vmatpush.msra.mxu0 0.0
      %1280 = vmatpush.msra.mxu0 0.0
      %1281 = vmatpush.msra.mxu0 0.0
      %1282 = vmatpush.msra.mxu0 %v1261
      %1283 = vmatmul.f32.gmra.mxu0 %v1259
      %v1284 = vpop.f32.mrf.mxu0
      %v1285 = vadd.f32 0.0, %v1284
      %1286 = vdwg.mxu0
      %1287 = vmatpush.msra.mxu0 0.0
      %1288 = vmatpush.msra.mxu0 0.0
      %1289 = vmatpush.msra.mxu0 0.0
      %1290 = vmatpush.msra.mxu0 0.0
      %1291 = vmatpush.msra.mxu0 0.0
      %1292 = vmatpush.msra.mxu0 0.0
      %1293 = vmatpush.msra.mxu0 0.0
      %1294 = vmatpush.msra.mxu0 0.0
      %1295 = vmatpush.msra.mxu0 0.0
      %1296 = vmatpush.msra.mxu0 0.0
      %1297 = vmatpush.msra.mxu0 0.0
      %1298 = vmatpush.msra.mxu0 0.0
      %1299 = vmatpush.msra.mxu0 0.0
      %1300 = vmatpush.msra.mxu0 0.0
      %1301 = vmatpush.msra.mxu0 0.0
      %1302 = vmatpush.msra.mxu0 %v1263
      %1303 = vmatmul.f32.gmra.mxu0 %v1259
      %v1304 = vpop.f32.mrf.mxu0
      %v1305 = vadd.f32 0.0, %v1304
      %1306 = vdwg.mxu0
      %1307 = vmatpush.msra.mxu0 0.0
      %1308 = vmatpush.msra.mxu0 0.0
      %1309 = vmatpush.msra.mxu0 0.0
      %1310 = vmatpush.msra.mxu0 0.0
      %1311 = vmatpush.msra.mxu0 0.0
      %1312 = vmatpush.msra.mxu0 0.0
      %1313 = vmatpush.msra.mxu0 0.0
      %1314 = vmatpush.msra.mxu0 0.0
      %1315 = vmatpush.msra.mxu0 0.0
      %1316 = vmatpush.msra.mxu0 0.0
      %1317 = vmatpush.msra.mxu0 0.0
      %1318 = vmatpush.msra.mxu0 0.0
      %1319 = vmatpush.msra.mxu0 0.0
      %1320 = vmatpush.msra.mxu0 0.0
      %1321 = vmatpush.msra.mxu0 0.0
      %1322 = vmatpush.msra.mxu0 %v1265
      %1323 = vmatmul.f32.gmra.mxu0 %v1259
      %v1324 = vpop.f32.mrf.mxu0
      %v1325 = vadd.f32 0.0, %v1324
      %1326 = vdwg.mxu0
      %v1327 = vadd.f32 %v1234, %v1285
      %v1328 = vadd.f32 %v1235, %v1305
      %v1329 = vadd.f32 %v1236, %v1325
      %v1330 = vld [vmem:[%s5] sm:$0xf]
      %1332 = vset.pattern.permute.xlu0 0
      %1333 = vperm.xlu0 %1332, %v1330
      %v1334 = vpop.permute.xlu0 %1333
      %v1336 = vadd.f32 %v1327, %v1334
      %v1337 = vadd.f32 %v1328, %v1334
      %v1338 = vadd.f32 %v1329, %v1334
      %v1339 = vmul.f32 %v1336, 0.2
      %v1340 = vmul.f32 %v1337, 0.2
      %v1341 = vmul.f32 %v1338, 0.2
      %v1342 = vmax.f32 %v1336, %v1339
      %v1343 = vmax.f32 %v1337, %v1340
      %v1344 = vmax.f32 %v1338, %v1341
      %v1345 = vmul.f32 %v1342, %v483
      %v1346 = vmul.f32 %v1343, %v484
      %v1347 = vmul.f32 %v1344, %v485
      %v1351 = vrot.slane %v1346, 4
      %v1352 = vsel %vm323, %v1345, %v1351
      %1353 = vrot.lane.b32.xlu0 %v1352, 19
      %v1354 = vpop.permute.xlu0 %1353
      %1355 = vrot.lane.b32.xlu0 %v1347, 19
      %v1356 = vpop.permute.xlu0 %1355
      %v1357 = vrot.slane %v1354, 4
      %v1358 = vsel %vm502, %v1357, %v1354
      %v1359 = vsel %vm502, %v1357, %v1356
      %1362 = vst.msk [vmem:[#allocation2] sm:$0xff] %vm509, %v1358
      %1363 = vst.msk [vmem:[#allocation2 + $0x8] sm:$0xf] %vm511, %v1359
      %v1364 = vld [vmem:[#allocation2] sm:$0xff]
      %v1365 = vld [vmem:[#allocation2 + $0x8] sm:$0xf]
      %s1366 = scalar_lea.vmem %s4, 36
      %v1367 = vld [vmem:[%s1366] sm:$0xf]
      %s1368 = scalar_lea.vmem %s4, 40
      %v1369 = vld [vmem:[%s1368] sm:$0xf]
      %1372 = vst [vmem:[#allocation1] ss:$2 sm:$0xff] %v1364
      %s1373 = scalar_lea.vmem [#allocation1], 16
      %1374 = vst [vmem:[%s1373] ss:$2 sm:$0xff] %v1365
      %v1375 = vld.sshfl [vmem:[#allocation1] sm:$0xff pattern:$0x75316420]
      %v1376 = vld.sshfl [vmem:[#allocation1 + $0x8] sm:$0xff pattern:$0x75316420]
      %v1377 = vld.sshfl [vmem:[#allocation1 + $0x10] sm:$0xff pattern:$0x75316420]
      %1378 = vrot.lane.b32.xlu0 %v1375, 127
      %v1379 = vpop.permute.xlu0 %1378
      %1380 = vrot.lane.b32.xlu0 %v1376, 127
      %v1381 = vpop.permute.xlu0 %1380
      %1382 = vrot.lane.b32.xlu0 %v1377, 127
      %v1383 = vpop.permute.xlu0 %1382
      %v1384 = vsel %vm532, %v1379, %v1381
      %v1385 = vsel %vm532, %v1381, %v1383
      %v1387 = vsel %vm319, %v1369, 0
      %v1389 = vsel %vm323, %v1384, 0
      %v1391 = vsel %vm323, %v1385, 0
      %v1393 = vsel %vm323, %v1383, 0
      %1395 = vmatpush.msra.mxu0 0.0
      %1396 = vmatpush.msra.mxu0 0.0
      %1397 = vmatpush.msra.mxu0 0.0
      %1398 = vmatpush.msra.mxu0 0.0
      %1399 = vmatpush.msra.mxu0 0.0
      %1400 = vmatpush.msra.mxu0 0.0
      %1401 = vmatpush.msra.mxu0 0.0
      %1402 = vmatpush.msra.mxu0 0.0
      %1403 = vmatpush.msra.mxu0 0.0
      %1404 = vmatpush.msra.mxu0 0.0
      %1405 = vmatpush.msra.mxu0 0.0
      %1406 = vmatpush.msra.mxu0 0.0
      %1407 = vmatpush.msra.mxu0 0.0
      %1408 = vmatpush.msra.mxu0 0.0
      %1409 = vmatpush.msra.mxu0 0.0
      %1410 = vmatpush.msra.mxu0 %v1389
      %1411 = vmatmul.f32.gmra.mxu0 %v1387
      %v1412 = vpop.f32.mrf.mxu0
      %v1413 = vadd.f32 0.0, %v1412
      %1414 = vdwg.mxu0
      %1415 = vmatpush.msra.mxu0 0.0
      %1416 = vmatpush.msra.mxu0 0.0
      %1417 = vmatpush.msra.mxu0 0.0
      %1418 = vmatpush.msra.mxu0 0.0
      %1419 = vmatpush.msra.mxu0 0.0
      %1420 = vmatpush.msra.mxu0 0.0
      %1421 = vmatpush.msra.mxu0 0.0
      %1422 = vmatpush.msra.mxu0 0.0
      %1423 = vmatpush.msra.mxu0 0.0
      %1424 = vmatpush.msra.mxu0 0.0
      %1425 = vmatpush.msra.mxu0 0.0
      %1426 = vmatpush.msra.mxu0 0.0
      %1427 = vmatpush.msra.mxu0 0.0
      %1428 = vmatpush.msra.mxu0 0.0
      %1429 = vmatpush.msra.mxu0 0.0
      %1430 = vmatpush.msra.mxu0 %v1391
      %1431 = vmatmul.f32.gmra.mxu0 %v1387
      %v1432 = vpop.f32.mrf.mxu0
      %v1433 = vadd.f32 0.0, %v1432
      %1434 = vdwg.mxu0
      %1435 = vmatpush.msra.mxu0 0.0
      %1436 = vmatpush.msra.mxu0 0.0
      %1437 = vmatpush.msra.mxu0 0.0
      %1438 = vmatpush.msra.mxu0 0.0
      %1439 = vmatpush.msra.mxu0 0.0
      %1440 = vmatpush.msra.mxu0 0.0
      %1441 = vmatpush.msra.mxu0 0.0
      %1442 = vmatpush.msra.mxu0 0.0
      %1443 = vmatpush.msra.mxu0 0.0
      %1444 = vmatpush.msra.mxu0 0.0
      %1445 = vmatpush.msra.mxu0 0.0
      %1446 = vmatpush.msra.mxu0 0.0
      %1447 = vmatpush.msra.mxu0 0.0
      %1448 = vmatpush.msra.mxu0 0.0
      %1449 = vmatpush.msra.mxu0 0.0
      %1450 = vmatpush.msra.mxu0 %v1393
      %1451 = vmatmul.f32.gmra.mxu0 %v1387
      %v1452 = vpop.f32.mrf.mxu0
      %v1453 = vadd.f32 0.0, %v1452
      %1454 = vdwg.mxu0
      %1455 = vst [vmem:[#allocation1] ss:$2 sm:$0xff] %v1364
      %s1456 = scalar_lea.vmem [#allocation1], 16
      %1457 = vst [vmem:[%s1456] ss:$2 sm:$0xff] %v1365
      %v1458 = vld.sshfl [vmem:[#allocation1] sm:$0xff pattern:$0x75316420]
      %v1459 = vld.sshfl [vmem:[#allocation1 + $0x8] sm:$0xff pattern:$0x75316420]
      %v1460 = vld.sshfl [vmem:[#allocation1 + $0x10] sm:$0xff pattern:$0x75316420]
      %v1462 = vsel %vm319, %v1367, 0
      %v1464 = vsel %vm323, %v1458, 0
      %v1466 = vsel %vm323, %v1459, 0
      %v1468 = vsel %vm323, %v1460, 0
      %1470 = vmatpush.msra.mxu0 0.0
      %1471 = vmatpush.msra.mxu0 0.0
      %1472 = vmatpush.msra.mxu0 0.0
      %1473 = vmatpush.msra.mxu0 0.0
      %1474 = vmatpush.msra.mxu0 0.0
      %1475 = vmatpush.msra.mxu0 0.0
      %1476 = vmatpush.msra.mxu0 0.0
      %1477 = vmatpush.msra.mxu0 0.0
      %1478 = vmatpush.msra.mxu0 0.0
      %1479 = vmatpush.msra.mxu0 0.0
      %1480 = vmatpush.msra.mxu0 0.0
      %1481 = vmatpush.msra.mxu0 0.0
      %1482 = vmatpush.msra.mxu0 0.0
      %1483 = vmatpush.msra.mxu0 0.0
      %1484 = vmatpush.msra.mxu0 0.0
      %1485 = vmatpush.msra.mxu0 %v1464
      %1486 = vmatmul.f32.gmra.mxu0 %v1462
      %v1487 = vpop.f32.mrf.mxu0
      %v1488 = vadd.f32 %v1413, %v1487
      %1489 = vdwg.mxu0
      %1490 = vmatpush.msra.mxu0 0.0
      %1491 = vmatpush.msra.mxu0 0.0
      %1492 = vmatpush.msra.mxu0 0.0
      %1493 = vmatpush.msra.mxu0 0.0
      %1494 = vmatpush.msra.mxu0 0.0
      %1495 = vmatpush.msra.mxu0 0.0
      %1496 = vmatpush.msra.mxu0 0.0
      %1497 = vmatpush.msra.mxu0 0.0
      %1498 = vmatpush.msra.mxu0 0.0
      %1499 = vmatpush.msra.mxu0 0.0
      %1500 = vmatpush.msra.mxu0 0.0
      %1501 = vmatpush.msra.mxu0 0.0
      %1502 = vmatpush.msra.mxu0 0.0
      %1503 = vmatpush.msra.mxu0 0.0
      %1504 = vmatpush.msra.mxu0 0.0
      %1505 = vmatpush.msra.mxu0 %v1466
      %1506 = vmatmul.f32.gmra.mxu0 %v1462
      %v1507 = vpop.f32.mrf.mxu0
      %v1508 = vadd.f32 %v1433, %v1507
      %1509 = vdwg.mxu0
      %1510 = vmatpush.msra.mxu0 0.0
      %1511 = vmatpush.msra.mxu0 0.0
      %1512 = vmatpush.msra.mxu0 0.0
      %1513 = vmatpush.msra.mxu0 0.0
      %1514 = vmatpush.msra.mxu0 0.0
      %1515 = vmatpush.msra.mxu0 0.0
      %1516 = vmatpush.msra.mxu0 0.0
      %1517 = vmatpush.msra.mxu0 0.0
      %1518 = vmatpush.msra.mxu0 0.0
      %1519 = vmatpush.msra.mxu0 0.0
      %1520 = vmatpush.msra.mxu0 0.0
      %1521 = vmatpush.msra.mxu0 0.0
      %1522 = vmatpush.msra.mxu0 0.0
      %1523 = vmatpush.msra.mxu0 0.0
      %1524 = vmatpush.msra.mxu0 0.0
      %1525 = vmatpush.msra.mxu0 %v1468
      %1526 = vmatmul.f32.gmra.mxu0 %v1462
      %v1527 = vpop.f32.mrf.mxu0
      %v1528 = vadd.f32 %v1453, %v1527
      %1529 = vdwg.mxu0
      %v1530 = vld [vmem:[#allocation2] sm:$0xff]
      %v1531 = vld [vmem:[#allocation2 + $0x8] sm:$0xf]
      %s1532 = scalar_lea.vmem %s4, 44
      %v1533 = vld [vmem:[%s1532] sm:$0xf]
      %1536 = vst [vmem:[#allocation1] ss:$2 sm:$0xff] %v1530
      %s1537 = scalar_lea.vmem [#allocation1], 16
      %1538 = vst [vmem:[%s1537] ss:$2 sm:$0xff] %v1531
      %v1539 = vld.sshfl [vmem:[#allocation1] sm:$0xff pattern:$0x75316420]
      %v1540 = vld.sshfl [vmem:[#allocation1 + $0x8] sm:$0xff pattern:$0x75316420]
      %v1541 = vld.sshfl [vmem:[#allocation1 + $0x10] sm:$0xff pattern:$0x75316420]
      %1542 = vrot.lane.b32.xlu0 %v1539, 126
      %v1543 = vpop.permute.xlu0 %1542
      %1544 = vrot.lane.b32.xlu0 %v1540, 126
      %v1545 = vpop.permute.xlu0 %1544
      %1546 = vrot.lane.b32.xlu0 %v1541, 126
      %v1547 = vpop.permute.xlu0 %1546
      %v1548 = vsel %vm697, %v1543, %v1545
      %v1549 = vsel %vm697, %v1545, %v1547
      %v1551 = vsel %vm319, %v1533, 0
      %v1553 = vsel %vm323, %v1548, 0
      %v1555 = vsel %vm323, %v1549, 0
      %v1557 = vsel %vm323, %v1547, 0
      %1559 = vmatpush.msra.mxu0 0.0
      %1560 = vmatpush.msra.mxu0 0.0
      %1561 = vmatpush.msra.mxu0 0.0
      %1562 = vmatpush.msra.mxu0 0.0
      %1563 = vmatpush.msra.mxu0 0.0
      %1564 = vmatpush.msra.mxu0 0.0
      %1565 = vmatpush.msra.mxu0 0.0
      %1566 = vmatpush.msra.mxu0 0.0
      %1567 = vmatpush.msra.mxu0 0.0
      %1568 = vmatpush.msra.mxu0 0.0
      %1569 = vmatpush.msra.mxu0 0.0
      %1570 = vmatpush.msra.mxu0 0.0
      %1571 = vmatpush.msra.mxu0 0.0
      %1572 = vmatpush.msra.mxu0 0.0
      %1573 = vmatpush.msra.mxu0 0.0
      %1574 = vmatpush.msra.mxu0 %v1553
      %1575 = vmatmul.f32.gmra.mxu0 %v1551
      %v1576 = vpop.f32.mrf.mxu0
      %v1577 = vadd.f32 0.0, %v1576
      %1578 = vdwg.mxu0
      %1579 = vmatpush.msra.mxu0 0.0
      %1580 = vmatpush.msra.mxu0 0.0
      %1581 = vmatpush.msra.mxu0 0.0
      %1582 = vmatpush.msra.mxu0 0.0
      %1583 = vmatpush.msra.mxu0 0.0
      %1584 = vmatpush.msra.mxu0 0.0
      %1585 = vmatpush.msra.mxu0 0.0
      %1586 = vmatpush.msra.mxu0 0.0
      %1587 = vmatpush.msra.mxu0 0.0
      %1588 = vmatpush.msra.mxu0 0.0
      %1589 = vmatpush.msra.mxu0 0.0
      %1590 = vmatpush.msra.mxu0 0.0
      %1591 = vmatpush.msra.mxu0 0.0
      %1592 = vmatpush.msra.mxu0 0.0
      %1593 = vmatpush.msra.mxu0 0.0
      %1594 = vmatpush.msra.mxu0 %v1555
      %1595 = vmatmul.f32.gmra.mxu0 %v1551
      %v1596 = vpop.f32.mrf.mxu0
      %v1597 = vadd.f32 0.0, %v1596
      %1598 = vdwg.mxu0
      %1599 = vmatpush.msra.mxu0 0.0
      %1600 = vmatpush.msra.mxu0 0.0
      %1601 = vmatpush.msra.mxu0 0.0
      %1602 = vmatpush.msra.mxu0 0.0
      %1603 = vmatpush.msra.mxu0 0.0
      %1604 = vmatpush.msra.mxu0 0.0
      %1605 = vmatpush.msra.mxu0 0.0
      %1606 = vmatpush.msra.mxu0 0.0
      %1607 = vmatpush.msra.mxu0 0.0
      %1608 = vmatpush.msra.mxu0 0.0
      %1609 = vmatpush.msra.mxu0 0.0
      %1610 = vmatpush.msra.mxu0 0.0
      %1611 = vmatpush.msra.mxu0 0.0
      %1612 = vmatpush.msra.mxu0 0.0
      %1613 = vmatpush.msra.mxu0 0.0
      %1614 = vmatpush.msra.mxu0 %v1557
      %1615 = vmatmul.f32.gmra.mxu0 %v1551
      %v1616 = vpop.f32.mrf.mxu0
      %v1617 = vadd.f32 0.0, %v1616
      %1618 = vdwg.mxu0
      %v1619 = vadd.f32 %v1488, %v1577
      %v1620 = vadd.f32 %v1508, %v1597
      %v1621 = vadd.f32 %v1528, %v1617
      %v1622 = vld [vmem:[#allocation2] sm:$0xff]
      %v1623 = vld [vmem:[#allocation2 + $0x8] sm:$0xf]
      %s1624 = scalar_lea.vmem %s4, 48
      %v1625 = vld [vmem:[%s1624] sm:$0xf]
      %1628 = vst [vmem:[#allocation1] ss:$2 sm:$0xff] %v1622
      %s1629 = scalar_lea.vmem [#allocation1], 16
      %1630 = vst [vmem:[%s1629] ss:$2 sm:$0xff] %v1623
      %v1631 = vld.sshfl [vmem:[#allocation1] sm:$0xff pattern:$0x75316420]
      %v1632 = vld.sshfl [vmem:[#allocation1 + $0x8] sm:$0xff pattern:$0x75316420]
      %v1633 = vld.sshfl [vmem:[#allocation1 + $0x10] sm:$0xff pattern:$0x75316420]
      %1634 = vrot.lane.b32.xlu0 %v1631, 110
      %v1635 = vpop.permute.xlu0 %1634
      %1636 = vrot.lane.b32.xlu0 %v1632, 110
      %v1637 = vpop.permute.xlu0 %1636
      %1638 = vrot.lane.b32.xlu0 %v1633, 110
      %v1639 = vpop.permute.xlu0 %1638
      %v1640 = vsel %vm790, %v1635, %v1637
      %v1641 = vsel %vm790, %v1637, %v1639
      %v1643 = vsel %vm319, %v1625, 0
      %v1645 = vsel %vm323, %v1640, 0
      %v1647 = vsel %vm323, %v1641, 0
      %v1649 = vsel %vm323, %v1639, 0
      %1651 = vmatpush.msra.mxu0 0.0
      %1652 = vmatpush.msra.mxu0 0.0
      %1653 = vmatpush.msra.mxu0 0.0
      %1654 = vmatpush.msra.mxu0 0.0
      %1655 = vmatpush.msra.mxu0 0.0
      %1656 = vmatpush.msra.mxu0 0.0
      %1657 = vmatpush.msra.mxu0 0.0
      %1658 = vmatpush.msra.mxu0 0.0
      %1659 = vmatpush.msra.mxu0 0.0
      %1660 = vmatpush.msra.mxu0 0.0
      %1661 = vmatpush.msra.mxu0 0.0
      %1662 = vmatpush.msra.mxu0 0.0
      %1663 = vmatpush.msra.mxu0 0.0
      %1664 = vmatpush.msra.mxu0 0.0
      %1665 = vmatpush.msra.mxu0 0.0
      %1666 = vmatpush.msra.mxu0 %v1645
      %1667 = vmatmul.f32.gmra.mxu0 %v1643
      %v1668 = vpop.f32.mrf.mxu0
      %v1669 = vadd.f32 0.0, %v1668
      %1670 = vdwg.mxu0
      %1671 = vmatpush.msra.mxu0 0.0
      %1672 = vmatpush.msra.mxu0 0.0
      %1673 = vmatpush.msra.mxu0 0.0
      %1674 = vmatpush.msra.mxu0 0.0
      %1675 = vmatpush.msra.mxu0 0.0
      %1676 = vmatpush.msra.mxu0 0.0
      %1677 = vmatpush.msra.mxu0 0.0
      %1678 = vmatpush.msra.mxu0 0.0
      %1679 = vmatpush.msra.mxu0 0.0
      %1680 = vmatpush.msra.mxu0 0.0
      %1681 = vmatpush.msra.mxu0 0.0
      %1682 = vmatpush.msra.mxu0 0.0
      %1683 = vmatpush.msra.mxu0 0.0
      %1684 = vmatpush.msra.mxu0 0.0
      %1685 = vmatpush.msra.mxu0 0.0
      %1686 = vmatpush.msra.mxu0 %v1647
      %1687 = vmatmul.f32.gmra.mxu0 %v1643
      %v1688 = vpop.f32.mrf.mxu0
      %v1689 = vadd.f32 0.0, %v1688
      %1690 = vdwg.mxu0
      %1691 = vmatpush.msra.mxu0 0.0
      %1692 = vmatpush.msra.mxu0 0.0
      %1693 = vmatpush.msra.mxu0 0.0
      %1694 = vmatpush.msra.mxu0 0.0
      %1695 = vmatpush.msra.mxu0 0.0
      %1696 = vmatpush.msra.mxu0 0.0
      %1697 = vmatpush.msra.mxu0 0.0
      %1698 = vmatpush.msra.mxu0 0.0
      %1699 = vmatpush.msra.mxu0 0.0
      %1700 = vmatpush.msra.mxu0 0.0
      %1701 = vmatpush.msra.mxu0 0.0
      %1702 = vmatpush.msra.mxu0 0.0
      %1703 = vmatpush.msra.mxu0 0.0
      %1704 = vmatpush.msra.mxu0 0.0
      %1705 = vmatpush.msra.mxu0 0.0
      %1706 = vmatpush.msra.mxu0 %v1649
      %1707 = vmatmul.f32.gmra.mxu0 %v1643
      %v1708 = vpop.f32.mrf.mxu0
      %v1709 = vadd.f32 0.0, %v1708
      %1710 = vdwg.mxu0
      %v1711 = vadd.f32 %v1619, %v1669
      %v1712 = vadd.f32 %v1620, %v1689
      %v1713 = vadd.f32 %v1621, %v1709
      %v1714 = vld [vmem:[#allocation2] sm:$0xff]
      %v1715 = vld [vmem:[#allocation2 + $0x8] sm:$0xf]
      %s1716 = scalar_lea.vmem %s4, 52
      %v1717 = vld [vmem:[%s1716] sm:$0xf]
      %1720 = vst [vmem:[#allocation1] ss:$2 sm:$0xff] %v1714
      %s1721 = scalar_lea.vmem [#allocation1], 16
      %1722 = vst [vmem:[%s1721] ss:$2 sm:$0xff] %v1715
      %v1723 = vld.sshfl [vmem:[#allocation1] sm:$0xff pattern:$0x75316420]
      %v1724 = vld.sshfl [vmem:[#allocation1 + $0x8] sm:$0xff pattern:$0x75316420]
      %v1725 = vld.sshfl [vmem:[#allocation1 + $0x10] sm:$0xff pattern:$0x75316420]
      %1726 = vrot.lane.b32.xlu0 %v1723, 109
      %v1727 = vpop.permute.xlu0 %1726
      %1728 = vrot.lane.b32.xlu0 %v1724, 109
      %v1729 = vpop.permute.xlu0 %1728
      %1730 = vrot.lane.b32.xlu0 %v1725, 109
      %v1731 = vpop.permute.xlu0 %1730
      %v1732 = vsel %vm883, %v1727, %v1729
      %v1733 = vsel %vm883, %v1729, %v1731
      %v1735 = vsel %vm319, %v1717, 0
      %v1737 = vsel %vm323, %v1732, 0
      %v1739 = vsel %vm323, %v1733, 0
      %v1741 = vsel %vm323, %v1731, 0
      %1743 = vmatpush.msra.mxu0 0.0
      %1744 = vmatpush.msra.mxu0 0.0
      %1745 = vmatpush.msra.mxu0 0.0
      %1746 = vmatpush.msra.mxu0 0.0
      %1747 = vmatpush.msra.mxu0 0.0
      %1748 = vmatpush.msra.mxu0 0.0
      %1749 = vmatpush.msra.mxu0 0.0
      %1750 = vmatpush.msra.mxu0 0.0
      %1751 = vmatpush.msra.mxu0 0.0
      %1752 = vmatpush.msra.mxu0 0.0
      %1753 = vmatpush.msra.mxu0 0.0
      %1754 = vmatpush.msra.mxu0 0.0
      %1755 = vmatpush.msra.mxu0 0.0
      %1756 = vmatpush.msra.mxu0 0.0
      %1757 = vmatpush.msra.mxu0 0.0
      %1758 = vmatpush.msra.mxu0 %v1737
      %1759 = vmatmul.f32.gmra.mxu0 %v1735
      %v1760 = vpop.f32.mrf.mxu0
      %v1761 = vadd.f32 0.0, %v1760
      %1762 = vdwg.mxu0
      %1763 = vmatpush.msra.mxu0 0.0
      %1764 = vmatpush.msra.mxu0 0.0
      %1765 = vmatpush.msra.mxu0 0.0
      %1766 = vmatpush.msra.mxu0 0.0
      %1767 = vmatpush.msra.mxu0 0.0
      %1768 = vmatpush.msra.mxu0 0.0
      %1769 = vmatpush.msra.mxu0 0.0
      %1770 = vmatpush.msra.mxu0 0.0
      %1771 = vmatpush.msra.mxu0 0.0
      %1772 = vmatpush.msra.mxu0 0.0
      %1773 = vmatpush.msra.mxu0 0.0
      %1774 = vmatpush.msra.mxu0 0.0
      %1775 = vmatpush.msra.mxu0 0.0
      %1776 = vmatpush.msra.mxu0 0.0
      %1777 = vmatpush.msra.mxu0 0.0
      %1778 = vmatpush.msra.mxu0 %v1739
      %1779 = vmatmul.f32.gmra.mxu0 %v1735
      %v1780 = vpop.f32.mrf.mxu0
      %v1781 = vadd.f32 0.0, %v1780
      %1782 = vdwg.mxu0
      %1783 = vmatpush.msra.mxu0 0.0
      %1784 = vmatpush.msra.mxu0 0.0
      %1785 = vmatpush.msra.mxu0 0.0
      %1786 = vmatpush.msra.mxu0 0.0
      %1787 = vmatpush.msra.mxu0 0.0
      %1788 = vmatpush.msra.mxu0 0.0
      %1789 = vmatpush.msra.mxu0 0.0
      %1790 = vmatpush.msra.mxu0 0.0
      %1791 = vmatpush.msra.mxu0 0.0
      %1792 = vmatpush.msra.mxu0 0.0
      %1793 = vmatpush.msra.mxu0 0.0
      %1794 = vmatpush.msra.mxu0 0.0
      %1795 = vmatpush.msra.mxu0 0.0
      %1796 = vmatpush.msra.mxu0 0.0
      %1797 = vmatpush.msra.mxu0 0.0
      %1798 = vmatpush.msra.mxu0 %v1741
      %1799 = vmatmul.f32.gmra.mxu0 %v1735
      %v1800 = vpop.f32.mrf.mxu0
      %v1801 = vadd.f32 0.0, %v1800
      %1802 = vdwg.mxu0
      %v1803 = vadd.f32 %v1711, %v1761
      %v1804 = vadd.f32 %v1712, %v1781
      %v1805 = vadd.f32 %v1713, %v1801
      %v1806 = vld [vmem:[#allocation2] sm:$0xff]
      %v1807 = vld [vmem:[#allocation2 + $0x8] sm:$0xf]
      %s1808 = scalar_lea.vmem %s4, 56
      %v1809 = vld [vmem:[%s1808] sm:$0xf]
      %1812 = vst [vmem:[#allocation1] ss:$2 sm:$0xff] %v1806
      %s1813 = scalar_lea.vmem [#allocation1], 16
      %1814 = vst [vmem:[%s1813] ss:$2 sm:$0xff] %v1807
      %v1815 = vld.sshfl [vmem:[#allocation1] sm:$0xff pattern:$0x75316420]
      %v1816 = vld.sshfl [vmem:[#allocation1 + $0x8] sm:$0xff pattern:$0x75316420]
      %v1817 = vld.sshfl [vmem:[#allocation1 + $0x10] sm:$0xff pattern:$0x75316420]
      %1818 = vrot.lane.b32.xlu0 %v1815, 108
      %v1819 = vpop.permute.xlu0 %1818
      %1820 = vrot.lane.b32.xlu0 %v1816, 108
      %v1821 = vpop.permute.xlu0 %1820
      %1822 = vrot.lane.b32.xlu0 %v1817, 108
      %v1823 = vpop.permute.xlu0 %1822
      %v1824 = vsel %vm976, %v1819, %v1821
      %v1825 = vsel %vm976, %v1821, %v1823
      %v1827 = vsel %vm319, %v1809, 0
      %v1829 = vsel %vm323, %v1824, 0
      %v1831 = vsel %vm323, %v1825, 0
      %v1833 = vsel %vm323, %v1823, 0
      %1835 = vmatpush.msra.mxu0 0.0
      %1836 = vmatpush.msra.mxu0 0.0
      %1837 = vmatpush.msra.mxu0 0.0
      %1838 = vmatpush.msra.mxu0 0.0
      %1839 = vmatpush.msra.mxu0 0.0
      %1840 = vmatpush.msra.mxu0 0.0
      %1841 = vmatpush.msra.mxu0 0.0
      %1842 = vmatpush.msra.mxu0 0.0
      %1843 = vmatpush.msra.mxu0 0.0
      %1844 = vmatpush.msra.mxu0 0.0
      %1845 = vmatpush.msra.mxu0 0.0
      %1846 = vmatpush.msra.mxu0 0.0
      %1847 = vmatpush.msra.mxu0 0.0
      %1848 = vmatpush.msra.mxu0 0.0
      %1849 = vmatpush.msra.mxu0 0.0
      %1850 = vmatpush.msra.mxu0 %v1829
      %1851 = vmatmul.f32.gmra.mxu0 %v1827
      %v1852 = vpop.f32.mrf.mxu0
      %v1853 = vadd.f32 0.0, %v1852
      %1854 = vdwg.mxu0
      %1855 = vmatpush.msra.mxu0 0.0
      %1856 = vmatpush.msra.mxu0 0.0
      %1857 = vmatpush.msra.mxu0 0.0
      %1858 = vmatpush.msra.mxu0 0.0
      %1859 = vmatpush.msra.mxu0 0.0
      %1860 = vmatpush.msra.mxu0 0.0
      %1861 = vmatpush.msra.mxu0 0.0
      %1862 = vmatpush.msra.mxu0 0.0
      %1863 = vmatpush.msra.mxu0 0.0
      %1864 = vmatpush.msra.mxu0 0.0
      %1865 = vmatpush.msra.mxu0 0.0
      %1866 = vmatpush.msra.mxu0 0.0
      %1867 = vmatpush.msra.mxu0 0.0
      %1868 = vmatpush.msra.mxu0 0.0
      %1869 = vmatpush.msra.mxu0 0.0
      %1870 = vmatpush.msra.mxu0 %v1831
      %1871 = vmatmul.f32.gmra.mxu0 %v1827
      %v1872 = vpop.f32.mrf.mxu0
      %v1873 = vadd.f32 0.0, %v1872
      %1874 = vdwg.mxu0
      %1875 = vmatpush.msra.mxu0 0.0
      %1876 = vmatpush.msra.mxu0 0.0
      %1877 = vmatpush.msra.mxu0 0.0
      %1878 = vmatpush.msra.mxu0 0.0
      %1879 = vmatpush.msra.mxu0 0.0
      %1880 = vmatpush.msra.mxu0 0.0
      %1881 = vmatpush.msra.mxu0 0.0
      %1882 = vmatpush.msra.mxu0 0.0
      %1883 = vmatpush.msra.mxu0 0.0
      %1884 = vmatpush.msra.mxu0 0.0
      %1885 = vmatpush.msra.mxu0 0.0
      %1886 = vmatpush.msra.mxu0 0.0
      %1887 = vmatpush.msra.mxu0 0.0
      %1888 = vmatpush.msra.mxu0 0.0
      %1889 = vmatpush.msra.mxu0 0.0
      %1890 = vmatpush.msra.mxu0 %v1833
      %1891 = vmatmul.f32.gmra.mxu0 %v1827
      %v1892 = vpop.f32.mrf.mxu0
      %v1893 = vadd.f32 0.0, %v1892
      %1894 = vdwg.mxu0
      %v1895 = vadd.f32 %v1803, %v1853
      %v1896 = vadd.f32 %v1804, %v1873
      %v1897 = vadd.f32 %v1805, %v1893
      %v1898 = vld [vmem:[#allocation2] sm:$0xff]
      %v1899 = vld [vmem:[#allocation2 + $0x8] sm:$0xf]
      %s1900 = scalar_lea.vmem %s4, 60
      %v1901 = vld [vmem:[%s1900] sm:$0xf]
      %1904 = vst [vmem:[#allocation1] ss:$2 sm:$0xff] %v1898
      %s1905 = scalar_lea.vmem [#allocation1], 16
      %1906 = vst [vmem:[%s1905] ss:$2 sm:$0xff] %v1899
      %v1907 = vld.sshfl [vmem:[#allocation1] sm:$0xff pattern:$0x75316420]
      %v1908 = vld.sshfl [vmem:[#allocation1 + $0x8] sm:$0xff pattern:$0x75316420]
      %v1909 = vld.sshfl [vmem:[#allocation1 + $0x10] sm:$0xff pattern:$0x75316420]
      %1910 = vrot.lane.b32.xlu0 %v1907, 92
      %v1911 = vpop.permute.xlu0 %1910
      %1912 = vrot.lane.b32.xlu0 %v1908, 92
      %v1913 = vpop.permute.xlu0 %1912
      %1914 = vrot.lane.b32.xlu0 %v1909, 92
      %v1915 = vpop.permute.xlu0 %1914
      %v1916 = vsel %vm1069, %v1911, %v1913
      %v1917 = vsel %vm1069, %v1913, %v1915
      %v1919 = vsel %vm319, %v1901, 0
      %v1921 = vsel %vm323, %v1916, 0
      %v1923 = vsel %vm323, %v1917, 0
      %v1925 = vsel %vm323, %v1915, 0
      %1927 = vmatpush.msra.mxu0 0.0
      %1928 = vmatpush.msra.mxu0 0.0
      %1929 = vmatpush.msra.mxu0 0.0
      %1930 = vmatpush.msra.mxu0 0.0
      %1931 = vmatpush.msra.mxu0 0.0
      %1932 = vmatpush.msra.mxu0 0.0
      %1933 = vmatpush.msra.mxu0 0.0
      %1934 = vmatpush.msra.mxu0 0.0
      %1935 = vmatpush.msra.mxu0 0.0
      %1936 = vmatpush.msra.mxu0 0.0
      %1937 = vmatpush.msra.mxu0 0.0
      %1938 = vmatpush.msra.mxu0 0.0
      %1939 = vmatpush.msra.mxu0 0.0
      %1940 = vmatpush.msra.mxu0 0.0
      %1941 = vmatpush.msra.mxu0 0.0
      %1942 = vmatpush.msra.mxu0 %v1921
      %1943 = vmatmul.f32.gmra.mxu0 %v1919
      %v1944 = vpop.f32.mrf.mxu0
      %v1945 = vadd.f32 0.0, %v1944
      %1946 = vdwg.mxu0
      %1947 = vmatpush.msra.mxu0 0.0
      %1948 = vmatpush.msra.mxu0 0.0
      %1949 = vmatpush.msra.mxu0 0.0
      %1950 = vmatpush.msra.mxu0 0.0
      %1951 = vmatpush.msra.mxu0 0.0
      %1952 = vmatpush.msra.mxu0 0.0
      %1953 = vmatpush.msra.mxu0 0.0
      %1954 = vmatpush.msra.mxu0 0.0
      %1955 = vmatpush.msra.mxu0 0.0
      %1956 = vmatpush.msra.mxu0 0.0
      %1957 = vmatpush.msra.mxu0 0.0
      %1958 = vmatpush.msra.mxu0 0.0
      %1959 = vmatpush.msra.mxu0 0.0
      %1960 = vmatpush.msra.mxu0 0.0
      %1961 = vmatpush.msra.mxu0 0.0
      %1962 = vmatpush.msra.mxu0 %v1923
      %1963 = vmatmul.f32.gmra.mxu0 %v1919
      %v1964 = vpop.f32.mrf.mxu0
      %v1965 = vadd.f32 0.0, %v1964
      %1966 = vdwg.mxu0
      %1967 = vmatpush.msra.mxu0 0.0
      %1968 = vmatpush.msra.mxu0 0.0
      %1969 = vmatpush.msra.mxu0 0.0
      %1970 = vmatpush.msra.mxu0 0.0
      %1971 = vmatpush.msra.mxu0 0.0
      %1972 = vmatpush.msra.mxu0 0.0
      %1973 = vmatpush.msra.mxu0 0.0
      %1974 = vmatpush.msra.mxu0 0.0
      %1975 = vmatpush.msra.mxu0 0.0
      %1976 = vmatpush.msra.mxu0 0.0
      %1977 = vmatpush.msra.mxu0 0.0
      %1978 = vmatpush.msra.mxu0 0.0
      %1979 = vmatpush.msra.mxu0 0.0
      %1980 = vmatpush.msra.mxu0 0.0
      %1981 = vmatpush.msra.mxu0 0.0
      %1982 = vmatpush.msra.mxu0 %v1925
      %1983 = vmatmul.f32.gmra.mxu0 %v1919
      %v1984 = vpop.f32.mrf.mxu0
      %v1985 = vadd.f32 0.0, %v1984
      %1986 = vdwg.mxu0
      %v1987 = vadd.f32 %v1895, %v1945
      %v1988 = vadd.f32 %v1896, %v1965
      %v1989 = vadd.f32 %v1897, %v1985
      %v1990 = vld [vmem:[#allocation2] sm:$0xff]
      %v1991 = vld [vmem:[#allocation2 + $0x8] sm:$0xf]
      %s1992 = scalar_lea.vmem %s4, 64
      %v1993 = vld [vmem:[%s1992] sm:$0xf]
      %1996 = vst [vmem:[#allocation1] ss:$2 sm:$0xff] %v1990
      %s1997 = scalar_lea.vmem [#allocation1], 16
      %1998 = vst [vmem:[%s1997] ss:$2 sm:$0xff] %v1991
      %v1999 = vld.sshfl [vmem:[#allocation1] sm:$0xff pattern:$0x75316420]
      %v2000 = vld.sshfl [vmem:[#allocation1 + $0x8] sm:$0xff pattern:$0x75316420]
      %v2001 = vld.sshfl [vmem:[#allocation1 + $0x10] sm:$0xff pattern:$0x75316420]
      %2002 = vrot.lane.b32.xlu0 %v1999, 91
      %v2003 = vpop.permute.xlu0 %2002
      %2004 = vrot.lane.b32.xlu0 %v2000, 91
      %v2005 = vpop.permute.xlu0 %2004
      %2006 = vrot.lane.b32.xlu0 %v2001, 91
      %v2007 = vpop.permute.xlu0 %2006
      %v2008 = vsel %vm1162, %v2003, %v2005
      %v2009 = vsel %vm1162, %v2005, %v2007
      %v2011 = vsel %vm319, %v1993, 0
      %v2013 = vsel %vm323, %v2008, 0
      %v2015 = vsel %vm323, %v2009, 0
      %v2017 = vsel %vm323, %v2007, 0
      %2019 = vmatpush.msra.mxu0 0.0
      %2020 = vmatpush.msra.mxu0 0.0
      %2021 = vmatpush.msra.mxu0 0.0
      %2022 = vmatpush.msra.mxu0 0.0
      %2023 = vmatpush.msra.mxu0 0.0
      %2024 = vmatpush.msra.mxu0 0.0
      %2025 = vmatpush.msra.mxu0 0.0
      %2026 = vmatpush.msra.mxu0 0.0
      %2027 = vmatpush.msra.mxu0 0.0
      %2028 = vmatpush.msra.mxu0 0.0
      %2029 = vmatpush.msra.mxu0 0.0
      %2030 = vmatpush.msra.mxu0 0.0
      %2031 = vmatpush.msra.mxu0 0.0
      %2032 = vmatpush.msra.mxu0 0.0
      %2033 = vmatpush.msra.mxu0 0.0
      %2034 = vmatpush.msra.mxu0 %v2013
      %2035 = vmatmul.f32.gmra.mxu0 %v2011
      %v2036 = vpop.f32.mrf.mxu0
      %v2037 = vadd.f32 0.0, %v2036
      %2038 = vdwg.mxu0
      %2039 = vmatpush.msra.mxu0 0.0
      %2040 = vmatpush.msra.mxu0 0.0
      %2041 = vmatpush.msra.mxu0 0.0
      %2042 = vmatpush.msra.mxu0 0.0
      %2043 = vmatpush.msra.mxu0 0.0
      %2044 = vmatpush.msra.mxu0 0.0
      %2045 = vmatpush.msra.mxu0 0.0
      %2046 = vmatpush.msra.mxu0 0.0
      %2047 = vmatpush.msra.mxu0 0.0
      %2048 = vmatpush.msra.mxu0 0.0
      %2049 = vmatpush.msra.mxu0 0.0
      %2050 = vmatpush.msra.mxu0 0.0
      %2051 = vmatpush.msra.mxu0 0.0
      %2052 = vmatpush.msra.mxu0 0.0
      %2053 = vmatpush.msra.mxu0 0.0
      %2054 = vmatpush.msra.mxu0 %v2015
      %2055 = vmatmul.f32.gmra.mxu0 %v2011
      %v2056 = vpop.f32.mrf.mxu0
      %v2057 = vadd.f32 0.0, %v2056
      %2058 = vdwg.mxu0
      %2059 = vmatpush.msra.mxu0 0.0
      %2060 = vmatpush.msra.mxu0 0.0
      %2061 = vmatpush.msra.mxu0 0.0
      %2062 = vmatpush.msra.mxu0 0.0
      %2063 = vmatpush.msra.mxu0 0.0
      %2064 = vmatpush.msra.mxu0 0.0
      %2065 = vmatpush.msra.mxu0 0.0
      %2066 = vmatpush.msra.mxu0 0.0
      %2067 = vmatpush.msra.mxu0 0.0
      %2068 = vmatpush.msra.mxu0 0.0
      %2069 = vmatpush.msra.mxu0 0.0
      %2070 = vmatpush.msra.mxu0 0.0
      %2071 = vmatpush.msra.mxu0 0.0
      %2072 = vmatpush.msra.mxu0 0.0
      %2073 = vmatpush.msra.mxu0 0.0
      %2074 = vmatpush.msra.mxu0 %v2017
      %2075 = vmatmul.f32.gmra.mxu0 %v2011
      %v2076 = vpop.f32.mrf.mxu0
      %v2077 = vadd.f32 0.0, %v2076
      %2078 = vdwg.mxu0
      %v2079 = vadd.f32 %v1987, %v2037
      %v2080 = vadd.f32 %v1988, %v2057
      %v2081 = vadd.f32 %v1989, %v2077
      %v2082 = vld [vmem:[#allocation2] sm:$0xff]
      %v2083 = vld [vmem:[#allocation2 + $0x8] sm:$0xf]
      %s2084 = scalar_lea.vmem %s4, 68
      %v2085 = vld [vmem:[%s2084] sm:$0xf]
      %2088 = vst [vmem:[#allocation1] ss:$2 sm:$0xff] %v2082
      %s2089 = scalar_lea.vmem [#allocation1], 16
      %2090 = vst [vmem:[%s2089] ss:$2 sm:$0xff] %v2083
      %v2091 = vld.sshfl [vmem:[#allocation1] sm:$0xff pattern:$0x75316420]
      %v2092 = vld.sshfl [vmem:[#allocation1 + $0x8] sm:$0xff pattern:$0x75316420]
      %v2093 = vld.sshfl [vmem:[#allocation1 + $0x10] sm:$0xff pattern:$0x75316420]
      %2094 = vrot.lane.b32.xlu0 %v2091, 90
      %v2095 = vpop.permute.xlu0 %2094
      %2096 = vrot.lane.b32.xlu0 %v2092, 90
      %v2097 = vpop.permute.xlu0 %2096
      %2098 = vrot.lane.b32.xlu0 %v2093, 90
      %v2099 = vpop.permute.xlu0 %2098
      %v2100 = vsel %vm1255, %v2095, %v2097
      %v2101 = vsel %vm1255, %v2097, %v2099
      %v2103 = vsel %vm319, %v2085, 0
      %v2105 = vsel %vm323, %v2100, 0
      %v2107 = vsel %vm323, %v2101, 0
      %v2109 = vsel %vm323, %v2099, 0
      %2111 = vmatpush.msra.mxu0 0.0
      %2112 = vmatpush.msra.mxu0 0.0
      %2113 = vmatpush.msra.mxu0 0.0
      %2114 = vmatpush.msra.mxu0 0.0
      %2115 = vmatpush.msra.mxu0 0.0
      %2116 = vmatpush.msra.mxu0 0.0
      %2117 = vmatpush.msra.mxu0 0.0
      %2118 = vmatpush.msra.mxu0 0.0
      %2119 = vmatpush.msra.mxu0 0.0
      %2120 = vmatpush.msra.mxu0 0.0
      %2121 = vmatpush.msra.mxu0 0.0
      %2122 = vmatpush.msra.mxu0 0.0
      %2123 = vmatpush.msra.mxu0 0.0
      %2124 = vmatpush.msra.mxu0 0.0
      %2125 = vmatpush.msra.mxu0 0.0
      %2126 = vmatpush.msra.mxu0 %v2105
      %2127 = vmatmul.f32.gmra.mxu0 %v2103
      %v2128 = vpop.f32.mrf.mxu0
      %v2129 = vadd.f32 0.0, %v2128
      %2130 = vdwg.mxu0
      %2131 = vmatpush.msra.mxu0 0.0
      %2132 = vmatpush.msra.mxu0 0.0
      %2133 = vmatpush.msra.mxu0 0.0
      %2134 = vmatpush.msra.mxu0 0.0
      %2135 = vmatpush.msra.mxu0 0.0
      %2136 = vmatpush.msra.mxu0 0.0
      %2137 = vmatpush.msra.mxu0 0.0
      %2138 = vmatpush.msra.mxu0 0.0
      %2139 = vmatpush.msra.mxu0 0.0
      %2140 = vmatpush.msra.mxu0 0.0
      %2141 = vmatpush.msra.mxu0 0.0
      %2142 = vmatpush.msra.mxu0 0.0
      %2143 = vmatpush.msra.mxu0 0.0
      %2144 = vmatpush.msra.mxu0 0.0
      %2145 = vmatpush.msra.mxu0 0.0
      %2146 = vmatpush.msra.mxu0 %v2107
      %2147 = vmatmul.f32.gmra.mxu0 %v2103
      %v2148 = vpop.f32.mrf.mxu0
      %v2149 = vadd.f32 0.0, %v2148
      %2150 = vdwg.mxu0
      %2151 = vmatpush.msra.mxu0 0.0
      %2152 = vmatpush.msra.mxu0 0.0
      %2153 = vmatpush.msra.mxu0 0.0
      %2154 = vmatpush.msra.mxu0 0.0
      %2155 = vmatpush.msra.mxu0 0.0
      %2156 = vmatpush.msra.mxu0 0.0
      %2157 = vmatpush.msra.mxu0 0.0
      %2158 = vmatpush.msra.mxu0 0.0
      %2159 = vmatpush.msra.mxu0 0.0
      %2160 = vmatpush.msra.mxu0 0.0
      %2161 = vmatpush.msra.mxu0 0.0
      %2162 = vmatpush.msra.mxu0 0.0
      %2163 = vmatpush.msra.mxu0 0.0
      %2164 = vmatpush.msra.mxu0 0.0
      %2165 = vmatpush.msra.mxu0 0.0
      %2166 = vmatpush.msra.mxu0 %v2109
      %2167 = vmatmul.f32.gmra.mxu0 %v2103
      %v2168 = vpop.f32.mrf.mxu0
      %v2169 = vadd.f32 0.0, %v2168
      %2170 = vdwg.mxu0
      %v2171 = vadd.f32 %v2079, %v2129
      %v2172 = vadd.f32 %v2080, %v2149
      %v2173 = vadd.f32 %v2081, %v2169
      %s2174 = scalar_lea.vmem %s5, 4
      %v2175 = vld [vmem:[%s2174] sm:$0xf]
      %2177 = vset.pattern.permute.xlu0 0
      %2178 = vperm.xlu0 %2177, %v2175
      %v2179 = vpop.permute.xlu0 %2178
      %v2181 = vadd.f32 %v2171, %v2179
      %v2182 = vadd.f32 %v2172, %v2179
      %v2183 = vadd.f32 %v2173, %v2179
      %v2184 = vmul.f32 %v2181, 0.2
      %v2185 = vmul.f32 %v2182, 0.2
      %v2186 = vmul.f32 %v2183, 0.2
      %v2187 = vmax.f32 %v2181, %v2184
      %v2188 = vmax.f32 %v2182, %v2185
      %v2189 = vmax.f32 %v2183, %v2186
      %v2192 = vrot.slane %v2188, 4
      %v2193 = vsel %vm323, %v2187, %v2192
      %2195 = vst [vmem:[%s298] sm:$0xff] %v2193
      %vm2196 = vcmask 551936
      %2197 = vst.msk [vmem:[%s298 + $0x8] sm:$0xf] %vm2196, %v2189
      %p2198 = scmp.lt.s32.totalorder %s18, 1
      %s2199 = scalar_select %p2198, %s18, 1
      %s2200 = smul.addr %s2199, 3
      %s2201 = smul.addr %s2200, 4
      %s2202 = scalar_lea.vmem %s7, %s2201
      // Predicated region
      $region49: #{_lambda_.6} parent=47 // pred_check
        %p2203 = pneg %p193
      $region50: #{_lambda_.6} parent=47 // pred_check_branch
        %2205 = sbr.rel (%p2203) target = $region52
      $region51: #{_lambda_.6} parent=47 // pred_region
        _
      $region52: #{_lambda_.6} parent=47 // pred_fallthru
        _
    $region48: #{_lambda_.6} parent=5 // pred_fallthru
      _
    %p2206 = scmp.le.s32.totalorder 2, %s13
    // Predicated region
    $region53: #{_lambda_.6} parent=5 // pred_check
      %p2207 = pneg %p2206
    $region54: #{_lambda_.6} parent=5 // pred_check_branch
      %2209 = sbr.rel (%p2207) target = $region56
    $region55: #{_lambda_.6} parent=5 // pred_region
      %s2210 = ssub.s32 %s13, 2
      // Predicated region
      $region57: #{_lambda_.6} parent=55 // pred_check
        %p2211 = pneg %p199
      $region58: #{_lambda_.6} parent=55 // pred_check_branch
        %2213 = sbr.rel (%p2211) target = $region60
      $region59: #{_lambda_.6} parent=55 // pred_region
        %p2214 = scmp.lt.s32.totalorder %s19, 1
        %s2215 = scalar_select %p2214, %s19, 1
        %s2216 = smul.addr %s2215, 3
        %s2217 = smul.addr %s2216, 4
        %s2218 = scalar_lea.vmem %s7, %s2217
      $region60: #{_lambda_.6} parent=55 // pred_fallthru
        _
    $region56: #{_lambda_.6} parent=5 // pred_fallthru
      _
  $region6: #{_lambda_.6} parent=0 // loop_footer
    %s17 = sadd.s32 1, %s13
  $region7: #{_lambda_.6} parent=0 // loop_footer_branch
    %12 = sbr.rel target = $region3
  $region8: #{_lambda_.6} parent=0 // loop_exit
    _

</llo_original>
